<compile_context>
chip_gen: v7x
topology: tpu7x:2x2x1
jax: 0.10.0
libtpu: 0.0.40
codegen_flags: <defaults>
</compile_context>

<pallas_src>
import functools
from math import sqrt

import jax
import jax.numpy as jnp
from jax.experimental import pallas as pl
from jax.experimental.pallas import tpu as pltpu


def _mha_kernel(q_ref, k_ref, v_ref,
                wq_ref, wk_ref, wv_ref, wo_ref,
                gamma_ref, beta_ref,
                out_ref, *rest,
                n_head, d_k, d_v, eps, sum_flag, return_attn, approx_recip):
    Bb, Lq, d_model = q_ref.shape
    _, Lk, kv_dim = k_ref.shape
    H = n_head
    mm_dtype = q_ref.dtype                      # matmul input dtype (bf16 stays bf16)

    # Flatten (batch_block, seq) into the matmul M dim.
    q2d = q_ref[...].reshape(Bb * Lq, d_model)
    k2d = k_ref[...].reshape(Bb * Lk, kv_dim)
    v2d = v_ref[...].reshape(Bb * Lk, kv_dim)

    # ---- bias-free linear projections, f32 accumulation on the MXU.
    # 1/temperature is already folded into wq by the wrapper.
    qp = jnp.dot(q2d, wq_ref[...], preferred_element_type=jnp.float32)
    kp = jnp.dot(k2d, wk_ref[...], preferred_element_type=jnp.float32)
    vp = jnp.dot(v2d, wv_ref[...], preferred_element_type=jnp.float32)

    # ---- heads-batched attention: single cast, (Bb*H)-batched matmuls.
    qh = (qp.astype(mm_dtype).reshape(Bb, Lq, H, d_k)
            .transpose(0, 2, 1, 3).reshape(Bb * H, Lq, d_k))
    kh = (kp.astype(mm_dtype).reshape(Bb, Lk, H, d_k)
            .transpose(0, 2, 1, 3).reshape(Bb * H, Lk, d_k))
    vh = (vp.astype(mm_dtype).reshape(Bb, Lk, H, d_v)
            .transpose(0, 2, 1, 3).reshape(Bb * H, Lk, d_v))

    s = jnp.einsum('bqd,bkd->bqk', qh, kh,
                   preferred_element_type=jnp.float32)            # (Bb*H, Lq, Lk)
    m = jnp.max(s, axis=-1, keepdims=True)
    e = jnp.exp(s - m)
    inv = pl.reciprocal(jnp.sum(e, axis=-1, keepdims=True), approx=approx_recip)
    p = e * inv                                                   # softmax, f32

    if return_attn:
        # Direct store of the batched tensor: no f32 stack / extra relayout.
        rest[0][...] = p.reshape(Bb, H, Lq, Lk).astype(rest[0].dtype)

    ctx = jnp.einsum('bqk,bkd->bqd', p.astype(mm_dtype), vh,
                     preferred_element_type=jnp.float32)          # (Bb*H, Lq, d_v)

    # ---- merge heads back onto the lane axis; single output projection with
    # contraction dim H*d_v (fills the MXU vs. per-head d_v slices).
    ctx_all = (ctx.astype(mm_dtype).reshape(Bb, H, Lq, d_v)
                  .transpose(0, 2, 1, 3).reshape(Bb * Lq, H * d_v))
    out = jnp.dot(ctx_all, wo_ref[...], preferred_element_type=jnp.float32)

    if sum_flag:
        out = out + q2d.astype(jnp.float32)                       # residual
        mean = jnp.mean(out, axis=-1, keepdims=True)
        var = jnp.mean(jnp.square(out - mean), axis=-1, keepdims=True)
        out = (out - mean) * jax.lax.rsqrt(var + eps)
        out = out * gamma_ref[...] + beta_ref[...]                # (1, d_model) bcast

    out_ref[...] = out.reshape(Bb, Lq, d_model).astype(out_ref.dtype)


def _divisors_desc(n):
    return [d for d in range(n, 0, -1) if n % d == 0]


def _estimate_vmem_bytes(bb, tq, Lk, d_model, kv_dim, n_head, d_k, d_v,
                         itemsize, return_attn):
    """Rough per-grid-step VMEM footprint (conservative: weights double-buffered)."""
    H = n_head
    f32 = 4
    w_elems = (d_model * H * d_k + kv_dim * H * d_k
               + kv_dim * H * d_v + H * d_v * d_model)
    total = 2 * w_elems * itemsize + 2 * 2 * d_model * f32        # weights + ln params
    # Double-buffered activation tiles (q, k, v inputs; out output).
    total += 2 * itemsize * bb * (tq * d_model + 2 * Lk * kv_dim + tq * d_model)
    if return_attn:
        total += 2 * itemsize * bb * H * tq * Lk                  # attn output tile
    # f32 intermediates: projections, scores + probs, context, LN temps.
    total += f32 * bb * (tq * H * d_k + Lk * H * (d_k + d_v)
                         + 2 * H * tq * Lk + tq * H * d_v + 2 * tq * d_model)
    # mm-dtype head-split copies + prob cast.
    total += itemsize * bb * (tq * H * d_k + Lk * H * (d_k + d_v)
                              + H * tq * Lk + tq * H * d_v)
    return total


def _choose_tiling(B, Lq, Lk, d_model, kv_dim, n_head, d_k, d_v,
                   itemsize, return_attn, budget):
    """Largest (block_b, tile_q) fitting the VMEM budget; prefer >=2 grid steps
    so v7x's two TensorCores both get work (negligible cost on v5e/v6e)."""
    bb_cands = _divisors_desc(B)
    tq_cands = [Lq] + [t for t in _divisors_desc(Lq) if t != Lq and t % 8 == 0]

    def steps(bb, tq):
        return (B // bb) * (Lq // tq)

    can_multi = any(steps(bb, tq) >= 2 for bb in bb_cands for tq in tq_cands)
    passes = (True, False) if can_multi else (False,)
    for prefer_multi in passes:
        for tq in tq_cands:
            for bb in bb_cands:
                if prefer_multi and steps(bb, tq) < 2:
                    continue
                if _estimate_vmem_bytes(bb, tq, Lk, d_model, kv_dim, n_head,
                                        d_k, d_v, itemsize,
                                        return_attn) <= budget:
                    return bb, tq
    # Nothing fits the budget: smallest tiles, let the compiler try anyway.
    return 1, tq_cands[-1]


def multi_head_attention(q, k, v, params, *, n_head, d_k, d_v,
                         sum_flag=True, return_attn=True,
                         block_b=None, tile_q=None):
    """q: (B, Lq, d_model), k/v: (B, Lk, kv_dim). Returns (out, attn|None)."""
    B, Lq, d_model = q.shape
    _, Lk, kv_dim = k.shape
    eps = 1e-6

    # Generation-aware VMEM budget: v7x has 64 MiB/core, v5e/v6e have 128 MiB.
    try:
        vmem_cap = int(pltpu.get_tpu_info().vmem_capacity_bytes)
    except Exception:
        vmem_cap = 64 * 1024 * 1024          # conservative default (v7x-sized)
    vmem_limit = min(int(vmem_cap * 0.85), 112 * 1024 * 1024)
    budget = int(vmem_limit * 0.80)          # headroom for Mosaic internal scratch

    itemsize = jnp.dtype(q.dtype).itemsize
    auto_bb, auto_tq = _choose_tiling(B, Lq, Lk, d_model, kv_dim, n_head,
                                      d_k, d_v, itemsize, return_attn, budget)
    if block_b is None:
        block_b = auto_bb
    if tile_q is None:
        tile_q = auto_tq
    assert B % block_b == 0 and Lq % tile_q == 0

    # Fold 1/sqrt(d_k) into the q-projection weight (scaled in f32, cast back).
    scale = 1.0 / float(sqrt(d_k))
    wq = (params['wq'].astype(jnp.float32) * scale).astype(params['wq'].dtype)
    wk = params['wk']                # (kv_dim,  H*d_k)  pre-transposed [in, out]
    wv = params['wv']                # (kv_dim,  H*d_v)
    wo = params['wo']                # (H*d_v,   d_model)
    gamma = params['ln_gamma'].reshape(1, d_model).astype(jnp.float32)
    beta = params['ln_beta'].reshape(1, d_model).astype(jnp.float32)

    kernel = functools.partial(
        _mha_kernel, n_head=n_head, d_k=d_k, d_v=d_v, eps=eps,
        sum_flag=sum_flag, return_attn=return_attn,
        approx_recip=not return_attn)

    grid = (B // block_b, Lq // tile_q)

    out_shapes = [jax.ShapeDtypeStruct((B, Lq, d_model), q.dtype)]
    out_specs = [pl.BlockSpec((block_b, tile_q, d_model),
                              lambda b, qi: (b, qi, 0))]
    if return_attn:
        # Emitted in the input dtype (halves O(L^2) writeback when bf16).
        out_shapes.append(jax.ShapeDtypeStruct((B, n_head, Lq, Lk), q.dtype))
        out_specs.append(pl.BlockSpec((block_b, n_head, tile_q, Lk),
                                      lambda b, qi: (b, 0, qi, 0)))

    # TODO(synk): if d_model / Lk are far from multiples of 128 at deployment
    # shapes, pad the lane dims in the wrapper for unmasked (lane-dense) stores.

    def _run(single_buffer_weights):
        const_kw = {}
        if single_buffer_weights:
            # Constant-index weights never re-DMA; the default second pipeline
            # buffer is pure VMEM waste.
            const_kw = dict(pipeline_mode=pl.Buffered(1))
        in_specs = [
            pl.BlockSpec((block_b, tile_q, d_model), lambda b, qi: (b, qi, 0)),
            pl.BlockSpec((block_b, Lk, kv_dim), lambda b, qi: (b, 0, 0)),
            pl.BlockSpec((block_b, Lk, kv_dim), lambda b, qi: (b, 0, 0)),
            pl.BlockSpec((d_model, n_head * d_k), lambda b, qi: (0, 0), **const_kw),
            pl.BlockSpec((kv_dim, n_head * d_k), lambda b, qi: (0, 0), **const_kw),
            pl.BlockSpec((kv_dim, n_head * d_v), lambda b, qi: (0, 0), **const_kw),
            pl.BlockSpec((n_head * d_v, d_model), lambda b, qi: (0, 0), **const_kw),
            pl.BlockSpec((1, d_model), lambda b, qi: (0, 0), **const_kw),
            pl.BlockSpec((1, d_model), lambda b, qi: (0, 0), **const_kw),
        ]
        grid_spec = pltpu.PrefetchScalarGridSpec(
            num_scalar_prefetch=0, grid=grid,
            in_specs=in_specs, out_specs=out_specs)
        return pl.pallas_call(
            kernel,
            out_shape=out_shapes,
            grid_spec=grid_spec,
            compiler_params=pltpu.CompilerParams(
                dimension_semantics=("parallel", "parallel"),
                vmem_limit_bytes=vmem_limit),
        )(q, k, v, wq, wk, wv, wo, gamma, beta)

    try:
        results = _run(True)
    except Exception:
        # TODO(synk): pl.Buffered(1) single-buffering of constant weight blocks
        # rejected by this jax version; fall back to default double buffering.
        results = _run(False)

    if return_attn:
        return results[0], results[1]
    return results[0], None


def _reference(q, k, v, params, *, n_head, d_k, d_v, sum_flag=True):
    """Pure-JAX reference mirroring the PyTorch module (mask=None)."""
    B, Lq, d_model = q.shape
    _, Lk, _ = k.shape
    qp = (q @ params['wq']).reshape(B, Lq, n_head, d_k).transpose(0, 2, 1, 3)
    kp = (k @ params['wk']).reshape(B, Lk, n_head, d_k).transpose(0, 2, 1, 3)
    vp = (v @ params['wv']).reshape(B, Lk, n_head, d_v).transpose(0, 2, 1, 3)
    scores = jnp.einsum('bhqd,bhkd->bhqk', qp / sqrt(d_k), kp)
    attn = jax.nn.softmax(scores, axis=-1)
    ctx = jnp.einsum('bhqk,bhkd->bhqd', attn, vp)
    merged = ctx.transpose(0, 2, 1, 3).reshape(B, Lq, n_head * d_v)
    out = merged @ params['wo']
    if sum_flag:
        out = out + q
        mean = jnp.mean(out, axis=-1, keepdims=True)
        var = jnp.mean((out - mean) ** 2, axis=-1, keepdims=True)
        out = (out - mean) / jnp.sqrt(var + 1e-6)
        out = out * params['ln_gamma'] + params['ln_beta']
    return out, attn


if __name__ == "__main__":
    # Small shapes consistent with the module's forward.
    B, Lq, Lk = 2, 8, 8
    d_model, kv_dim = 32, 32
    n_head, d_k, d_v = 4, 8, 8

    key = jax.random.PRNGKey(0)
    kq, kk, kv_, k1, k2, k3, k4 = jax.random.split(key, 7)

    q = jax.random.normal(kq, (B, Lq, d_model), dtype=jnp.float32)
    k = jax.random.normal(kk, (B, Lk, kv_dim), dtype=jnp.float32)
    v = jax.random.normal(kv_, (B, Lk, kv_dim), dtype=jnp.float32)

    # Deterministic params (Linear weights stored pre-transposed [in, out]).
    params = {
        'wq': jax.random.normal(k1, (d_model, n_head * d_k), dtype=jnp.float32) * 0.1,
        'wk': jax.random.normal(k2, (kv_dim, n_head * d_k), dtype=jnp.float32) * 0.1,
        'wv': jax.random.normal(k3, (kv_dim, n_head * d_v), dtype=jnp.float32) * 0.1,
        'wo': jax.random.normal(k4, (n_head * d_v, d_model), dtype=jnp.float32) * 0.1,
        'ln_gamma': jnp.ones((d_model,), dtype=jnp.float32),
        'ln_beta': jnp.zeros((d_model,), dtype=jnp.float32),
    }

    out, attn = multi_head_attention(q, k, v, params,
                                     n_head=n_head, d_k=d_k, d_v=d_v,
                                     sum_flag=True, return_attn=True)
    jax.block_until_ready((out, attn))

    ref_out, ref_attn = _reference(q, k, v, params,
                                   n_head=n_head, d_k=d_k, d_v=d_v, sum_flag=True)
    assert jnp.allclose(out, ref_out, atol=1e-4, rtol=1e-4), "output mismatch"
    assert jnp.allclose(attn, ref_attn, atol=1e-5, rtol=1e-5), "attn mismatch"

    # Bandwidth-saving path: drop the O(L^2) attention writeback entirely.
    # This path uses the approximate EUP reciprocal for the softmax denominator,
    # so the tolerance is slightly looser than the exact path above.
    out_na, attn_na = multi_head_attention(q, k, v, params,
                                           n_head=n_head, d_k=d_k, d_v=d_v,
                                           sum_flag=True, return_attn=False)
    jax.block_until_ready(out_na)
    assert attn_na is None
    assert jnp.allclose(out_na, ref_out, atol=5e-3, rtol=5e-3), "no-attn output mismatch"

    print("KERNEL_OK")
</pallas_src>

<mosaic_0001>
module attributes {stable_mosaic.version = 11 : i64} {
  func.func @_mha_kernel(%arg0: i32, %arg1: i32, %arg2: memref<1x8x32xf32, #tpu.memory_space<vmem>>, %arg3: memref<1x8x32xf32, #tpu.memory_space<vmem>>, %arg4: memref<1x8x32xf32, #tpu.memory_space<vmem>>, %arg5: memref<32x32xf32, #tpu.memory_space<vmem>>, %arg6: memref<32x32xf32, #tpu.memory_space<vmem>>, %arg7: memref<32x32xf32, #tpu.memory_space<vmem>>, %arg8: memref<32x32xf32, #tpu.memory_space<vmem>>, %arg9: memref<1x32xf32, #tpu.memory_space<vmem>>, %arg10: memref<1x32xf32, #tpu.memory_space<vmem>>, %arg11: memref<1x8x32xf32, #tpu.memory_space<vmem>>, %arg12: memref<1x4x8x8xf32, #tpu.memory_space<vmem>>) attributes {dimension_semantics = [#tpu.dimension_semantics<parallel>, #tpu.dimension_semantics<parallel>], iteration_bounds = array<i64: 2, 1>, scalar_prefetch = 0 : i64, scratch_operands = 0 : i64, tpu.core_type = #tpu.core_type<tc>, window_params = [{transform_indices = @transform_0, window_bounds = array<i64: 1, 8, 32>}, {transform_indices = @transform_1, window_bounds = array<i64: 1, 8, 32>}, {transform_indices = @transform_2, window_bounds = array<i64: 1, 8, 32>}, {pipeline_mode = #tpu.pipeline_mode<synchronous>, transform_indices = @transform_3, window_bounds = array<i64: 32, 32>}, {pipeline_mode = #tpu.pipeline_mode<synchronous>, transform_indices = @transform_4, window_bounds = array<i64: 32, 32>}, {pipeline_mode = #tpu.pipeline_mode<synchronous>, transform_indices = @transform_5, window_bounds = array<i64: 32, 32>}, {pipeline_mode = #tpu.pipeline_mode<synchronous>, transform_indices = @transform_6, window_bounds = array<i64: 32, 32>}, {pipeline_mode = #tpu.pipeline_mode<synchronous>, transform_indices = @transform_7, window_bounds = array<i64: 1, 32>}, {pipeline_mode = #tpu.pipeline_mode<synchronous>, transform_indices = @transform_8, window_bounds = array<i64: 1, 32>}, {transform_indices = @transform_9, window_bounds = array<i64: 1, 8, 32>}, {transform_indices = @transform_10, window_bounds = array<i64: 1, 4, 8, 8>}]} {
    %c0 = arith.constant 0 : index
    %c0_0 = arith.constant 0 : index
    %c0_1 = arith.constant 0 : index
    %0 = vector.load %arg2[%c0, %c0_0, %c0_1] : memref<1x8x32xf32, #tpu.memory_space<vmem>>, vector<1x8x32xf32>
    %1 = vector.shape_cast %0 : vector<1x8x32xf32> to vector<8x32xf32>
    %c0_2 = arith.constant 0 : index
    %c0_3 = arith.constant 0 : index
    %c0_4 = arith.constant 0 : index
    %2 = vector.load %arg3[%c0_2, %c0_3, %c0_4] : memref<1x8x32xf32, #tpu.memory_space<vmem>>, vector<1x8x32xf32>
    %3 = vector.shape_cast %2 : vector<1x8x32xf32> to vector<8x32xf32>
    %c0_5 = arith.constant 0 : index
    %c0_6 = arith.constant 0 : index
    %c0_7 = arith.constant 0 : index
    %4 = vector.load %arg4[%c0_5, %c0_6, %c0_7] : memref<1x8x32xf32, #tpu.memory_space<vmem>>, vector<1x8x32xf32>
    %5 = vector.shape_cast %4 : vector<1x8x32xf32> to vector<8x32xf32>
    %c0_8 = arith.constant 0 : index
    %c0_9 = arith.constant 0 : index
    %6 = vector.load %arg5[%c0_8, %c0_9] : memref<32x32xf32, #tpu.memory_space<vmem>>, vector<32x32xf32>
    %cst = arith.constant dense<0.000000e+00> : vector<8x32xf32>
    %7 = tpu.matmul %1, %6, %cst {dimension_numbers = #tpu.dot_dimension_numbers<[1], [0], [0], [1], [0, 0, 1, 1], [], []>} : vector<8x32xf32>, vector<32x32xf32>, vector<8x32xf32> -> vector<8x32xf32>
    %c0_10 = arith.constant 0 : index
    %c0_11 = arith.constant 0 : index
    %8 = vector.load %arg6[%c0_10, %c0_11] : memref<32x32xf32, #tpu.memory_space<vmem>>, vector<32x32xf32>
    %cst_12 = arith.constant dense<0.000000e+00> : vector<8x32xf32>
    %9 = tpu.matmul %3, %8, %cst_12 {dimension_numbers = #tpu.dot_dimension_numbers<[1], [0], [0], [1], [0, 0, 1, 1], [], []>} : vector<8x32xf32>, vector<32x32xf32>, vector<8x32xf32> -> vector<8x32xf32>
    %c0_13 = arith.constant 0 : index
    %c0_14 = arith.constant 0 : index
    %10 = vector.load %arg7[%c0_13, %c0_14] : memref<32x32xf32, #tpu.memory_space<vmem>>, vector<32x32xf32>
    %cst_15 = arith.constant dense<0.000000e+00> : vector<8x32xf32>
    %11 = tpu.matmul %5, %10, %cst_15 {dimension_numbers = #tpu.dot_dimension_numbers<[1], [0], [0], [1], [0, 0, 1, 1], [], []>} : vector<8x32xf32>, vector<32x32xf32>, vector<8x32xf32> -> vector<8x32xf32>
    %12 = vector.shape_cast %7 : vector<8x32xf32> to vector<1x8x4x8xf32>
    %13 = tpu.transpose %12, [0, 2, 1, 3] : vector<1x8x4x8xf32> -> vector<1x4x8x8xf32>
    %14 = vector.shape_cast %13 : vector<1x4x8x8xf32> to vector<4x8x8xf32>
    %15 = vector.shape_cast %9 : vector<8x32xf32> to vector<1x8x4x8xf32>
    %16 = tpu.transpose %15, [0, 2, 1, 3] : vector<1x8x4x8xf32> -> vector<1x4x8x8xf32>
    %17 = vector.shape_cast %16 : vector<1x4x8x8xf32> to vector<4x8x8xf32>
    %18 = vector.shape_cast %11 : vector<8x32xf32> to vector<1x8x4x8xf32>
    %19 = tpu.transpose %18, [0, 2, 1, 3] : vector<1x8x4x8xf32> -> vector<1x4x8x8xf32>
    %20 = vector.shape_cast %19 : vector<1x4x8x8xf32> to vector<4x8x8xf32>
    "tpu.trace_start"() <{level = 10 : i32, message = "bqd,bkd->bqk"}> : () -> ()
    %cst_16 = arith.constant dense<0.000000e+00> : vector<4x8x8xf32>
    %21 = tpu.matmul %14, %17, %cst_16 {dimension_numbers = #tpu.dot_dimension_numbers<[2], [2], [1], [1], [0, 0, 0, 1, 1, 1], [0], [0]>} : vector<4x8x8xf32>, vector<4x8x8xf32>, vector<4x8x8xf32> -> vector<4x8x8xf32>
    "tpu.trace_stop"() : () -> ()
    %cst_17 = arith.constant dense<0xFF800000> : vector<4x8xf32>
    %22 = vector.multi_reduction <maximumf>, %21, %cst_17 [2] : vector<4x8x8xf32> to vector<4x8xf32>
    %23 = vector.shape_cast %22 : vector<4x8xf32> to vector<4x8x1xf32>
    %24 = vector.broadcast %23 : vector<4x8x1xf32> to vector<4x8x8xf32>
    %25 = arith.subf %21, %24 : vector<4x8x8xf32>
    %26 = math.exp %25 : vector<4x8x8xf32>
    %cst_18 = arith.constant dense<0.000000e+00> : vector<4x8xf32>
    %27 = vector.multi_reduction <add>, %26, %cst_18 [2] : vector<4x8x8xf32> to vector<4x8xf32>
    %28 = vector.shape_cast %27 : vector<4x8xf32> to vector<4x8x1xf32>
    %29 = tpu.reciprocal %28 : vector<4x8x1xf32> -> vector<4x8x1xf32>
    %30 = vector.broadcast %29 : vector<4x8x1xf32> to vector<4x8x8xf32>
    %31 = arith.mulf %26, %30 : vector<4x8x8xf32>
    %32 = vector.shape_cast %31 : vector<4x8x8xf32> to vector<1x4x8x8xf32>
    %c0_19 = arith.constant 0 : index
    %c0_20 = arith.constant 0 : index
    %c0_21 = arith.constant 0 : index
    %c0_22 = arith.constant 0 : index
    %33 = vector.load %arg12[%c0_19, %c0_20, %c0_21, %c0_22] : memref<1x4x8x8xf32, #tpu.memory_space<vmem>>, vector<1x4x8x8xf32>
    tpu.vector_store %arg12[%c0_19, %c0_20, %c0_21, %c0_22], %32 {strides = array<i32>} : memref<1x4x8x8xf32, #tpu.memory_space<vmem>>, vector<1x4x8x8xf32>,
    "tpu.trace_start"() <{level = 10 : i32, message = "bqk,bkd->bqd"}> : () -> ()
    %cst_23 = arith.constant dense<0.000000e+00> : vector<4x8x8xf32>
    %34 = tpu.matmul %31, %20, %cst_23 {dimension_numbers = #tpu.dot_dimension_numbers<[2], [1], [1], [2], [0, 0, 0, 1, 1, 2], [0], [0]>} : vector<4x8x8xf32>, vector<4x8x8xf32>, vector<4x8x8xf32> -> vector<4x8x8xf32>
    "tpu.trace_stop"() : () -> ()
    %35 = vector.shape_cast %34 : vector<4x8x8xf32> to vector<1x4x8x8xf32>
    %36 = tpu.transpose %35, [0, 2, 1, 3] : vector<1x4x8x8xf32> -> vector<1x8x4x8xf32>
    %37 = vector.shape_cast %36 : vector<1x8x4x8xf32> to vector<8x32xf32>
    %c0_24 = arith.constant 0 : index
    %c0_25 = arith.constant 0 : index
    %38 = vector.load %arg8[%c0_24, %c0_25] : memref<32x32xf32, #tpu.memory_space<vmem>>, vector<32x32xf32>
    %cst_26 = arith.constant dense<0.000000e+00> : vector<8x32xf32>
    %39 = tpu.matmul %37, %38, %cst_26 {dimension_numbers = #tpu.dot_dimension_numbers<[1], [0], [0], [1], [0, 0, 1, 1], [], []>} : vector<8x32xf32>, vector<32x32xf32>, vector<8x32xf32> -> vector<8x32xf32>
    %40 = arith.addf %39, %1 : vector<8x32xf32>
    %cst_27 = arith.constant dense<0.000000e+00> : vector<8xf32>
    %41 = vector.multi_reduction <add>, %40, %cst_27 [1] : vector<8x32xf32> to vector<8xf32>
    %42 = vector.shape_cast %41 : vector<8xf32> to vector<8x1xf32>
    %cst_28 = arith.constant 3.200000e+01 : f32
    %43 = vector.broadcast %cst_28 : f32 to vector<8x1xf32>
    %44 = arith.divf %42, %43 : vector<8x1xf32>
    %45 = vector.broadcast %44 : vector<8x1xf32> to vector<8x32xf32>
    %46 = arith.subf %40, %45 : vector<8x32xf32>
    %47 = arith.mulf %46, %46 : vector<8x32xf32>
    %cst_29 = arith.constant dense<0.000000e+00> : vector<8xf32>
    %48 = vector.multi_reduction <add>, %47, %cst_29 [1] : vector<8x32xf32> to vector<8xf32>
    %49 = vector.shape_cast %48 : vector<8xf32> to vector<8x1xf32>
    %cst_30 = arith.constant 3.200000e+01 : f32
    %50 = vector.broadcast %cst_30 : f32 to vector<8x1xf32>
    %51 = arith.divf %49, %50 : vector<8x1xf32>
    %52 = vector.broadcast %44 : vector<8x1xf32> to vector<8x32xf32>
    %53 = arith.subf %40, %52 : vector<8x32xf32>
    %cst_31 = arith.constant 9.99999997E-7 : f32
    %54 = vector.broadcast %cst_31 : f32 to vector<8x1xf32>
    %55 = arith.addf %51, %54 : vector<8x1xf32>
    %56 = math.rsqrt %55 : vector<8x1xf32>
    %57 = vector.broadcast %56 : vector<8x1xf32> to vector<8x32xf32>
    %58 = arith.mulf %53, %57 : vector<8x32xf32>
    %c0_32 = arith.constant 0 : index
    %c0_33 = arith.constant 0 : index
    %59 = vector.load %arg9[%c0_32, %c0_33] : memref<1x32xf32, #tpu.memory_space<vmem>>, vector<1x32xf32>
    %60 = vector.broadcast %59 : vector<1x32xf32> to vector<8x32xf32>
    %61 = arith.mulf %58, %60 : vector<8x32xf32>
    %c0_34 = arith.constant 0 : index
    %c0_35 = arith.constant 0 : index
    %62 = vector.load %arg10[%c0_34, %c0_35] : memref<1x32xf32, #tpu.memory_space<vmem>>, vector<1x32xf32>
    %63 = vector.broadcast %62 : vector<1x32xf32> to vector<8x32xf32>
    %64 = arith.addf %61, %63 : vector<8x32xf32>
    %65 = vector.shape_cast %64 : vector<8x32xf32> to vector<1x8x32xf32>
    %c0_36 = arith.constant 0 : index
    %c0_37 = arith.constant 0 : index
    %c0_38 = arith.constant 0 : index
    %66 = vector.load %arg11[%c0_36, %c0_37, %c0_38] : memref<1x8x32xf32, #tpu.memory_space<vmem>>, vector<1x8x32xf32>
    tpu.vector_store %arg11[%c0_36, %c0_37, %c0_38], %65 {strides = array<i32>} : memref<1x8x32xf32, #tpu.memory_space<vmem>>, vector<1x8x32xf32>,
    return
  }
  func.func @transform_0(%arg0: i32, %arg1: i32) -> (i32, i32, i32) {
    %c0_i32 = arith.constant 0 : i32
    %c0_i32_0 = arith.constant 0 : i32
    return %arg0, %arg1, %c0_i32 : i32, i32, i32
  }
  func.func @transform_1(%arg0: i32, %arg1: i32) -> (i32, i32, i32) {
    %c0_i32 = arith.constant 0 : i32
    %c0_i32_0 = arith.constant 0 : i32
    %c0_i32_1 = arith.constant 0 : i32
    return %arg0, %c0_i32, %c0_i32_0 : i32, i32, i32
  }
  func.func @transform_2(%arg0: i32, %arg1: i32) -> (i32, i32, i32) {
    %c0_i32 = arith.constant 0 : i32
    %c0_i32_0 = arith.constant 0 : i32
    %c0_i32_1 = arith.constant 0 : i32
    return %arg0, %c0_i32, %c0_i32_0 : i32, i32, i32
  }
  func.func @transform_3(%arg0: i32, %arg1: i32) -> (i32, i32) {
    %c0_i32 = arith.constant 0 : i32
    %c0_i32_0 = arith.constant 0 : i32
    %c0_i32_1 = arith.constant 0 : i32
    return %c0_i32, %c0_i32_0 : i32, i32
  }
  func.func @transform_4(%arg0: i32, %arg1: i32) -> (i32, i32) {
    %c0_i32 = arith.constant 0 : i32
    %c0_i32_0 = arith.constant 0 : i32
    %c0_i32_1 = arith.constant 0 : i32
    return %c0_i32, %c0_i32_0 : i32, i32
  }
  func.func @transform_5(%arg0: i32, %arg1: i32) -> (i32, i32) {
    %c0_i32 = arith.constant 0 : i32
    %c0_i32_0 = arith.constant 0 : i32
    %c0_i32_1 = arith.constant 0 : i32
    return %c0_i32, %c0_i32_0 : i32, i32
  }
  func.func @transform_6(%arg0: i32, %arg1: i32) -> (i32, i32) {
    %c0_i32 = arith.constant 0 : i32
    %c0_i32_0 = arith.constant 0 : i32
    %c0_i32_1 = arith.constant 0 : i32
    return %c0_i32, %c0_i32_0 : i32, i32
  }
  func.func @transform_7(%arg0: i32, %arg1: i32) -> (i32, i32) {
    %c0_i32 = arith.constant 0 : i32
    %c0_i32_0 = arith.constant 0 : i32
    %c0_i32_1 = arith.constant 0 : i32
    return %c0_i32, %c0_i32_0 : i32, i32
  }
  func.func @transform_8(%arg0: i32, %arg1: i32) -> (i32, i32) {
    %c0_i32 = arith.constant 0 : i32
    %c0_i32_0 = arith.constant 0 : i32
    %c0_i32_1 = arith.constant 0 : i32
    return %c0_i32, %c0_i32_0 : i32, i32
  }
  func.func @transform_9(%arg0: i32, %arg1: i32) -> (i32, i32, i32) {
    %c0_i32 = arith.constant 0 : i32
    %c0_i32_0 = arith.constant 0 : i32
    return %arg0, %arg1, %c0_i32 : i32, i32, i32
  }
  func.func @transform_10(%arg0: i32, %arg1: i32) -> (i32, i32, i32, i32) {
    %c0_i32 = arith.constant 0 : i32
    %c0_i32_0 = arith.constant 0 : i32
    %c0_i32_1 = arith.constant 0 : i32
    return %arg0, %c0_i32, %arg1, %c0_i32_0 : i32, i32, i32, i32
  }
}

module attributes {stable_mosaic.version = 11 : i64} {
  func.func @_mha_kernel(%arg0: i32, %arg1: i32, %arg2: memref<1x8x32xf32, #tpu.memory_space<vmem>>, %arg3: memref<1x8x32xf32, #tpu.memory_space<vmem>>, %arg4: memref<1x8x32xf32, #tpu.memory_space<vmem>>, %arg5: memref<32x32xf32, #tpu.memory_space<vmem>>, %arg6: memref<32x32xf32, #tpu.memory_space<vmem>>, %arg7: memref<32x32xf32, #tpu.memory_space<vmem>>, %arg8: memref<32x32xf32, #tpu.memory_space<vmem>>, %arg9: memref<1x32xf32, #tpu.memory_space<vmem>>, %arg10: memref<1x32xf32, #tpu.memory_space<vmem>>, %arg11: memref<1x8x32xf32, #tpu.memory_space<vmem>>, %arg12: memref<1x4x8x8xf32, #tpu.memory_space<vmem>>) attributes {dimension_semantics = [#tpu.dimension_semantics<parallel>, #tpu.dimension_semantics<parallel>], iteration_bounds = array<i64: 2, 1>, scalar_prefetch = 0 : i64, scratch_operands = 0 : i64, tpu.core_type = #tpu.core_type<tc>, window_params = [{transform_indices = @transform_0, window_bounds = array<i64: 1, 8, 32>}, {transform_indices = @transform_1, window_bounds = array<i64: 1, 8, 32>}, {transform_indices = @transform_2, window_bounds = array<i64: 1, 8, 32>}, {pipeline_mode = #tpu.pipeline_mode<synchronous>, transform_indices = @transform_3, window_bounds = array<i64: 32, 32>}, {pipeline_mode = #tpu.pipeline_mode<synchronous>, transform_indices = @transform_4, window_bounds = array<i64: 32, 32>}, {pipeline_mode = #tpu.pipeline_mode<synchronous>, transform_indices = @transform_5, window_bounds = array<i64: 32, 32>}, {pipeline_mode = #tpu.pipeline_mode<synchronous>, transform_indices = @transform_6, window_bounds = array<i64: 32, 32>}, {pipeline_mode = #tpu.pipeline_mode<synchronous>, transform_indices = @transform_7, window_bounds = array<i64: 1, 32>}, {pipeline_mode = #tpu.pipeline_mode<synchronous>, transform_indices = @transform_8, window_bounds = array<i64: 1, 32>}, {transform_indices = @transform_9, window_bounds = array<i64: 1, 8, 32>}, {transform_indices = @transform_10, window_bounds = array<i64: 1, 4, 8, 8>}]} {
    %c0 = arith.constant 0 : index
    %c0_0 = arith.constant 0 : index
    %c0_1 = arith.constant 0 : index
    %0 = vector.load %arg2[%c0, %c0_0, %c0_1] : memref<1x8x32xf32, #tpu.memory_space<vmem>>, vector<1x8x32xf32>
    %1 = vector.shape_cast %0 : vector<1x8x32xf32> to vector<8x32xf32>
    %c0_2 = arith.constant 0 : index
    %c0_3 = arith.constant 0 : index
    %c0_4 = arith.constant 0 : index
    %2 = vector.load %arg3[%c0_2, %c0_3, %c0_4] : memref<1x8x32xf32, #tpu.memory_space<vmem>>, vector<1x8x32xf32>
    %3 = vector.shape_cast %2 : vector<1x8x32xf32> to vector<8x32xf32>
    %c0_5 = arith.constant 0 : index
    %c0_6 = arith.constant 0 : index
    %c0_7 = arith.constant 0 : index
    %4 = vector.load %arg4[%c0_5, %c0_6, %c0_7] : memref<1x8x32xf32, #tpu.memory_space<vmem>>, vector<1x8x32xf32>
    %5 = vector.shape_cast %4 : vector<1x8x32xf32> to vector<8x32xf32>
    %c0_8 = arith.constant 0 : index
    %c0_9 = arith.constant 0 : index
    %6 = vector.load %arg5[%c0_8, %c0_9] : memref<32x32xf32, #tpu.memory_space<vmem>>, vector<32x32xf32>
    %cst = arith.constant dense<0.000000e+00> : vector<8x32xf32>
    %7 = tpu.matmul %1, %6, %cst {dimension_numbers = #tpu.dot_dimension_numbers<[1], [0], [0], [1], [0, 0, 1, 1], [], []>} : vector<8x32xf32>, vector<32x32xf32>, vector<8x32xf32> -> vector<8x32xf32>
    %c0_10 = arith.constant 0 : index
    %c0_11 = arith.constant 0 : index
    %8 = vector.load %arg6[%c0_10, %c0_11] : memref<32x32xf32, #tpu.memory_space<vmem>>, vector<32x32xf32>
    %cst_12 = arith.constant dense<0.000000e+00> : vector<8x32xf32>
    %9 = tpu.matmul %3, %8, %cst_12 {dimension_numbers = #tpu.dot_dimension_numbers<[1], [0], [0], [1], [0, 0, 1, 1], [], []>} : vector<8x32xf32>, vector<32x32xf32>, vector<8x32xf32> -> vector<8x32xf32>
    %c0_13 = arith.constant 0 : index
    %c0_14 = arith.constant 0 : index
    %10 = vector.load %arg7[%c0_13, %c0_14] : memref<32x32xf32, #tpu.memory_space<vmem>>, vector<32x32xf32>
    %cst_15 = arith.constant dense<0.000000e+00> : vector<8x32xf32>
    %11 = tpu.matmul %5, %10, %cst_15 {dimension_numbers = #tpu.dot_dimension_numbers<[1], [0], [0], [1], [0, 0, 1, 1], [], []>} : vector<8x32xf32>, vector<32x32xf32>, vector<8x32xf32> -> vector<8x32xf32>
    %12 = vector.shape_cast %7 : vector<8x32xf32> to vector<1x8x4x8xf32>
    %13 = tpu.transpose %12, [0, 2, 1, 3] : vector<1x8x4x8xf32> -> vector<1x4x8x8xf32>
    %14 = vector.shape_cast %13 : vector<1x4x8x8xf32> to vector<4x8x8xf32>
    %15 = vector.shape_cast %9 : vector<8x32xf32> to vector<1x8x4x8xf32>
    %16 = tpu.transpose %15, [0, 2, 1, 3] : vector<1x8x4x8xf32> -> vector<1x4x8x8xf32>
    %17 = vector.shape_cast %16 : vector<1x4x8x8xf32> to vector<4x8x8xf32>
    %18 = vector.shape_cast %11 : vector<8x32xf32> to vector<1x8x4x8xf32>
    %19 = tpu.transpose %18, [0, 2, 1, 3] : vector<1x8x4x8xf32> -> vector<1x4x8x8xf32>
    %20 = vector.shape_cast %19 : vector<1x4x8x8xf32> to vector<4x8x8xf32>
    "tpu.trace_start"() <{level = 10 : i32, message = "bqd,bkd->bqk"}> : () -> ()
    %cst_16 = arith.constant dense<0.000000e+00> : vector<4x8x8xf32>
    %21 = tpu.matmul %14, %17, %cst_16 {dimension_numbers = #tpu.dot_dimension_numbers<[2], [2], [1], [1], [0, 0, 0, 1, 1, 1], [0], [0]>} : vector<4x8x8xf32>, vector<4x8x8xf32>, vector<4x8x8xf32> -> vector<4x8x8xf32>
    "tpu.trace_stop"() : () -> ()
    %cst_17 = arith.constant dense<0xFF800000> : vector<4x8xf32>
    %22 = vector.multi_reduction <maximumf>, %21, %cst_17 [2] : vector<4x8x8xf32> to vector<4x8xf32>
    %23 = vector.shape_cast %22 : vector<4x8xf32> to vector<4x8x1xf32>
    %24 = vector.broadcast %23 : vector<4x8x1xf32> to vector<4x8x8xf32>
    %25 = arith.subf %21, %24 : vector<4x8x8xf32>
    %26 = math.exp %25 : vector<4x8x8xf32>
    %cst_18 = arith.constant dense<0.000000e+00> : vector<4x8xf32>
    %27 = vector.multi_reduction <add>, %26, %cst_18 [2] : vector<4x8x8xf32> to vector<4x8xf32>
    %28 = vector.shape_cast %27 : vector<4x8xf32> to vector<4x8x1xf32>
    %29 = tpu.reciprocal %28 : vector<4x8x1xf32> -> vector<4x8x1xf32>
    %30 = vector.broadcast %29 : vector<4x8x1xf32> to vector<4x8x8xf32>
    %31 = arith.mulf %26, %30 : vector<4x8x8xf32>
    %32 = vector.shape_cast %31 : vector<4x8x8xf32> to vector<1x4x8x8xf32>
    %c0_19 = arith.constant 0 : index
    %c0_20 = arith.constant 0 : index
    %c0_21 = arith.constant 0 : index
    %c0_22 = arith.constant 0 : index
    %33 = vector.load %arg12[%c0_19, %c0_20, %c0_21, %c0_22] : memref<1x4x8x8xf32, #tpu.memory_space<vmem>>, vector<1x4x8x8xf32>
    tpu.vector_store %arg12[%c0_19, %c0_20, %c0_21, %c0_22], %32 {strides = array<i32>} : memref<1x4x8x8xf32, #tpu.memory_space<vmem>>, vector<1x4x8x8xf32>,
    "tpu.trace_start"() <{level = 10 : i32, message = "bqk,bkd->bqd"}> : () -> ()
    %cst_23 = arith.constant dense<0.000000e+00> : vector<4x8x8xf32>
    %34 = tpu.matmul %31, %20, %cst_23 {dimension_numbers = #tpu.dot_dimension_numbers<[2], [1], [1], [2], [0, 0, 0, 1, 1, 2], [0], [0]>} : vector<4x8x8xf32>, vector<4x8x8xf32>, vector<4x8x8xf32> -> vector<4x8x8xf32>
    "tpu.trace_stop"() : () -> ()
    %35 = vector.shape_cast %34 : vector<4x8x8xf32> to vector<1x4x8x8xf32>
    %36 = tpu.transpose %35, [0, 2, 1, 3] : vector<1x4x8x8xf32> -> vector<1x8x4x8xf32>
    %37 = vector.shape_cast %36 : vector<1x8x4x8xf32> to vector<8x32xf32>
    %c0_24 = arith.constant 0 : index
    %c0_25 = arith.constant 0 : index
    %38 = vector.load %arg8[%c0_24, %c0_25] : memref<32x32xf32, #tpu.memory_space<vmem>>, vector<32x32xf32>
    %cst_26 = arith.constant dense<0.000000e+00> : vector<8x32xf32>
    %39 = tpu.matmul %37, %38, %cst_26 {dimension_numbers = #tpu.dot_dimension_numbers<[1], [0], [0], [1], [0, 0, 1, 1], [], []>} : vector<8x32xf32>, vector<32x32xf32>, vector<8x32xf32> -> vector<8x32xf32>
    %40 = arith.addf %39, %1 : vector<8x32xf32>
    %cst_27 = arith.constant dense<0.000000e+00> : vector<8xf32>
    %41 = vector.multi_reduction <add>, %40, %cst_27 [1] : vector<8x32xf32> to vector<8xf32>
    %42 = vector.shape_cast %41 : vector<8xf32> to vector<8x1xf32>
    %cst_28 = arith.constant 3.200000e+01 : f32
    %43 = vector.broadcast %cst_28 : f32 to vector<8x1xf32>
    %44 = arith.divf %42, %43 : vector<8x1xf32>
    %45 = vector.broadcast %44 : vector<8x1xf32> to vector<8x32xf32>
    %46 = arith.subf %40, %45 : vector<8x32xf32>
    %47 = arith.mulf %46, %46 : vector<8x32xf32>
    %cst_29 = arith.constant dense<0.000000e+00> : vector<8xf32>
    %48 = vector.multi_reduction <add>, %47, %cst_29 [1] : vector<8x32xf32> to vector<8xf32>
    %49 = vector.shape_cast %48 : vector<8xf32> to vector<8x1xf32>
    %cst_30 = arith.constant 3.200000e+01 : f32
    %50 = vector.broadcast %cst_30 : f32 to vector<8x1xf32>
    %51 = arith.divf %49, %50 : vector<8x1xf32>
    %52 = vector.broadcast %44 : vector<8x1xf32> to vector<8x32xf32>
    %53 = arith.subf %40, %52 : vector<8x32xf32>
    %cst_31 = arith.constant 9.99999997E-7 : f32
    %54 = vector.broadcast %cst_31 : f32 to vector<8x1xf32>
    %55 = arith.addf %51, %54 : vector<8x1xf32>
    %56 = math.rsqrt %55 : vector<8x1xf32>
    %57 = vector.broadcast %56 : vector<8x1xf32> to vector<8x32xf32>
    %58 = arith.mulf %53, %57 : vector<8x32xf32>
    %c0_32 = arith.constant 0 : index
    %c0_33 = arith.constant 0 : index
    %59 = vector.load %arg9[%c0_32, %c0_33] : memref<1x32xf32, #tpu.memory_space<vmem>>, vector<1x32xf32>
    %60 = vector.broadcast %59 : vector<1x32xf32> to vector<8x32xf32>
    %61 = arith.mulf %58, %60 : vector<8x32xf32>
    %c0_34 = arith.constant 0 : index
    %c0_35 = arith.constant 0 : index
    %62 = vector.load %arg10[%c0_34, %c0_35] : memref<1x32xf32, #tpu.memory_space<vmem>>, vector<1x32xf32>
    %63 = vector.broadcast %62 : vector<1x32xf32> to vector<8x32xf32>
    %64 = arith.addf %61, %63 : vector<8x32xf32>
    %65 = vector.shape_cast %64 : vector<8x32xf32> to vector<1x8x32xf32>
    %c0_36 = arith.constant 0 : index
    %c0_37 = arith.constant 0 : index
    %c0_38 = arith.constant 0 : index
    %66 = vector.load %arg11[%c0_36, %c0_37, %c0_38] : memref<1x8x32xf32, #tpu.memory_space<vmem>>, vector<1x8x32xf32>
    tpu.vector_store %arg11[%c0_36, %c0_37, %c0_38], %65 {strides = array<i32>} : memref<1x8x32xf32, #tpu.memory_space<vmem>>, vector<1x8x32xf32>,
    return
  }
  func.func @transform_0(%arg0: i32, %arg1: i32) -> (i32, i32, i32) {
    %c0_i32 = arith.constant 0 : i32
    %c0_i32_0 = arith.constant 0 : i32
    return %arg0, %arg1, %c0_i32 : i32, i32, i32
  }
  func.func @transform_1(%arg0: i32, %arg1: i32) -> (i32, i32, i32) {
    %c0_i32 = arith.constant 0 : i32
    %c0_i32_0 = arith.constant 0 : i32
    %c0_i32_1 = arith.constant 0 : i32
    return %arg0, %c0_i32, %c0_i32_0 : i32, i32, i32
  }
  func.func @transform_2(%arg0: i32, %arg1: i32) -> (i32, i32, i32) {
    %c0_i32 = arith.constant 0 : i32
    %c0_i32_0 = arith.constant 0 : i32
    %c0_i32_1 = arith.constant 0 : i32
    return %arg0, %c0_i32, %c0_i32_0 : i32, i32, i32
  }
  func.func @transform_3(%arg0: i32, %arg1: i32) -> (i32, i32) {
    %c0_i32 = arith.constant 0 : i32
    %c0_i32_0 = arith.constant 0 : i32
    %c0_i32_1 = arith.constant 0 : i32
    return %c0_i32, %c0_i32_0 : i32, i32
  }
  func.func @transform_4(%arg0: i32, %arg1: i32) -> (i32, i32) {
    %c0_i32 = arith.constant 0 : i32
    %c0_i32_0 = arith.constant 0 : i32
    %c0_i32_1 = arith.constant 0 : i32
    return %c0_i32, %c0_i32_0 : i32, i32
  }
  func.func @transform_5(%arg0: i32, %arg1: i32) -> (i32, i32) {
    %c0_i32 = arith.constant 0 : i32
    %c0_i32_0 = arith.constant 0 : i32
    %c0_i32_1 = arith.constant 0 : i32
    return %c0_i32, %c0_i32_0 : i32, i32
  }
  func.func @transform_6(%arg0: i32, %arg1: i32) -> (i32, i32) {
    %c0_i32 = arith.constant 0 : i32
    %c0_i32_0 = arith.constant 0 : i32
    %c0_i32_1 = arith.constant 0 : i32
    return %c0_i32, %c0_i32_0 : i32, i32
  }
  func.func @transform_7(%arg0: i32, %arg1: i32) -> (i32, i32) {
    %c0_i32 = arith.constant 0 : i32
    %c0_i32_0 = arith.constant 0 : i32
    %c0_i32_1 = arith.constant 0 : i32
    return %c0_i32, %c0_i32_0 : i32, i32
  }
  func.func @transform_8(%arg0: i32, %arg1: i32) -> (i32, i32) {
    %c0_i32 = arith.constant 0 : i32
    %c0_i32_0 = arith.constant 0 : i32
    %c0_i32_1 = arith.constant 0 : i32
    return %c0_i32, %c0_i32_0 : i32, i32
  }
  func.func @transform_9(%arg0: i32, %arg1: i32) -> (i32, i32, i32) {
    %c0_i32 = arith.constant 0 : i32
    %c0_i32_0 = arith.constant 0 : i32
    return %arg0, %arg1, %c0_i32 : i32, i32, i32
  }
  func.func @transform_10(%arg0: i32, %arg1: i32) -> (i32, i32, i32, i32) {
    %c0_i32 = arith.constant 0 : i32
    %c0_i32_0 = arith.constant 0 : i32
    %c0_i32_1 = arith.constant 0 : i32
    return %arg0, %c0_i32, %arg1, %c0_i32_0 : i32, i32, i32, i32
  }
}

</mosaic_0001>

<llo_original>
// kernel: tpu_custom_call.1
$region0: #{tpu_custom_call.1}
  #allocation0 [shape = 'u32[]', space=smem, size = 0x4, offset = 0x4, fixed_abs, tag = 'smem constant byte address 0x4 - core index']
  #allocation1 [shape = 'u32[144,128]{1,0:T(1,128)}', space=vmem, size = 0x12000, scoped, tag = 'internal scratch']
  %s0 = inlined_call_operand.hbm [shape: f32[2,8,32], index: 0, kind: input, shape index: {}]
  %s1 = inlined_call_operand.hbm [shape: f32[2,8,32], index: 1, kind: input, shape index: {}]
  %s2 = inlined_call_operand.hbm [shape: f32[2,8,32], index: 2, kind: input, shape index: {}]
  %s3 = inlined_call_operand.hbm [shape: f32[32,32], index: 3, kind: input, shape index: {}]
  %s4 = inlined_call_operand.hbm [shape: f32[32,32], index: 4, kind: input, shape index: {}]
  %s5 = inlined_call_operand.hbm [shape: f32[32,32], index: 5, kind: input, shape index: {}]
  %s6 = inlined_call_operand.hbm [shape: f32[32,32], index: 6, kind: input, shape index: {}]
  %s7 = inlined_call_operand.vmem [shape: f32[1,32], index: 7, kind: input, shape index: {}]
  %s8 = inlined_call_operand.vmem [shape: f32[1,32], index: 8, kind: input, shape index: {}]
  %s9 = inlined_call_operand.hbm [shape: f32[2,8,32], index: 9, kind: output, shape index: {0}]
  %s10 = inlined_call_operand.hbm [shape: f32[2,4,8,8], index: 10, kind: output, shape index: {1}]
  %11 = xla_tuple %s9, %s10
  %s12 = sld [smem:[#allocation0]]
  $region105: #{tpu_custom_call.1} parent=0
    _
  %s14 = ssub.s32 1, %s12
  %s15 = scalar_select 0, %s14, %s12
  $region1: #{tpu_custom_call.1} parent=0
    #allocation2 [shape = 'u8[8192]{0}', space=vmem, size = 0x2000, scoped, tag = 'input window, operand 0']
    #allocation3 [shape = 's32[2]{0}', space=sflag, size = 0x8, scoped, tag = 'scoped memory for tpu_custom_call.1']
    #allocation4 [shape = 's32[2]{0}', space=sflag, size = 0x8, scoped, tag = 'scoped memory for tpu_custom_call.1']
    #allocation5 [shape = 'u8[8192]{0}', space=vmem, size = 0x2000, scoped, tag = 'input window, operand 1']
    #allocation6 [shape = 's32[2]{0}', space=sflag, size = 0x8, scoped, tag = 'scoped memory for tpu_custom_call.1']
    #allocation7 [shape = 'u8[8192]{0}', space=vmem, size = 0x2000, scoped, tag = 'input window, operand 2']
    #allocation8 [shape = 'u8[16384]{0}', space=vmem, size = 0x4000, scoped, tag = 'input window, operand 3, single buffered']
    #allocation9 [shape = 's32[1]{0}', space=sflag, size = 0x4, scoped, tag = 'scoped memory for tpu_custom_call.1']
    #allocation10 [shape = 'u8[16384]{0}', space=vmem, size = 0x4000, scoped, tag = 'input window, operand 4, single buffered']
    #allocation11 [shape = 'u8[16384]{0}', space=vmem, size = 0x4000, scoped, tag = 'input window, operand 5, single buffered']
    #allocation12 [shape = 's32[1]{0}', space=sflag, size = 0x4, scoped, tag = 'scoped memory for tpu_custom_call.1']
    #allocation13 [shape = 'u8[16384]{0}', space=vmem, size = 0x4000, scoped, tag = 'input window, operand 6, single buffered']
    #allocation14 [shape = 'u8[8192]{0}', space=vmem, size = 0x2000, scoped, tag = 'output window, operand 0']
    #allocation15 [shape = 'u8[32768]{0}', space=vmem, size = 0x8000, scoped, tag = 'output window, operand 1']
    #allocation16 [shape = 's32[2]{0}', space=sflag, size = 0x8, scoped, tag = 'scoped memory for tpu_custom_call.1']
    %16 = vsyncpa [#allocation3], 0
    %s17 = scalar_lea.sflag [#allocation3], 1
    %18 = vsyncpa %s17, 0
    %19 = vsyncpa [#allocation6], 0
    %s20 = scalar_lea.sflag [#allocation6], 1
    %21 = vsyncpa %s20, 0
    %22 = vsyncpa [#allocation9], 0
    %23 = vsyncpa [#allocation12], 0
    %24 = vsyncpa [#allocation4], 0
    %s25 = scalar_lea.sflag [#allocation4], 1
    %26 = vsyncpa %s25, 0
    %27 = vsyncpa [#allocation16], 0
    %s28 = scalar_lea.sflag [#allocation16], 1
    %29 = vsyncpa %s28, 0
    loop: start=0, step=1, limit=4
    $region2: #{tpu_custom_call.1} parent=1 // loop_pre_header
      _
    $region3: #{tpu_custom_call.1} parent=1 // loop_header
      %s31 = sphi 0, %s35
      %p32 = scmp.ge.s32.totalorder %s31, 4
      %s38 = sphi 0, %s50
      %s39 = sphi 0, %s46
      %s40 = sphi 0, %s38
      %s41 = sphi 0, %s39
      %s42 = sphi 0, %s40
      %s43 = sphi 0, %s41
      %s55 = sphi 0, %s57
      %s58 = sphi 0, %s55
      %s59 = sphi 0, %s58
      %s75 = sphi 0, %s59
      %s81 = sphi 0, %s83
      %s84 = sphi 0, %s81
      %s85 = sphi 0, %s84
      %s101 = sphi 0, %s85
      %s107 = sphi 0, %s109
      %s110 = sphi 0, %s107
      %s111 = sphi 0, %s110
      %s127 = sphi 0, %s111
      %s131 = sphi 0, %s131
      %s133 = sphi 0, %s131
      %s134 = sphi 0, %s133
      %s148 = sphi 0, %s134
      %s152 = sphi 0, %s152
      %s154 = sphi 0, %s152
      %s155 = sphi 0, %s154
      %s169 = sphi 0, %s155
      %s173 = sphi 0, %s173
      %s175 = sphi 0, %s173
      %s176 = sphi 0, %s175
      %s190 = sphi 0, %s176
      %s194 = sphi 0, %s194
      %s196 = sphi 0, %s194
      %s197 = sphi 0, %s196
      %s211 = sphi 0, %s197
      %s215 = sphi 0, %s215
      %s217 = sphi 0, %s215
      %s218 = sphi 0, %s217
      %s232 = sphi 0, %s218
      %s236 = sphi 0, %s236
      %s238 = sphi 0, %s236
      %s239 = sphi 0, %s238
      %s253 = sphi 0, %s239
      %s261 = sphi 0, %s263
      %s264 = sphi 0, %s261
      %s265 = sphi 0, %s264
      %s281 = sphi 0, %s265
      %s289 = sphi 0, %s291
      %s292 = sphi 0, %s289
      %s293 = sphi 0, %s292
      %s309 = sphi 0, %s293
    $region4: #{tpu_custom_call.1} parent=1 // loop_header_branch
      %34 = sbr.rel (%p32) target = $region8
    $region5: #{tpu_custom_call.1} parent=1 // loop_body
      %s36 = ssub.s32 %s31, 1
      %s37 = ssub.s32 %s31, 2
      %s44 = sadd.s32 1, %s39
      %p45 = scmp.ge.s32.totalorder %s44, 1
      %s46 = scalar_select %p45, 0, %s44
      %s47 = sadd.s32 1, %s38
      %s48 = scalar_select %p45, %s47, %s38
      %p49 = scmp.ge.s32.totalorder %s48, 2
      %s50 = scalar_select %p49, 0, %s48
      %s51 = ssub.s32 %s38, %s50
      %s52 = ssub.s32 %s39, %s46
      %s53 = sor.u32 %s51, %s52
      %p54 = scmp.eq.s32.totalorder %s53, 0
      %s56 = sadd.s32 %s55, 1
      %s57 = scalar_select %p54, %s55, %s56
      %p60 = pneg %p54
      %p61 = scmp.eq.s32.totalorder %s31, 1
      %p62 = por %p60, %p61
      %p63 = scmp.ne.s32.totalorder %s55, %s58
      %p64 = scmp.eq.s32.totalorder %s31, 0
      %p65 = por %p63, %p64
      %p66 = scmp.ne.s32.totalorder %s55, %s58
      %p67 = scmp.eq.s32.totalorder %s36, 1
      %p68 = por %p66, %p67
      %p69 = scmp.ne.s32.totalorder %s58, %s59
      %p70 = scmp.eq.s32.totalorder %s36, 0
      %p71 = por %p69, %p70
      %p72 = scmp.ne.s32.totalorder %s58, %s59
      %p73 = scmp.eq.s32.totalorder %s37, 1
      %p74 = por %p72, %p73
      %p76 = scmp.ne.s32.totalorder %s59, %s75
      %p77 = scmp.eq.s32.totalorder %s37, 0
      %p78 = por %p76, %p77
      %s79 = ssub.s32 %s38, %s50
      %p80 = scmp.eq.s32.totalorder %s79, 0
      %s82 = sadd.s32 %s81, 1
      %s83 = scalar_select %p80, %s81, %s82
      %p86 = pneg %p80
      %p87 = scmp.eq.s32.totalorder %s31, 1
      %p88 = por %p86, %p87
      %p89 = scmp.ne.s32.totalorder %s81, %s84
      %p90 = scmp.eq.s32.totalorder %s31, 0
      %p91 = por %p89, %p90
      %p92 = scmp.ne.s32.totalorder %s81, %s84
      %p93 = scmp.eq.s32.totalorder %s36, 1
      %p94 = por %p92, %p93
      %p95 = scmp.ne.s32.totalorder %s84, %s85
      %p96 = scmp.eq.s32.totalorder %s36, 0
      %p97 = por %p95, %p96
      %p98 = scmp.ne.s32.totalorder %s84, %s85
      %p99 = scmp.eq.s32.totalorder %s37, 1
      %p100 = por %p98, %p99
      %p102 = scmp.ne.s32.totalorder %s85, %s101
      %p103 = scmp.eq.s32.totalorder %s37, 0
      %p104 = por %p102, %p103
      %s105 = ssub.s32 %s38, %s50
      %p106 = scmp.eq.s32.totalorder %s105, 0
      %s108 = sadd.s32 %s107, 1
      %s109 = scalar_select %p106, %s107, %s108
      %p112 = pneg %p106
      %p113 = scmp.eq.s32.totalorder %s31, 1
      %p114 = por %p112, %p113
      %p115 = scmp.ne.s32.totalorder %s107, %s110
      %p116 = scmp.eq.s32.totalorder %s31, 0
      %p117 = por %p115, %p116
      %p118 = scmp.ne.s32.totalorder %s107, %s110
      %p119 = scmp.eq.s32.totalorder %s36, 1
      %p120 = por %p118, %p119
      %p121 = scmp.ne.s32.totalorder %s110, %s111
      %p122 = scmp.eq.s32.totalorder %s36, 0
      %p123 = por %p121, %p122
      %p124 = scmp.ne.s32.totalorder %s110, %s111
      %p125 = scmp.eq.s32.totalorder %s37, 1
      %p126 = por %p124, %p125
      %p128 = scmp.ne.s32.totalorder %s111, %s127
      %p129 = scmp.eq.s32.totalorder %s37, 0
      %p130 = por %p128, %p129
      %s132 = sadd.s32 %s131, 1
      %p135 = scmp.eq.s32.totalorder %s31, 1
      %p136 = scmp.ne.s32.totalorder %s131, %s133
      %p137 = scmp.eq.s32.totalorder %s31, 0
      %p138 = por %p136, %p137
      %p139 = scmp.ne.s32.totalorder %s131, %s133
      %p140 = scmp.eq.s32.totalorder %s36, 1
      %p141 = por %p139, %p140
      %p142 = scmp.ne.s32.totalorder %s133, %s134
      %p143 = scmp.eq.s32.totalorder %s36, 0
      %p144 = por %p142, %p143
      %p145 = scmp.ne.s32.totalorder %s133, %s134
      %p146 = scmp.eq.s32.totalorder %s37, 1
      %p147 = por %p145, %p146
      %p149 = scmp.ne.s32.totalorder %s134, %s148
      %p150 = scmp.eq.s32.totalorder %s37, 0
      %p151 = por %p149, %p150
      %s153 = sadd.s32 %s152, 1
      %p156 = scmp.eq.s32.totalorder %s31, 1
      %p157 = scmp.ne.s32.totalorder %s152, %s154
      %p158 = scmp.eq.s32.totalorder %s31, 0
      %p159 = por %p157, %p158
      %p160 = scmp.ne.s32.totalorder %s152, %s154
      %p161 = scmp.eq.s32.totalorder %s36, 1
      %p162 = por %p160, %p161
      %p163 = scmp.ne.s32.totalorder %s154, %s155
      %p164 = scmp.eq.s32.totalorder %s36, 0
      %p165 = por %p163, %p164
      %p166 = scmp.ne.s32.totalorder %s154, %s155
      %p167 = scmp.eq.s32.totalorder %s37, 1
      %p168 = por %p166, %p167
      %p170 = scmp.ne.s32.totalorder %s155, %s169
      %p171 = scmp.eq.s32.totalorder %s37, 0
      %p172 = por %p170, %p171
      %s174 = sadd.s32 %s173, 1
      %p177 = scmp.eq.s32.totalorder %s31, 1
      %p178 = scmp.ne.s32.totalorder %s173, %s175
      %p179 = scmp.eq.s32.totalorder %s31, 0
      %p180 = por %p178, %p179
      %p181 = scmp.ne.s32.totalorder %s173, %s175
      %p182 = scmp.eq.s32.totalorder %s36, 1
      %p183 = por %p181, %p182
      %p184 = scmp.ne.s32.totalorder %s175, %s176
      %p185 = scmp.eq.s32.totalorder %s36, 0
      %p186 = por %p184, %p185
      %p187 = scmp.ne.s32.totalorder %s175, %s176
      %p188 = scmp.eq.s32.totalorder %s37, 1
      %p189 = por %p187, %p188
      %p191 = scmp.ne.s32.totalorder %s176, %s190
      %p192 = scmp.eq.s32.totalorder %s37, 0
      %p193 = por %p191, %p192
      %s195 = sadd.s32 %s194, 1
      %p198 = scmp.eq.s32.totalorder %s31, 1
      %p199 = scmp.ne.s32.totalorder %s194, %s196
      %p200 = scmp.eq.s32.totalorder %s31, 0
      %p201 = por %p199, %p200
      %p202 = scmp.ne.s32.totalorder %s194, %s196
      %p203 = scmp.eq.s32.totalorder %s36, 1
      %p204 = por %p202, %p203
      %p205 = scmp.ne.s32.totalorder %s196, %s197
      %p206 = scmp.eq.s32.totalorder %s36, 0
      %p207 = por %p205, %p206
      %p208 = scmp.ne.s32.totalorder %s196, %s197
      %p209 = scmp.eq.s32.totalorder %s37, 1
      %p210 = por %p208, %p209
      %p212 = scmp.ne.s32.totalorder %s197, %s211
      %p213 = scmp.eq.s32.totalorder %s37, 0
      %p214 = por %p212, %p213
      %s216 = sadd.s32 %s215, 1
      %p219 = scmp.eq.s32.totalorder %s31, 1
      %p220 = scmp.ne.s32.totalorder %s215, %s217
      %p221 = scmp.eq.s32.totalorder %s31, 0
      %p222 = por %p220, %p221
      %p223 = scmp.ne.s32.totalorder %s215, %s217
      %p224 = scmp.eq.s32.totalorder %s36, 1
      %p225 = por %p223, %p224
      %p226 = scmp.ne.s32.totalorder %s217, %s218
      %p227 = scmp.eq.s32.totalorder %s36, 0
      %p228 = por %p226, %p227
      %p229 = scmp.ne.s32.totalorder %s217, %s218
      %p230 = scmp.eq.s32.totalorder %s37, 1
      %p231 = por %p229, %p230
      %p233 = scmp.ne.s32.totalorder %s218, %s232
      %p234 = scmp.eq.s32.totalorder %s37, 0
      %p235 = por %p233, %p234
      %s237 = sadd.s32 %s236, 1
      %p240 = scmp.eq.s32.totalorder %s31, 1
      %p241 = scmp.ne.s32.totalorder %s236, %s238
      %p242 = scmp.eq.s32.totalorder %s31, 0
      %p243 = por %p241, %p242
      %p244 = scmp.ne.s32.totalorder %s236, %s238
      %p245 = scmp.eq.s32.totalorder %s36, 1
      %p246 = por %p244, %p245
      %p247 = scmp.ne.s32.totalorder %s238, %s239
      %p248 = scmp.eq.s32.totalorder %s36, 0
      %p249 = por %p247, %p248
      %p250 = scmp.ne.s32.totalorder %s238, %s239
      %p251 = scmp.eq.s32.totalorder %s37, 1
      %p252 = por %p250, %p251
      %p254 = scmp.ne.s32.totalorder %s239, %s253
      %p255 = scmp.eq.s32.totalorder %s37, 0
      %p256 = por %p254, %p255
      %s257 = ssub.s32 %s38, %s50
      %s258 = ssub.s32 %s39, %s46
      %s259 = sor.u32 %s257, %s258
      %p260 = scmp.eq.s32.totalorder %s259, 0
      %s262 = sadd.s32 %s261, 1
      %s263 = scalar_select %p260, %s261, %s262
      %p266 = pneg %p260
      %p267 = scmp.eq.s32.totalorder %s31, 1
      %p268 = por %p266, %p267
      %p269 = scmp.ne.s32.totalorder %s261, %s264
      %p270 = scmp.eq.s32.totalorder %s31, 0
      %p271 = por %p269, %p270
      %p272 = scmp.ne.s32.totalorder %s261, %s264
      %p273 = scmp.eq.s32.totalorder %s36, 1
      %p274 = por %p272, %p273
      %p275 = scmp.ne.s32.totalorder %s264, %s265
      %p276 = scmp.eq.s32.totalorder %s36, 0
      %p277 = por %p275, %p276
      %p278 = scmp.ne.s32.totalorder %s264, %s265
      %p279 = scmp.eq.s32.totalorder %s37, 1
      %p280 = por %p278, %p279
      %p282 = scmp.ne.s32.totalorder %s265, %s281
      %p283 = scmp.eq.s32.totalorder %s37, 0
      %p284 = por %p282, %p283
      %s285 = ssub.s32 %s38, %s50
      %s286 = ssub.s32 %s39, %s46
      %s287 = sor.u32 %s285, %s286
      %p288 = scmp.eq.s32.totalorder %s287, 0
      %s290 = sadd.s32 %s289, 1
      %s291 = scalar_select %p288, %s289, %s290
      %p294 = pneg %p288
      %p295 = scmp.eq.s32.totalorder %s31, 1
      %p296 = por %p294, %p295
      %p297 = scmp.ne.s32.totalorder %s289, %s292
      %p298 = scmp.eq.s32.totalorder %s31, 0
      %p299 = por %p297, %p298
      %p300 = scmp.ne.s32.totalorder %s289, %s292
      %p301 = scmp.eq.s32.totalorder %s36, 1
      %p302 = por %p300, %p301
      %p303 = scmp.ne.s32.totalorder %s292, %s293
      %p304 = scmp.eq.s32.totalorder %s36, 0
      %p305 = por %p303, %p304
      %p306 = scmp.ne.s32.totalorder %s292, %s293
      %p307 = scmp.eq.s32.totalorder %s37, 1
      %p308 = por %p306, %p307
      %p310 = scmp.ne.s32.totalorder %s293, %s309
      %p311 = scmp.eq.s32.totalorder %s37, 0
      %p312 = por %p310, %p311
      %p313 = scmp.le.s32.totalorder 1, %s31
      %p314 = scmp.lt.s32.totalorder %s31, 3
      %p315 = pnand %p313, %p314
      %p316 = pneg %p315
      // Predicated region
      $region9: #{tpu_custom_call.1} parent=5 // pred_check
        _
      $region10: #{tpu_custom_call.1} parent=5 // pred_check_branch
        %318 = sbr.rel (%p315) target = $region12
      $region11: #{tpu_custom_call.1} parent=5 // pred_region
        %s319 = ssub.s32 %s31, 1
        // Predicated region
        $region13: #{tpu_custom_call.1} parent=11 // pred_check
          %p320 = pneg %p144
        $region14: #{tpu_custom_call.1} parent=11 // pred_check_branch
          %322 = sbr.rel (%p320) target = $region16
        $region15: #{tpu_custom_call.1} parent=11 // pred_region
          %s324 = ssub.s32 512, 512
          %325 = vsyncadd [#allocation9], %s324
          %s326 = sshll.u32 [#allocation8], 4
          %s327 = int_to_ptr.vmem [resolvable:$true] %s326
          %332 = dma.hbm_to_vmem [thread:$0]  %s3, 512, %s327, [#allocation9], 128, 128, 8
        $region16: #{tpu_custom_call.1} parent=11 // pred_fallthru
          _
        // Predicated region
        $region17: #{tpu_custom_call.1} parent=11 // pred_check
          %p333 = pneg %p165
        $region18: #{tpu_custom_call.1} parent=11 // pred_check_branch
          %335 = sbr.rel (%p333) target = $region20
        $region19: #{tpu_custom_call.1} parent=11 // pred_region
          %s337 = ssub.s32 512, 512
          %338 = vsyncadd [#allocation9], %s337
          %s339 = sshll.u32 [#allocation10], 4
          %s340 = int_to_ptr.vmem [resolvable:$true] %s339
          %345 = dma.hbm_to_vmem [thread:$0]  %s4, 512, %s340, [#allocation9], 128, 128, 8
        $region20: #{tpu_custom_call.1} parent=11 // pred_fallthru
          _
        // Predicated region
        $region21: #{tpu_custom_call.1} parent=11 // pred_check
          %p346 = pneg %p186
        $region22: #{tpu_custom_call.1} parent=11 // pred_check_branch
          %348 = sbr.rel (%p346) target = $region24
        $region23: #{tpu_custom_call.1} parent=11 // pred_region
          %s350 = ssub.s32 512, 512
          %351 = vsyncadd [#allocation12], %s350
          %s352 = sshll.u32 [#allocation11], 4
          %s353 = int_to_ptr.vmem [resolvable:$true] %s352
          %358 = dma.hbm_to_vmem [thread:$0]  %s5, 512, %s353, [#allocation12], 128, 128, 8
        $region24: #{tpu_custom_call.1} parent=11 // pred_fallthru
          _
        // Predicated region
        $region25: #{tpu_custom_call.1} parent=11 // pred_check
          %p359 = pneg %p207
        $region26: #{tpu_custom_call.1} parent=11 // pred_check_branch
          %361 = sbr.rel (%p359) target = $region28
        $region27: #{tpu_custom_call.1} parent=11 // pred_region
          %s363 = ssub.s32 512, 512
          %364 = vsyncadd [#allocation12], %s363
          %s365 = sshll.u32 [#allocation13], 4
          %s366 = int_to_ptr.vmem [resolvable:$true] %s365
          %371 = dma.hbm_to_vmem [thread:$0]  %s6, 512, %s366, [#allocation12], 128, 128, 8
        $region28: #{tpu_custom_call.1} parent=11 // pred_fallthru
          _
        // Predicated region
        $region29: #{tpu_custom_call.1} parent=11 // pred_check
          %p372 = pneg %p228
        $region30: #{tpu_custom_call.1} parent=11 // pred_check_branch
          %374 = sbr.rel (%p372) target = $region32
        $region31: #{tpu_custom_call.1} parent=11 // pred_region
          _
        $region32: #{tpu_custom_call.1} parent=11 // pred_fallthru
          _
        // Predicated region
        $region33: #{tpu_custom_call.1} parent=11 // pred_check
          %p375 = pneg %p249
        $region34: #{tpu_custom_call.1} parent=11 // pred_check_branch
          %377 = sbr.rel (%p375) target = $region36
        $region35: #{tpu_custom_call.1} parent=11 // pred_region
          _
        $region36: #{tpu_custom_call.1} parent=11 // pred_fallthru
          _
      $region12: #{tpu_custom_call.1} parent=5 // pred_fallthru
        _
      %p378 = scmp.lt.s32.totalorder %s31, 2
      // Predicated region
      $region37: #{tpu_custom_call.1} parent=5 // pred_check
        %p379 = pneg %p378
      $region38: #{tpu_custom_call.1} parent=5 // pred_check_branch
        %381 = sbr.rel (%p379) target = $region40
      $region39: #{tpu_custom_call.1} parent=5 // pred_region
        // Predicated region
        $region41: #{tpu_custom_call.1} parent=39 // pred_check
          %p382 = pneg %p65
        $region42: #{tpu_custom_call.1} parent=39 // pred_check_branch
          %384 = sbr.rel (%p382) target = $region44
        $region43: #{tpu_custom_call.1} parent=39 // pred_region
          %s385 = sand.u32 %s55, 1
          %s386 = scalar_lea.sflag [#allocation3], %s385
          %s387 = sand.u32 %s55, 1
          %s388 = smul.addr %s387, 8
          %s389 = scalar_lea.vmem [#allocation2], %s388
          %s391 = ssub.s32 128, 128
          %392 = vsyncadd %s386, %s391
          %s393 = sadd.s32 %s39, %s38
          %s394 = smul.addr %s393, 128
          %s395 = scalar_lea.hbm %s0, %s394
          %s397 = sshll.u32 %s389, 4
          %s398 = int_to_ptr.vmem [resolvable:$true] %s397
          %400 = dma.hbm_to_vmem [thread:$0]  %s395, 128, %s398, %s386
        $region44: #{tpu_custom_call.1} parent=39 // pred_fallthru
          _
        // Predicated region
        $region45: #{tpu_custom_call.1} parent=39 // pred_check
          %p401 = pneg %p91
        $region46: #{tpu_custom_call.1} parent=39 // pred_check_branch
          %403 = sbr.rel (%p401) target = $region48
        $region47: #{tpu_custom_call.1} parent=39 // pred_region
          %s404 = sand.u32 %s31, 1
          %s405 = scalar_lea.sflag [#allocation6], %s404
          %s406 = sand.u32 %s81, 1
          %s407 = smul.addr %s406, 8
          %s408 = scalar_lea.vmem [#allocation5], %s407
          %s410 = ssub.s32 128, 128
          %411 = vsyncadd %s405, %s410
          %s412 = smul.addr %s38, 128
          %s413 = scalar_lea.hbm %s1, %s412
          %s415 = sshll.u32 %s408, 4
          %s416 = int_to_ptr.vmem [resolvable:$true] %s415
          %418 = dma.hbm_to_vmem [thread:$0]  %s413, 128, %s416, %s405
        $region48: #{tpu_custom_call.1} parent=39 // pred_fallthru
          _
        // Predicated region
        $region49: #{tpu_custom_call.1} parent=39 // pred_check
          %p419 = pneg %p117
        $region50: #{tpu_custom_call.1} parent=39 // pred_check_branch
          %421 = sbr.rel (%p419) target = $region52
        $region51: #{tpu_custom_call.1} parent=39 // pred_region
          %s422 = sand.u32 %s31, 1
          %s423 = scalar_lea.sflag [#allocation6], %s422
          %s424 = sand.u32 %s107, 1
          %s425 = smul.addr %s424, 8
          %s426 = scalar_lea.vmem [#allocation7], %s425
          %s428 = ssub.s32 128, 128
          %429 = vsyncadd %s423, %s428
          %s430 = smul.addr %s38, 128
          %s431 = scalar_lea.hbm %s2, %s430
          %s433 = sshll.u32 %s426, 4
          %s434 = int_to_ptr.vmem [resolvable:$true] %s433
          %436 = dma.hbm_to_vmem [thread:$0]  %s431, 128, %s434, %s423
        $region52: #{tpu_custom_call.1} parent=39 // pred_fallthru
          _
      $region40: #{tpu_custom_call.1} parent=5 // pred_fallthru
        _
      %p437 = scmp.le.s32.totalorder 1, %s31
      %p438 = scmp.lt.s32.totalorder %s31, 3
      %p439 = pnand %p437, %p438
      %p440 = pneg %p439
      // Predicated region
      $region53: #{tpu_custom_call.1} parent=5 // pred_check
        _
      $region54: #{tpu_custom_call.1} parent=5 // pred_check_branch
        %442 = sbr.rel (%p439) target = $region56
      $region55: #{tpu_custom_call.1} parent=5 // pred_region
        %s443 = ssub.s32 %s31, 1
        %s444 = sand.u32 %s58, 1
        %s445 = scalar_lea.sflag [#allocation3], %s444
        %s446 = sand.u32 %s58, 1
        %s447 = smul.addr %s446, 8
        %s448 = scalar_lea.vmem [#allocation2], %s447
        // Predicated region
        $region57: #{tpu_custom_call.1} parent=55 // pred_check
          %p449 = pneg %p71
        $region58: #{tpu_custom_call.1} parent=55 // pred_check_branch
          %451 = sbr.rel (%p449) target = $region60
        $region59: #{tpu_custom_call.1} parent=55 // pred_region
          %452 = dma.done %s445, 128
        $region60: #{tpu_custom_call.1} parent=55 // pred_fallthru
          _
        %s453 = sand.u32 %s36, 1
        %s454 = scalar_lea.sflag [#allocation6], %s453
        %s455 = sand.u32 %s84, 1
        %s456 = smul.addr %s455, 8
        %s457 = scalar_lea.vmem [#allocation5], %s456
        // Predicated region
        $region61: #{tpu_custom_call.1} parent=55 // pred_check
          %p458 = pneg %p97
        $region62: #{tpu_custom_call.1} parent=55 // pred_check_branch
          %460 = sbr.rel (%p458) target = $region64
        $region63: #{tpu_custom_call.1} parent=55 // pred_region
          %461 = dma.done %s454, 128
        $region64: #{tpu_custom_call.1} parent=55 // pred_fallthru
          _
        %s462 = sand.u32 %s36, 1
        %s463 = scalar_lea.sflag [#allocation6], %s462
        %s464 = sand.u32 %s110, 1
        %s465 = smul.addr %s464, 8
        %s466 = scalar_lea.vmem [#allocation7], %s465
        // Predicated region
        $region65: #{tpu_custom_call.1} parent=55 // pred_check
          %p467 = pneg %p123
        $region66: #{tpu_custom_call.1} parent=55 // pred_check_branch
          %469 = sbr.rel (%p467) target = $region68
        $region67: #{tpu_custom_call.1} parent=55 // pred_region
          %470 = dma.done %s463, 128
        $region68: #{tpu_custom_call.1} parent=55 // pred_fallthru
          _
        // Predicated region
        $region69: #{tpu_custom_call.1} parent=55 // pred_check
          %p471 = pneg %p144
        $region70: #{tpu_custom_call.1} parent=55 // pred_check_branch
          %473 = sbr.rel (%p471) target = $region72
        $region71: #{tpu_custom_call.1} parent=55 // pred_region
          %474 = dma.done [#allocation9], 512
        $region72: #{tpu_custom_call.1} parent=55 // pred_fallthru
          _
        // Predicated region
        $region73: #{tpu_custom_call.1} parent=55 // pred_check
          %p475 = pneg %p165
        $region74: #{tpu_custom_call.1} parent=55 // pred_check_branch
          %477 = sbr.rel (%p475) target = $region76
        $region75: #{tpu_custom_call.1} parent=55 // pred_region
          %478 = dma.done [#allocation9], 512
        $region76: #{tpu_custom_call.1} parent=55 // pred_fallthru
          _
        // Predicated region
        $region77: #{tpu_custom_call.1} parent=55 // pred_check
          %p479 = pneg %p186
        $region78: #{tpu_custom_call.1} parent=55 // pred_check_branch
          %481 = sbr.rel (%p479) target = $region80
        $region79: #{tpu_custom_call.1} parent=55 // pred_region
          %482 = dma.done [#allocation12], 512
        $region80: #{tpu_custom_call.1} parent=55 // pred_fallthru
          _
        // Predicated region
        $region81: #{tpu_custom_call.1} parent=55 // pred_check
          %p483 = pneg %p207
        $region82: #{tpu_custom_call.1} parent=55 // pred_check_branch
          %485 = sbr.rel (%p483) target = $region84
        $region83: #{tpu_custom_call.1} parent=55 // pred_region
          %486 = dma.done [#allocation12], 512
        $region84: #{tpu_custom_call.1} parent=55 // pred_fallthru
          _
        %s487 = sand.u32 %s58, 1
        %s488 = scalar_lea.sflag [#allocation3], %s487
        %s489 = sand.u32 %s58, 1
        %s490 = smul.addr %s489, 8
        %s491 = scalar_lea.vmem [#allocation2], %s490
        %p492 = pneg %p71
        %p493 = pneg %p68
        %s494 = sand.u32 %s36, 1
        %s495 = scalar_lea.sflag [#allocation6], %s494
        %s496 = sand.u32 %s84, 1
        %s497 = smul.addr %s496, 8
        %s498 = scalar_lea.vmem [#allocation5], %s497
        %p499 = pneg %p97
        %p500 = pneg %p94
        %s501 = sand.u32 %s36, 1
        %s502 = scalar_lea.sflag [#allocation6], %s501
        %s503 = sand.u32 %s110, 1
        %s504 = smul.addr %s503, 8
        %s505 = scalar_lea.vmem [#allocation7], %s504
        %p506 = pneg %p123
        %p507 = pneg %p120
        %p508 = pneg %p144
        %p509 = pneg %p141
        %p510 = pneg %p165
        %p511 = pneg %p162
        %p512 = pneg %p186
        %p513 = pneg %p183
        %p514 = pneg %p207
        %p515 = pneg %p204
        %p516 = pneg %p228
        %p517 = pneg %p225
        %p518 = pneg %p249
        %p519 = pneg %p246
        %p520 = pneg %p277
        %p521 = pneg %p274
        %s522 = sand.u32 %s264, 1
        %s523 = scalar_lea.sflag [#allocation4], %s522
        %s524 = sand.u32 %s264, 1
        %s525 = smul.addr %s524, 8
        %s526 = scalar_lea.vmem [#allocation14], %s525
        %p527 = pneg %p305
        %p528 = pneg %p302
        %s529 = sand.u32 %s292, 1
        %s530 = scalar_lea.sflag [#allocation16], %s529
        %s531 = sand.u32 %s292, 1
        %s532 = smul.addr %s531, 32
        %s533 = scalar_lea.vmem [#allocation15], %s532
        %v534 = vld [vmem:[%s448] sm:$0xff]
        %v535 = vld [vmem:[%s457] sm:$0xff]
        %v536 = vld [vmem:[%s466] sm:$0xff]
        %v537 = vld [vmem:[#allocation8] sm:$0xff]
        %v538 = vld [vmem:[#allocation8 + $0x8] sm:$0xff]
        %v539 = vld [vmem:[#allocation8 + $0x10] sm:$0xff]
        %v540 = vld [vmem:[#allocation8 + $0x18] sm:$0xff]
        %vm541 = vcmask 261120
        %v543 = vsel %vm541, %v534, 0
        %545 = vmatprep.subr.mxu0 0.0
        %546 = vmatpush1.msra.mxu0 %v537
        %547 = vmatprep.subr.mxu0 0.0
        %548 = vmatpush1.msra.mxu0 %v538
        %549 = vmatprep.subr.mxu0 0.0
        %550 = vmatpush1.msra.mxu0 %v539
        %551 = vmatprep.subr.mxu0 0.0
        %552 = vmatpush1.msra.mxu0 %v540
        %553 = vmatprep.subr.mxu0 0.0
        %554 = vmatpush1.msra.mxu0 0.0
        %555 = vmatprep.subr.mxu0 0.0
        %556 = vmatpush1.msra.mxu0 0.0
        %557 = vmatprep.subr.mxu0 0.0
        %558 = vmatpush1.msra.mxu0 0.0
        %559 = vmatprep.subr.mxu0 0.0
        %560 = vmatpush1.msra.mxu0 0.0
        %561 = vmatprep.subr.mxu0 0.0
        %562 = vmatpush1.msra.mxu0 0.0
        %563 = vmatprep.subr.mxu0 0.0
        %564 = vmatpush1.msra.mxu0 0.0
        %565 = vmatprep.subr.mxu0 0.0
        %566 = vmatpush1.msra.mxu0 0.0
        %567 = vmatprep.subr.mxu0 0.0
        %568 = vmatpush1.msra.mxu0 0.0
        %569 = vmatprep.subr.mxu0 0.0
        %570 = vmatpush1.msra.mxu0 0.0
        %571 = vmatprep.subr.mxu0 0.0
        %572 = vmatpush1.msra.mxu0 0.0
        %573 = vmatprep.subr.mxu0 0.0
        %574 = vmatpush1.msra.mxu0 0.0
        %575 = vmatprep.subr.mxu0 0.0
        %576 = vmatpush1.msra.mxu0 0.0
        %577 = vmatprep.subr.mxu0 0.0
        %578 = vmatpush1.msra.mxu0 0.0
        %579 = vmatprep.subr.mxu0 0.0
        %580 = vmatpush1.msra.mxu0 0.0
        %581 = vmatprep.subr.mxu0 0.0
        %582 = vmatpush1.msra.mxu0 0.0
        %583 = vmatprep.subr.mxu0 0.0
        %584 = vmatpush1.msra.mxu0 0.0
        %585 = vmatprep.subr.mxu0 0.0
        %586 = vmatpush1.msra.mxu0 0.0
        %587 = vmatprep.subr.mxu0 0.0
        %588 = vmatpush1.msra.mxu0 0.0
        %589 = vmatprep.subr.mxu0 0.0
        %590 = vmatpush1.msra.mxu0 0.0
        %591 = vmatprep.subr.mxu0 0.0
        %592 = vmatpush1.msra.mxu0 0.0
        %593 = vmatprep.subr.mxu0 0.0
        %594 = vmatpush1.msra.mxu0 0.0
        %595 = vmatprep.subr.mxu0 0.0
        %596 = vmatpush1.msra.mxu0 0.0
        %597 = vmatprep.subr.mxu0 0.0
        %598 = vmatpush1.msra.mxu0 0.0
        %599 = vmatprep.subr.mxu0 0.0
        %600 = vmatpush1.msra.mxu0 0.0
        %601 = vmatprep.subr.mxu0 0.0
        %602 = vmatpush1.msra.mxu0 0.0
        %603 = vmatprep.subr.mxu0 0.0
        %604 = vmatpush1.msra.mxu0 0.0
        %605 = vmatprep.subr.mxu0 0.0
        %606 = vmatpush1.msra.mxu0 0.0
        %607 = vmatprep.subr.mxu0 0.0
        %608 = vmatpush1.msra.mxu0 0.0
        %609 = vmatprep.mubr.f32.mxu0 0.0
        %610 = vmatmul.mubr.f32.gmra.mrb[0].mxu0 %v543
        %v611 = vpop.f32.mrb[0].mxu0
        %v612 = vadd.f32 0.0, %v611
        %v613 = vpop.f32.mrb[0].mxu0
        %614 = vdwg.mxu0
        %v615 = vld [vmem:[#allocation10] sm:$0xff]
        %v616 = vld [vmem:[#allocation10 + $0x8] sm:$0xff]
        %v617 = vld [vmem:[#allocation10 + $0x10] sm:$0xff]
        %v618 = vld [vmem:[#allocation10 + $0x18] sm:$0xff]
        %v620 = vsel %vm541, %v535, 0
        %622 = vmatprep.subr.mxu0 0.0
        %623 = vmatpush1.msra.mxu0 %v615
        %624 = vmatprep.subr.mxu0 0.0
        %625 = vmatpush1.msra.mxu0 %v616
        %626 = vmatprep.subr.mxu0 0.0
        %627 = vmatpush1.msra.mxu0 %v617
        %628 = vmatprep.subr.mxu0 0.0
        %629 = vmatpush1.msra.mxu0 %v618
        %630 = vmatprep.subr.mxu0 0.0
        %631 = vmatpush1.msra.mxu0 0.0
        %632 = vmatprep.subr.mxu0 0.0
        %633 = vmatpush1.msra.mxu0 0.0
        %634 = vmatprep.subr.mxu0 0.0
        %635 = vmatpush1.msra.mxu0 0.0
        %636 = vmatprep.subr.mxu0 0.0
        %637 = vmatpush1.msra.mxu0 0.0
        %638 = vmatprep.subr.mxu0 0.0
        %639 = vmatpush1.msra.mxu0 0.0
        %640 = vmatprep.subr.mxu0 0.0
        %641 = vmatpush1.msra.mxu0 0.0
        %642 = vmatprep.subr.mxu0 0.0
        %643 = vmatpush1.msra.mxu0 0.0
        %644 = vmatprep.subr.mxu0 0.0
        %645 = vmatpush1.msra.mxu0 0.0
        %646 = vmatprep.subr.mxu0 0.0
        %647 = vmatpush1.msra.mxu0 0.0
        %648 = vmatprep.subr.mxu0 0.0
        %649 = vmatpush1.msra.mxu0 0.0
        %650 = vmatprep.subr.mxu0 0.0
        %651 = vmatpush1.msra.mxu0 0.0
        %652 = vmatprep.subr.mxu0 0.0
        %653 = vmatpush1.msra.mxu0 0.0
        %654 = vmatprep.subr.mxu0 0.0
        %655 = vmatpush1.msra.mxu0 0.0
        %656 = vmatprep.subr.mxu0 0.0
        %657 = vmatpush1.msra.mxu0 0.0
        %658 = vmatprep.subr.mxu0 0.0
        %659 = vmatpush1.msra.mxu0 0.0
        %660 = vmatprep.subr.mxu0 0.0
        %661 = vmatpush1.msra.mxu0 0.0
        %662 = vmatprep.subr.mxu0 0.0
        %663 = vmatpush1.msra.mxu0 0.0
        %664 = vmatprep.subr.mxu0 0.0
        %665 = vmatpush1.msra.mxu0 0.0
        %666 = vmatprep.subr.mxu0 0.0
        %667 = vmatpush1.msra.mxu0 0.0
        %668 = vmatprep.subr.mxu0 0.0
        %669 = vmatpush1.msra.mxu0 0.0
        %670 = vmatprep.subr.mxu0 0.0
        %671 = vmatpush1.msra.mxu0 0.0
        %672 = vmatprep.subr.mxu0 0.0
        %673 = vmatpush1.msra.mxu0 0.0
        %674 = vmatprep.subr.mxu0 0.0
        %675 = vmatpush1.msra.mxu0 0.0
        %676 = vmatprep.subr.mxu0 0.0
        %677 = vmatpush1.msra.mxu0 0.0
        %678 = vmatprep.subr.mxu0 0.0
        %679 = vmatpush1.msra.mxu0 0.0
        %680 = vmatprep.subr.mxu0 0.0
        %681 = vmatpush1.msra.mxu0 0.0
        %682 = vmatprep.subr.mxu0 0.0
        %683 = vmatpush1.msra.mxu0 0.0
        %684 = vmatprep.subr.mxu0 0.0
        %685 = vmatpush1.msra.mxu0 0.0
        %686 = vmatprep.mubr.f32.mxu0 0.0
        %687 = vmatmul.mubr.f32.gmra.mrb[0].mxu0 %v620
        %v688 = vpop.f32.mrb[0].mxu0
        %v689 = vadd.f32 0.0, %v688
        %v690 = vpop.f32.mrb[0].mxu0
        %691 = vdwg.mxu0
        %v692 = vld [vmem:[#allocation11] sm:$0xff]
        %v693 = vld [vmem:[#allocation11 + $0x8] sm:$0xff]
        %v694 = vld [vmem:[#allocation11 + $0x10] sm:$0xff]
        %v695 = vld [vmem:[#allocation11 + $0x18] sm:$0xff]
        %v697 = vsel %vm541, %v536, 0
        %699 = vmatprep.subr.mxu0 0.0
        %700 = vmatpush1.msra.mxu0 %v692
        %701 = vmatprep.subr.mxu0 0.0
        %702 = vmatpush1.msra.mxu0 %v693
        %703 = vmatprep.subr.mxu0 0.0
        %704 = vmatpush1.msra.mxu0 %v694
        %705 = vmatprep.subr.mxu0 0.0
        %706 = vmatpush1.msra.mxu0 %v695
        %707 = vmatprep.subr.mxu0 0.0
        %708 = vmatpush1.msra.mxu0 0.0
        %709 = vmatprep.subr.mxu0 0.0
        %710 = vmatpush1.msra.mxu0 0.0
        %711 = vmatprep.subr.mxu0 0.0
        %712 = vmatpush1.msra.mxu0 0.0
        %713 = vmatprep.subr.mxu0 0.0
        %714 = vmatpush1.msra.mxu0 0.0
        %715 = vmatprep.subr.mxu0 0.0
        %716 = vmatpush1.msra.mxu0 0.0
        %717 = vmatprep.subr.mxu0 0.0
        %718 = vmatpush1.msra.mxu0 0.0
        %719 = vmatprep.subr.mxu0 0.0
        %720 = vmatpush1.msra.mxu0 0.0
        %721 = vmatprep.subr.mxu0 0.0
        %722 = vmatpush1.msra.mxu0 0.0
        %723 = vmatprep.subr.mxu0 0.0
        %724 = vmatpush1.msra.mxu0 0.0
        %725 = vmatprep.subr.mxu0 0.0
        %726 = vmatpush1.msra.mxu0 0.0
        %727 = vmatprep.subr.mxu0 0.0
        %728 = vmatpush1.msra.mxu0 0.0
        %729 = vmatprep.subr.mxu0 0.0
        %730 = vmatpush1.msra.mxu0 0.0
        %731 = vmatprep.subr.mxu0 0.0
        %732 = vmatpush1.msra.mxu0 0.0
        %733 = vmatprep.subr.mxu0 0.0
        %734 = vmatpush1.msra.mxu0 0.0
        %735 = vmatprep.subr.mxu0 0.0
        %736 = vmatpush1.msra.mxu0 0.0
        %737 = vmatprep.subr.mxu0 0.0
        %738 = vmatpush1.msra.mxu0 0.0
        %739 = vmatprep.subr.mxu0 0.0
        %740 = vmatpush1.msra.mxu0 0.0
        %741 = vmatprep.subr.mxu0 0.0
        %742 = vmatpush1.msra.mxu0 0.0
        %743 = vmatprep.subr.mxu0 0.0
        %744 = vmatpush1.msra.mxu0 0.0
        %745 = vmatprep.subr.mxu0 0.0
        %746 = vmatpush1.msra.mxu0 0.0
        %747 = vmatprep.subr.mxu0 0.0
        %748 = vmatpush1.msra.mxu0 0.0
        %749 = vmatprep.subr.mxu0 0.0
        %750 = vmatpush1.msra.mxu0 0.0
        %751 = vmatprep.subr.mxu0 0.0
        %752 = vmatpush1.msra.mxu0 0.0
        %753 = vmatprep.subr.mxu0 0.0
        %754 = vmatpush1.msra.mxu0 0.0
        %755 = vmatprep.subr.mxu0 0.0
        %756 = vmatpush1.msra.mxu0 0.0
        %757 = vmatprep.subr.mxu0 0.0
        %758 = vmatpush1.msra.mxu0 0.0
        %759 = vmatprep.subr.mxu0 0.0
        %760 = vmatpush1.msra.mxu0 0.0
        %761 = vmatprep.subr.mxu0 0.0
        %762 = vmatpush1.msra.mxu0 0.0
        %763 = vmatprep.mubr.f32.mxu0 0.0
        %764 = vmatmul.mubr.f32.gmra.mrb[0].mxu0 %v697
        %v765 = vpop.f32.mrb[0].mxu0
        %v766 = vadd.f32 0.0, %v765
        %v767 = vpop.f32.mrb[0].mxu0
        %768 = vdwg.mxu0
        %770 = vrot.lane.b32.xlu0 %v612, 120
        %v771 = vpop.permute.xlu0 %770
        %773 = vrot.lane.b32.xlu0 %v612, 112
        %v774 = vpop.permute.xlu0 %773
        %776 = vrot.lane.b32.xlu0 %v612, 104
        %v777 = vpop.permute.xlu0 %776
        %v779 = vcombine.low %v612, %v774
        %v780 = vcombine.high %v612, %v774
        %v782 = vunpack.c.l.s4 1983009808
        %v783 = vunpack.c.0.s8 %v782
        %v784 = vlaneseq
        %v785 = vshrl.u32 %v784, 7
        %v786 = vsub.s32 %v783, %v785
        %v787 = vrot.slane %v779, %v786
        %v789 = vunpack.c.l.s4 1983009808
        %v790 = vunpack.c.0.s8 %v789
        %v791 = vlaneseq
        %v792 = vshrl.u32 %v791, 7
        %v793 = vsub.s32 %v790, %v792
        %v794 = vrot.slane %v780, %v793
        %v795 = vcombine.low %v771, %v777
        %v796 = vcombine.high %v771, %v777
        %v798 = vunpack.c.l.s4 1983009808
        %v799 = vunpack.c.0.s8 %v798
        %v800 = vlaneseq
        %v801 = vshrl.u32 %v800, 7
        %v802 = vsub.s32 %v799, %v801
        %v803 = vrot.slane %v795, %v802
        %v805 = vunpack.c.l.s4 1983009808
        %v806 = vunpack.c.0.s8 %v805
        %v807 = vlaneseq
        %v808 = vshrl.u32 %v807, 7
        %v809 = vsub.s32 %v806, %v808
        %v810 = vrot.slane %v796, %v809
        %v811 = vcombine.low %v787, %v803
        %v812 = vcombine.high %v787, %v803
        %v814 = vunpack.c.l.s4 1934713408
        %v815 = vunpack.c.0.s8 %v814
        %v816 = vlaneseq
        %v817 = vshrl.u32 %v816, 7
        %v818 = vsub.s32 %v815, %v817
        %v819 = vrot.slane %v811, %v818
        %v821 = vunpack.c.l.s4 1934713408
        %v822 = vunpack.c.0.s8 %v821
        %v823 = vlaneseq
        %v824 = vshrl.u32 %v823, 7
        %v825 = vsub.s32 %v822, %v824
        %v826 = vrot.slane %v812, %v825
        %v827 = vcombine.low %v794, %v810
        %v828 = vcombine.high %v794, %v810
        %v830 = vunpack.c.l.s4 1934713408
        %v831 = vunpack.c.0.s8 %v830
        %v832 = vlaneseq
        %v833 = vshrl.u32 %v832, 7
        %v834 = vsub.s32 %v831, %v833
        %v835 = vrot.slane %v827, %v834
        %v837 = vunpack.c.l.s4 1934713408
        %v838 = vunpack.c.0.s8 %v837
        %v839 = vlaneseq
        %v840 = vshrl.u32 %v839, 7
        %v841 = vsub.s32 %v838, %v840
        %v842 = vrot.slane %v828, %v841
        %v843 = vcombine.high %v819, 0.0
        %v844 = vcombine.high %v826, 0.0
        %v845 = vcombine.high %v835, 0.0
        %v846 = vcombine.high %v842, 0.0
        %v847 = vcombine.low %v819, %v826
        %v849 = vunpack.c.l.s4 1983009808
        %v850 = vunpack.c.0.s8 %v849
        %v851 = vlaneseq
        %v852 = vshrl.u32 %v851, 7
        %v853 = vsub.s32 %v850, %v852
        %v854 = vrot.slane %v847, %v853
        %v855 = vcombine.low %v843, %v844
        %v857 = vunpack.c.l.s4 1983009808
        %v858 = vunpack.c.0.s8 %v857
        %v859 = vlaneseq
        %v860 = vshrl.u32 %v859, 7
        %v861 = vsub.s32 %v858, %v860
        %v862 = vrot.slane %v855, %v861
        %v863 = vcombine.low %v835, %v842
        %v865 = vunpack.c.l.s4 1983009808
        %v866 = vunpack.c.0.s8 %v865
        %v867 = vlaneseq
        %v868 = vshrl.u32 %v867, 7
        %v869 = vsub.s32 %v866, %v868
        %v870 = vrot.slane %v863, %v869
        %v871 = vcombine.low %v845, %v846
        %v873 = vunpack.c.l.s4 1983009808
        %v874 = vunpack.c.0.s8 %v873
        %v875 = vlaneseq
        %v876 = vshrl.u32 %v875, 7
        %v877 = vsub.s32 %v874, %v876
        %v878 = vrot.slane %v871, %v877
        %v879 = vcombine.low %v854, %v862
        %v880 = vcombine.high %v854, %v862
        %v882 = vunpack.c.l.s4 1934713408
        %v883 = vunpack.c.0.s8 %v882
        %v884 = vlaneseq
        %v885 = vshrl.u32 %v884, 7
        %v886 = vsub.s32 %v883, %v885
        %v887 = vrot.slane %v879, %v886
        %v889 = vunpack.c.l.s4 1934713408
        %v890 = vunpack.c.0.s8 %v889
        %v891 = vlaneseq
        %v892 = vshrl.u32 %v891, 7
        %v893 = vsub.s32 %v890, %v892
        %v894 = vrot.slane %v880, %v893
        %v895 = vcombine.low %v870, %v878
        %v896 = vcombine.high %v870, %v878
        %v898 = vunpack.c.l.s4 1934713408
        %v899 = vunpack.c.0.s8 %v898
        %v900 = vlaneseq
        %v901 = vshrl.u32 %v900, 7
        %v902 = vsub.s32 %v899, %v901
        %v903 = vrot.slane %v895, %v902
        %v905 = vunpack.c.l.s4 1934713408
        %v906 = vunpack.c.0.s8 %v905
        %v907 = vlaneseq
        %v908 = vshrl.u32 %v907, 7
        %v909 = vsub.s32 %v906, %v908
        %v910 = vrot.slane %v896, %v909
        %v911 = vcombine.low %v887, %v903
        %v912 = vcombine.high %v887, %v903
        %v913 = vcombine.low %v894, %v910
        %v914 = vcombine.high %v894, %v910
        %916 = vrot.lane.b32.xlu0 %v689, 120
        %v917 = vpop.permute.xlu0 %916
        %919 = vrot.lane.b32.xlu0 %v689, 112
        %v920 = vpop.permute.xlu0 %919
        %922 = vrot.lane.b32.xlu0 %v689, 104
        %v923 = vpop.permute.xlu0 %922
        %v925 = vcombine.low %v689, %v920
        %v926 = vcombine.high %v689, %v920
        %v928 = vunpack.c.l.s4 1983009808
        %v929 = vunpack.c.0.s8 %v928
        %v930 = vlaneseq
        %v931 = vshrl.u32 %v930, 7
        %v932 = vsub.s32 %v929, %v931
        %v933 = vrot.slane %v925, %v932
        %v935 = vunpack.c.l.s4 1983009808
        %v936 = vunpack.c.0.s8 %v935
        %v937 = vlaneseq
        %v938 = vshrl.u32 %v937, 7
        %v939 = vsub.s32 %v936, %v938
        %v940 = vrot.slane %v926, %v939
        %v941 = vcombine.low %v917, %v923
        %v942 = vcombine.high %v917, %v923
        %v944 = vunpack.c.l.s4 1983009808
        %v945 = vunpack.c.0.s8 %v944
        %v946 = vlaneseq
        %v947 = vshrl.u32 %v946, 7
        %v948 = vsub.s32 %v945, %v947
        %v949 = vrot.slane %v941, %v948
        %v951 = vunpack.c.l.s4 1983009808
        %v952 = vunpack.c.0.s8 %v951
        %v953 = vlaneseq
        %v954 = vshrl.u32 %v953, 7
        %v955 = vsub.s32 %v952, %v954
        %v956 = vrot.slane %v942, %v955
        %v957 = vcombine.low %v933, %v949
        %v958 = vcombine.high %v933, %v949
        %v960 = vunpack.c.l.s4 1934713408
        %v961 = vunpack.c.0.s8 %v960
        %v962 = vlaneseq
        %v963 = vshrl.u32 %v962, 7
        %v964 = vsub.s32 %v961, %v963
        %v965 = vrot.slane %v957, %v964
        %v967 = vunpack.c.l.s4 1934713408
        %v968 = vunpack.c.0.s8 %v967
        %v969 = vlaneseq
        %v970 = vshrl.u32 %v969, 7
        %v971 = vsub.s32 %v968, %v970
        %v972 = vrot.slane %v958, %v971
        %v973 = vcombine.low %v940, %v956
        %v974 = vcombine.high %v940, %v956
        %v976 = vunpack.c.l.s4 1934713408
        %v977 = vunpack.c.0.s8 %v976
        %v978 = vlaneseq
        %v979 = vshrl.u32 %v978, 7
        %v980 = vsub.s32 %v977, %v979
        %v981 = vrot.slane %v973, %v980
        %v983 = vunpack.c.l.s4 1934713408
        %v984 = vunpack.c.0.s8 %v983
        %v985 = vlaneseq
        %v986 = vshrl.u32 %v985, 7
        %v987 = vsub.s32 %v984, %v986
        %v988 = vrot.slane %v974, %v987
        %v989 = vcombine.high %v965, 0.0
        %v990 = vcombine.high %v972, 0.0
        %v991 = vcombine.high %v981, 0.0
        %v992 = vcombine.high %v988, 0.0
        %v993 = vcombine.low %v965, %v972
        %v995 = vunpack.c.l.s4 1983009808
        %v996 = vunpack.c.0.s8 %v995
        %v997 = vlaneseq
        %v998 = vshrl.u32 %v997, 7
        %v999 = vsub.s32 %v996, %v998
        %v1000 = vrot.slane %v993, %v999
        %v1001 = vcombine.low %v989, %v990
        %v1003 = vunpack.c.l.s4 1983009808
        %v1004 = vunpack.c.0.s8 %v1003
        %v1005 = vlaneseq
        %v1006 = vshrl.u32 %v1005, 7
        %v1007 = vsub.s32 %v1004, %v1006
        %v1008 = vrot.slane %v1001, %v1007
        %v1009 = vcombine.low %v981, %v988
        %v1011 = vunpack.c.l.s4 1983009808
        %v1012 = vunpack.c.0.s8 %v1011
        %v1013 = vlaneseq
        %v1014 = vshrl.u32 %v1013, 7
        %v1015 = vsub.s32 %v1012, %v1014
        %v1016 = vrot.slane %v1009, %v1015
        %v1017 = vcombine.low %v991, %v992
        %v1019 = vunpack.c.l.s4 1983009808
        %v1020 = vunpack.c.0.s8 %v1019
        %v1021 = vlaneseq
        %v1022 = vshrl.u32 %v1021, 7
        %v1023 = vsub.s32 %v1020, %v1022
        %v1024 = vrot.slane %v1017, %v1023
        %v1025 = vcombine.low %v1000, %v1008
        %v1026 = vcombine.high %v1000, %v1008
        %v1028 = vunpack.c.l.s4 1934713408
        %v1029 = vunpack.c.0.s8 %v1028
        %v1030 = vlaneseq
        %v1031 = vshrl.u32 %v1030, 7
        %v1032 = vsub.s32 %v1029, %v1031
        %v1033 = vrot.slane %v1025, %v1032
        %v1035 = vunpack.c.l.s4 1934713408
        %v1036 = vunpack.c.0.s8 %v1035
        %v1037 = vlaneseq
        %v1038 = vshrl.u32 %v1037, 7
        %v1039 = vsub.s32 %v1036, %v1038
        %v1040 = vrot.slane %v1026, %v1039
        %v1041 = vcombine.low %v1016, %v1024
        %v1042 = vcombine.high %v1016, %v1024
        %v1044 = vunpack.c.l.s4 1934713408
        %v1045 = vunpack.c.0.s8 %v1044
        %v1046 = vlaneseq
        %v1047 = vshrl.u32 %v1046, 7
        %v1048 = vsub.s32 %v1045, %v1047
        %v1049 = vrot.slane %v1041, %v1048
        %v1051 = vunpack.c.l.s4 1934713408
        %v1052 = vunpack.c.0.s8 %v1051
        %v1053 = vlaneseq
        %v1054 = vshrl.u32 %v1053, 7
        %v1055 = vsub.s32 %v1052, %v1054
        %v1056 = vrot.slane %v1042, %v1055
        %v1057 = vcombine.low %v1033, %v1049
        %v1058 = vcombine.high %v1033, %v1049
        %v1059 = vcombine.low %v1040, %v1056
        %v1060 = vcombine.high %v1040, %v1056
        %1062 = vrot.lane.b32.xlu0 %v766, 120
        %v1063 = vpop.permute.xlu0 %1062
        %1065 = vrot.lane.b32.xlu0 %v766, 112
        %v1066 = vpop.permute.xlu0 %1065
        %1068 = vrot.lane.b32.xlu0 %v766, 104
        %v1069 = vpop.permute.xlu0 %1068
        %v1071 = vcombine.low %v766, %v1066
        %v1072 = vcombine.high %v766, %v1066
        %v1074 = vunpack.c.l.s4 1983009808
        %v1075 = vunpack.c.0.s8 %v1074
        %v1076 = vlaneseq
        %v1077 = vshrl.u32 %v1076, 7
        %v1078 = vsub.s32 %v1075, %v1077
        %v1079 = vrot.slane %v1071, %v1078
        %v1081 = vunpack.c.l.s4 1983009808
        %v1082 = vunpack.c.0.s8 %v1081
        %v1083 = vlaneseq
        %v1084 = vshrl.u32 %v1083, 7
        %v1085 = vsub.s32 %v1082, %v1084
        %v1086 = vrot.slane %v1072, %v1085
        %v1087 = vcombine.low %v1063, %v1069
        %v1088 = vcombine.high %v1063, %v1069
        %v1090 = vunpack.c.l.s4 1983009808
        %v1091 = vunpack.c.0.s8 %v1090
        %v1092 = vlaneseq
        %v1093 = vshrl.u32 %v1092, 7
        %v1094 = vsub.s32 %v1091, %v1093
        %v1095 = vrot.slane %v1087, %v1094
        %v1097 = vunpack.c.l.s4 1983009808
        %v1098 = vunpack.c.0.s8 %v1097
        %v1099 = vlaneseq
        %v1100 = vshrl.u32 %v1099, 7
        %v1101 = vsub.s32 %v1098, %v1100
        %v1102 = vrot.slane %v1088, %v1101
        %v1103 = vcombine.low %v1079, %v1095
        %v1104 = vcombine.high %v1079, %v1095
        %v1106 = vunpack.c.l.s4 1934713408
        %v1107 = vunpack.c.0.s8 %v1106
        %v1108 = vlaneseq
        %v1109 = vshrl.u32 %v1108, 7
        %v1110 = vsub.s32 %v1107, %v1109
        %v1111 = vrot.slane %v1103, %v1110
        %v1113 = vunpack.c.l.s4 1934713408
        %v1114 = vunpack.c.0.s8 %v1113
        %v1115 = vlaneseq
        %v1116 = vshrl.u32 %v1115, 7
        %v1117 = vsub.s32 %v1114, %v1116
        %v1118 = vrot.slane %v1104, %v1117
        %v1119 = vcombine.low %v1086, %v1102
        %v1120 = vcombine.high %v1086, %v1102
        %v1122 = vunpack.c.l.s4 1934713408
        %v1123 = vunpack.c.0.s8 %v1122
        %v1124 = vlaneseq
        %v1125 = vshrl.u32 %v1124, 7
        %v1126 = vsub.s32 %v1123, %v1125
        %v1127 = vrot.slane %v1119, %v1126
        %v1129 = vunpack.c.l.s4 1934713408
        %v1130 = vunpack.c.0.s8 %v1129
        %v1131 = vlaneseq
        %v1132 = vshrl.u32 %v1131, 7
        %v1133 = vsub.s32 %v1130, %v1132
        %v1134 = vrot.slane %v1120, %v1133
        %v1135 = vcombine.high %v1111, 0.0
        %v1136 = vcombine.high %v1118, 0.0
        %v1137 = vcombine.high %v1127, 0.0
        %v1138 = vcombine.high %v1134, 0.0
        %v1139 = vcombine.low %v1111, %v1118
        %v1141 = vunpack.c.l.s4 1983009808
        %v1142 = vunpack.c.0.s8 %v1141
        %v1143 = vlaneseq
        %v1144 = vshrl.u32 %v1143, 7
        %v1145 = vsub.s32 %v1142, %v1144
        %v1146 = vrot.slane %v1139, %v1145
        %v1147 = vcombine.low %v1135, %v1136
        %v1149 = vunpack.c.l.s4 1983009808
        %v1150 = vunpack.c.0.s8 %v1149
        %v1151 = vlaneseq
        %v1152 = vshrl.u32 %v1151, 7
        %v1153 = vsub.s32 %v1150, %v1152
        %v1154 = vrot.slane %v1147, %v1153
        %v1155 = vcombine.low %v1127, %v1134
        %v1157 = vunpack.c.l.s4 1983009808
        %v1158 = vunpack.c.0.s8 %v1157
        %v1159 = vlaneseq
        %v1160 = vshrl.u32 %v1159, 7
        %v1161 = vsub.s32 %v1158, %v1160
        %v1162 = vrot.slane %v1155, %v1161
        %v1163 = vcombine.low %v1137, %v1138
        %v1165 = vunpack.c.l.s4 1983009808
        %v1166 = vunpack.c.0.s8 %v1165
        %v1167 = vlaneseq
        %v1168 = vshrl.u32 %v1167, 7
        %v1169 = vsub.s32 %v1166, %v1168
        %v1170 = vrot.slane %v1163, %v1169
        %v1171 = vcombine.low %v1146, %v1154
        %v1172 = vcombine.high %v1146, %v1154
        %v1174 = vunpack.c.l.s4 1934713408
        %v1175 = vunpack.c.0.s8 %v1174
        %v1176 = vlaneseq
        %v1177 = vshrl.u32 %v1176, 7
        %v1178 = vsub.s32 %v1175, %v1177
        %v1179 = vrot.slane %v1171, %v1178
        %v1181 = vunpack.c.l.s4 1934713408
        %v1182 = vunpack.c.0.s8 %v1181
        %v1183 = vlaneseq
        %v1184 = vshrl.u32 %v1183, 7
        %v1185 = vsub.s32 %v1182, %v1184
        %v1186 = vrot.slane %v1172, %v1185
        %v1187 = vcombine.low %v1162, %v1170
        %v1188 = vcombine.high %v1162, %v1170
        %v1190 = vunpack.c.l.s4 1934713408
        %v1191 = vunpack.c.0.s8 %v1190
        %v1192 = vlaneseq
        %v1193 = vshrl.u32 %v1192, 7
        %v1194 = vsub.s32 %v1191, %v1193
        %v1195 = vrot.slane %v1187, %v1194
        %v1197 = vunpack.c.l.s4 1934713408
        %v1198 = vunpack.c.0.s8 %v1197
        %v1199 = vlaneseq
        %v1200 = vshrl.u32 %v1199, 7
        %v1201 = vsub.s32 %v1198, %v1200
        %v1202 = vrot.slane %v1188, %v1201
        %v1203 = vcombine.low %v1179, %v1195
        %v1204 = vcombine.high %v1179, %v1195
        %v1205 = vcombine.low %v1186, %v1202
        %v1206 = vcombine.high %v1186, %v1202
        %vm1207 = vcmask 64512
        %v1209 = vsel %vm1207, %v911, 0
        %v1212 = vsel %vm1207, %v1057, 0
        %1214 = vmatprep.subr.mxu0 0.0
        %1215 = vmatpush1.xpose.msra.mxu0 %v1212
        %1216 = vmatprep.subr.mxu0 0.0
        %1217 = vmatpush1.xpose.msra.mxu0 0.0
        %1218 = vmatprep.subr.mxu0 0.0
        %1219 = vmatpush1.xpose.msra.mxu0 0.0
        %1220 = vmatprep.subr.mxu0 0.0
        %1221 = vmatpush1.xpose.msra.mxu0 0.0
        %1222 = vmatprep.subr.mxu0 0.0
        %1223 = vmatpush1.xpose.msra.mxu0 0.0
        %1224 = vmatprep.subr.mxu0 0.0
        %1225 = vmatpush1.xpose.msra.mxu0 0.0
        %1226 = vmatprep.subr.mxu0 0.0
        %1227 = vmatpush1.xpose.msra.mxu0 0.0
        %1228 = vmatprep.subr.mxu0 0.0
        %1229 = vmatpush1.xpose.msra.mxu0 0.0
        %1230 = vmatprep.subr.mxu0 0.0
        %1231 = vmatpush1.xpose.msra.mxu0 0.0
        %1232 = vmatprep.subr.mxu0 0.0
        %1233 = vmatpush1.xpose.msra.mxu0 0.0
        %1234 = vmatprep.subr.mxu0 0.0
        %1235 = vmatpush1.xpose.msra.mxu0 0.0
        %1236 = vmatprep.subr.mxu0 0.0
        %1237 = vmatpush1.xpose.msra.mxu0 0.0
        %1238 = vmatprep.subr.mxu0 0.0
        %1239 = vmatpush1.xpose.msra.mxu0 0.0
        %1240 = vmatprep.subr.mxu0 0.0
        %1241 = vmatpush1.xpose.msra.mxu0 0.0
        %1242 = vmatprep.subr.mxu0 0.0
        %1243 = vmatpush1.xpose.msra.mxu0 0.0
        %1244 = vmatprep.subr.mxu0 0.0
        %1245 = vmatpush1.xpose.msra.mxu0 0.0
        %1246 = vmatprep.subr.mxu0 0.0
        %1247 = vmatpush1.xpose.msra.mxu0 0.0
        %1248 = vmatprep.subr.mxu0 0.0
        %1249 = vmatpush1.xpose.msra.mxu0 0.0
        %1250 = vmatprep.subr.mxu0 0.0
        %1251 = vmatpush1.xpose.msra.mxu0 0.0
        %1252 = vmatprep.subr.mxu0 0.0
        %1253 = vmatpush1.xpose.msra.mxu0 0.0
        %1254 = vmatprep.subr.mxu0 0.0
        %1255 = vmatpush1.xpose.msra.mxu0 0.0
        %1256 = vmatprep.subr.mxu0 0.0
        %1257 = vmatpush1.xpose.msra.mxu0 0.0
        %1258 = vmatprep.subr.mxu0 0.0
        %1259 = vmatpush1.xpose.msra.mxu0 0.0
        %1260 = vmatprep.subr.mxu0 0.0
        %1261 = vmatpush1.xpose.msra.mxu0 0.0
        %1262 = vmatprep.subr.mxu0 0.0
        %1263 = vmatpush1.xpose.msra.mxu0 0.0
        %1264 = vmatprep.subr.mxu0 0.0
        %1265 = vmatpush1.xpose.msra.mxu0 0.0
        %1266 = vmatprep.subr.mxu0 0.0
        %1267 = vmatpush1.xpose.msra.mxu0 0.0
        %1268 = vmatprep.subr.mxu0 0.0
        %1269 = vmatpush1.xpose.msra.mxu0 0.0
        %1270 = vmatprep.subr.mxu0 0.0
        %1271 = vmatpush1.xpose.msra.mxu0 0.0
        %1272 = vmatprep.subr.mxu0 0.0
        %1273 = vmatpush1.xpose.msra.mxu0 0.0
        %1274 = vmatprep.subr.mxu0 0.0
        %1275 = vmatpush1.xpose.msra.mxu0 0.0
        %1276 = vmatprep.subr.mxu0 0.0
        %1277 = vmatpush1.xpose.msra.mxu0 0.0
        %1278 = vmatprep.mubr.f32.mxu0 0.0
        %1279 = vmatmul.mubr.f32.gmra.mrb[0].mxu0 %v1209
        %v1280 = vpop.f32.mrb[0].mxu0
        %v1281 = vadd.f32 0.0, %v1280
        %v1282 = vpop.f32.mrb[0].mxu0
        %1283 = vdwg.mxu0
        %v1285 = vsel %vm1207, %v912, 0
        %v1288 = vsel %vm1207, %v1058, 0
        %1290 = vmatprep.subr.mxu0 0.0
        %1291 = vmatpush1.xpose.msra.mxu0 %v1288
        %1292 = vmatprep.subr.mxu0 0.0
        %1293 = vmatpush1.xpose.msra.mxu0 0.0
        %1294 = vmatprep.subr.mxu0 0.0
        %1295 = vmatpush1.xpose.msra.mxu0 0.0
        %1296 = vmatprep.subr.mxu0 0.0
        %1297 = vmatpush1.xpose.msra.mxu0 0.0
        %1298 = vmatprep.subr.mxu0 0.0
        %1299 = vmatpush1.xpose.msra.mxu0 0.0
        %1300 = vmatprep.subr.mxu0 0.0
        %1301 = vmatpush1.xpose.msra.mxu0 0.0
        %1302 = vmatprep.subr.mxu0 0.0
        %1303 = vmatpush1.xpose.msra.mxu0 0.0
        %1304 = vmatprep.subr.mxu0 0.0
        %1305 = vmatpush1.xpose.msra.mxu0 0.0
        %1306 = vmatprep.subr.mxu0 0.0
        %1307 = vmatpush1.xpose.msra.mxu0 0.0
        %1308 = vmatprep.subr.mxu0 0.0
        %1309 = vmatpush1.xpose.msra.mxu0 0.0
        %1310 = vmatprep.subr.mxu0 0.0
        %1311 = vmatpush1.xpose.msra.mxu0 0.0
        %1312 = vmatprep.subr.mxu0 0.0
        %1313 = vmatpush1.xpose.msra.mxu0 0.0
        %1314 = vmatprep.subr.mxu0 0.0
        %1315 = vmatpush1.xpose.msra.mxu0 0.0
        %1316 = vmatprep.subr.mxu0 0.0
        %1317 = vmatpush1.xpose.msra.mxu0 0.0
        %1318 = vmatprep.subr.mxu0 0.0
        %1319 = vmatpush1.xpose.msra.mxu0 0.0
        %1320 = vmatprep.subr.mxu0 0.0
        %1321 = vmatpush1.xpose.msra.mxu0 0.0
        %1322 = vmatprep.subr.mxu0 0.0
        %1323 = vmatpush1.xpose.msra.mxu0 0.0
        %1324 = vmatprep.subr.mxu0 0.0
        %1325 = vmatpush1.xpose.msra.mxu0 0.0
        %1326 = vmatprep.subr.mxu0 0.0
        %1327 = vmatpush1.xpose.msra.mxu0 0.0
        %1328 = vmatprep.subr.mxu0 0.0
        %1329 = vmatpush1.xpose.msra.mxu0 0.0
        %1330 = vmatprep.subr.mxu0 0.0
        %1331 = vmatpush1.xpose.msra.mxu0 0.0
        %1332 = vmatprep.subr.mxu0 0.0
        %1333 = vmatpush1.xpose.msra.mxu0 0.0
        %1334 = vmatprep.subr.mxu0 0.0
        %1335 = vmatpush1.xpose.msra.mxu0 0.0
        %1336 = vmatprep.subr.mxu0 0.0
        %1337 = vmatpush1.xpose.msra.mxu0 0.0
        %1338 = vmatprep.subr.mxu0 0.0
        %1339 = vmatpush1.xpose.msra.mxu0 0.0
        %1340 = vmatprep.subr.mxu0 0.0
        %1341 = vmatpush1.xpose.msra.mxu0 0.0
        %1342 = vmatprep.subr.mxu0 0.0
        %1343 = vmatpush1.xpose.msra.mxu0 0.0
        %1344 = vmatprep.subr.mxu0 0.0
        %1345 = vmatpush1.xpose.msra.mxu0 0.0
        %1346 = vmatprep.subr.mxu0 0.0
        %1347 = vmatpush1.xpose.msra.mxu0 0.0
        %1348 = vmatprep.subr.mxu0 0.0
        %1349 = vmatpush1.xpose.msra.mxu0 0.0
        %1350 = vmatprep.subr.mxu0 0.0
        %1351 = vmatpush1.xpose.msra.mxu0 0.0
        %1352 = vmatprep.subr.mxu0 0.0
        %1353 = vmatpush1.xpose.msra.mxu0 0.0
        %1354 = vmatprep.mubr.f32.mxu0 0.0
        %1355 = vmatmul.mubr.f32.gmra.mrb[0].mxu0 %v1285
        %v1356 = vpop.f32.mrb[0].mxu0
        %v1357 = vadd.f32 0.0, %v1356
        %v1358 = vpop.f32.mrb[0].mxu0
        %1359 = vdwg.mxu0
        %v1361 = vsel %vm1207, %v913, 0
        %v1364 = vsel %vm1207, %v1059, 0
        %1366 = vmatprep.subr.mxu0 0.0
        %1367 = vmatpush1.xpose.msra.mxu0 %v1364
        %1368 = vmatprep.subr.mxu0 0.0
        %1369 = vmatpush1.xpose.msra.mxu0 0.0
        %1370 = vmatprep.subr.mxu0 0.0
        %1371 = vmatpush1.xpose.msra.mxu0 0.0
        %1372 = vmatprep.subr.mxu0 0.0
        %1373 = vmatpush1.xpose.msra.mxu0 0.0
        %1374 = vmatprep.subr.mxu0 0.0
        %1375 = vmatpush1.xpose.msra.mxu0 0.0
        %1376 = vmatprep.subr.mxu0 0.0
        %1377 = vmatpush1.xpose.msra.mxu0 0.0
        %1378 = vmatprep.subr.mxu0 0.0
        %1379 = vmatpush1.xpose.msra.mxu0 0.0
        %1380 = vmatprep.subr.mxu0 0.0
        %1381 = vmatpush1.xpose.msra.mxu0 0.0
        %1382 = vmatprep.subr.mxu0 0.0
        %1383 = vmatpush1.xpose.msra.mxu0 0.0
        %1384 = vmatprep.subr.mxu0 0.0
        %1385 = vmatpush1.xpose.msra.mxu0 0.0
        %1386 = vmatprep.subr.mxu0 0.0
        %1387 = vmatpush1.xpose.msra.mxu0 0.0
        %1388 = vmatprep.subr.mxu0 0.0
        %1389 = vmatpush1.xpose.msra.mxu0 0.0
        %1390 = vmatprep.subr.mxu0 0.0
        %1391 = vmatpush1.xpose.msra.mxu0 0.0
        %1392 = vmatprep.subr.mxu0 0.0
        %1393 = vmatpush1.xpose.msra.mxu0 0.0
        %1394 = vmatprep.subr.mxu0 0.0
        %1395 = vmatpush1.xpose.msra.mxu0 0.0
        %1396 = vmatprep.subr.mxu0 0.0
        %1397 = vmatpush1.xpose.msra.mxu0 0.0
        %1398 = vmatprep.subr.mxu0 0.0
        %1399 = vmatpush1.xpose.msra.mxu0 0.0
        %1400 = vmatprep.subr.mxu0 0.0
        %1401 = vmatpush1.xpose.msra.mxu0 0.0
        %1402 = vmatprep.subr.mxu0 0.0
        %1403 = vmatpush1.xpose.msra.mxu0 0.0
        %1404 = vmatprep.subr.mxu0 0.0
        %1405 = vmatpush1.xpose.msra.mxu0 0.0
        %1406 = vmatprep.subr.mxu0 0.0
        %1407 = vmatpush1.xpose.msra.mxu0 0.0
        %1408 = vmatprep.subr.mxu0 0.0
        %1409 = vmatpush1.xpose.msra.mxu0 0.0
        %1410 = vmatprep.subr.mxu0 0.0
        %1411 = vmatpush1.xpose.msra.mxu0 0.0
        %1412 = vmatprep.subr.mxu0 0.0
        %1413 = vmatpush1.xpose.msra.mxu0 0.0
        %1414 = vmatprep.subr.mxu0 0.0
        %1415 = vmatpush1.xpose.msra.mxu0 0.0
        %1416 = vmatprep.subr.mxu0 0.0
        %1417 = vmatpush1.xpose.msra.mxu0 0.0
        %1418 = vmatprep.subr.mxu0 0.0
        %1419 = vmatpush1.xpose.msra.mxu0 0.0
        %1420 = vmatprep.subr.mxu0 0.0
        %1421 = vmatpush1.xpose.msra.mxu0 0.0
        %1422 = vmatprep.subr.mxu0 0.0
        %1423 = vmatpush1.xpose.msra.mxu0 0.0
        %1424 = vmatprep.subr.mxu0 0.0
        %1425 = vmatpush1.xpose.msra.mxu0 0.0
        %1426 = vmatprep.subr.mxu0 0.0
        %1427 = vmatpush1.xpose.msra.mxu0 0.0
        %1428 = vmatprep.subr.mxu0 0.0
        %1429 = vmatpush1.xpose.msra.mxu0 0.0
        %1430 = vmatprep.mubr.f32.mxu0 0.0
        %1431 = vmatmul.mubr.f32.gmra.mrb[0].mxu0 %v1361
        %v1432 = vpop.f32.mrb[0].mxu0
        %v1433 = vadd.f32 0.0, %v1432
        %v1434 = vpop.f32.mrb[0].mxu0
        %1435 = vdwg.mxu0
        %v1437 = vsel %vm1207, %v914, 0
        %v1440 = vsel %vm1207, %v1060, 0
        %1442 = vmatprep.subr.mxu0 0.0
        %1443 = vmatpush1.xpose.msra.mxu0 %v1440
        %1444 = vmatprep.subr.mxu0 0.0
        %1445 = vmatpush1.xpose.msra.mxu0 0.0
        %1446 = vmatprep.subr.mxu0 0.0
        %1447 = vmatpush1.xpose.msra.mxu0 0.0
        %1448 = vmatprep.subr.mxu0 0.0
        %1449 = vmatpush1.xpose.msra.mxu0 0.0
        %1450 = vmatprep.subr.mxu0 0.0
        %1451 = vmatpush1.xpose.msra.mxu0 0.0
        %1452 = vmatprep.subr.mxu0 0.0
        %1453 = vmatpush1.xpose.msra.mxu0 0.0
        %1454 = vmatprep.subr.mxu0 0.0
        %1455 = vmatpush1.xpose.msra.mxu0 0.0
        %1456 = vmatprep.subr.mxu0 0.0
        %1457 = vmatpush1.xpose.msra.mxu0 0.0
        %1458 = vmatprep.subr.mxu0 0.0
        %1459 = vmatpush1.xpose.msra.mxu0 0.0
        %1460 = vmatprep.subr.mxu0 0.0
        %1461 = vmatpush1.xpose.msra.mxu0 0.0
        %1462 = vmatprep.subr.mxu0 0.0
        %1463 = vmatpush1.xpose.msra.mxu0 0.0
        %1464 = vmatprep.subr.mxu0 0.0
        %1465 = vmatpush1.xpose.msra.mxu0 0.0
        %1466 = vmatprep.subr.mxu0 0.0
        %1467 = vmatpush1.xpose.msra.mxu0 0.0
        %1468 = vmatprep.subr.mxu0 0.0
        %1469 = vmatpush1.xpose.msra.mxu0 0.0
        %1470 = vmatprep.subr.mxu0 0.0
        %1471 = vmatpush1.xpose.msra.mxu0 0.0
        %1472 = vmatprep.subr.mxu0 0.0
        %1473 = vmatpush1.xpose.msra.mxu0 0.0
        %1474 = vmatprep.subr.mxu0 0.0
        %1475 = vmatpush1.xpose.msra.mxu0 0.0
        %1476 = vmatprep.subr.mxu0 0.0
        %1477 = vmatpush1.xpose.msra.mxu0 0.0
        %1478 = vmatprep.subr.mxu0 0.0
        %1479 = vmatpush1.xpose.msra.mxu0 0.0
        %1480 = vmatprep.subr.mxu0 0.0
        %1481 = vmatpush1.xpose.msra.mxu0 0.0
        %1482 = vmatprep.subr.mxu0 0.0
        %1483 = vmatpush1.xpose.msra.mxu0 0.0
        %1484 = vmatprep.subr.mxu0 0.0
        %1485 = vmatpush1.xpose.msra.mxu0 0.0
        %1486 = vmatprep.subr.mxu0 0.0
        %1487 = vmatpush1.xpose.msra.mxu0 0.0
        %1488 = vmatprep.subr.mxu0 0.0
        %1489 = vmatpush1.xpose.msra.mxu0 0.0
        %1490 = vmatprep.subr.mxu0 0.0
        %1491 = vmatpush1.xpose.msra.mxu0 0.0
        %1492 = vmatprep.subr.mxu0 0.0
        %1493 = vmatpush1.xpose.msra.mxu0 0.0
        %1494 = vmatprep.subr.mxu0 0.0
        %1495 = vmatpush1.xpose.msra.mxu0 0.0
        %1496 = vmatprep.subr.mxu0 0.0
        %1497 = vmatpush1.xpose.msra.mxu0 0.0
        %1498 = vmatprep.subr.mxu0 0.0
        %1499 = vmatpush1.xpose.msra.mxu0 0.0
        %1500 = vmatprep.subr.mxu0 0.0
        %1501 = vmatpush1.xpose.msra.mxu0 0.0
        %1502 = vmatprep.subr.mxu0 0.0
        %1503 = vmatpush1.xpose.msra.mxu0 0.0
        %1504 = vmatprep.subr.mxu0 0.0
        %1505 = vmatpush1.xpose.msra.mxu0 0.0
        %1506 = vmatprep.mubr.f32.mxu0 0.0
        %1507 = vmatmul.mubr.f32.gmra.mrb[0].mxu0 %v1437
        %v1508 = vpop.f32.mrb[0].mxu0
        %v1509 = vadd.f32 0.0, %v1508
        %v1510 = vpop.f32.mrb[0].mxu0
        %1511 = vdwg.mxu0
        %v1512 = vsel %vm1207, %v1281, -inf
        %1513 = vmax.xlane.f32.xlu0 %v1512
        %v1514 = vpop.xlane.xlu0 %1513
        %v1515 = vsel %vm1207, %v1357, -inf
        %1516 = vmax.xlane.f32.xlu0 %v1515
        %v1517 = vpop.xlane.xlu0 %1516
        %v1518 = vsel %vm1207, %v1433, -inf
        %1519 = vmax.xlane.f32.xlu0 %v1518
        %v1520 = vpop.xlane.xlu0 %1519
        %v1521 = vsel %vm1207, %v1509, -inf
        %1522 = vmax.xlane.f32.xlu0 %v1521
        %v1523 = vpop.xlane.xlu0 %1522
        %v1524 = vsub.f32 %v1281, %v1514
        %v1525 = vsub.f32 %v1357, %v1517
        %v1526 = vsub.f32 %v1433, %v1520
        %v1527 = vsub.f32 %v1509, %v1523
        %v1528 = vmul.f32 %v1524, 1.442695
        %v1529 = vpow.pop %v1528
        %v1530 = vmul.f32 %v1525, 1.442695
        %v1531 = vpow.pop %v1530
        %v1532 = vmul.f32 %v1526, 1.442695
        %v1533 = vpow.pop %v1532
        %v1534 = vmul.f32 %v1527, 1.442695
        %v1535 = vpow.pop %v1534
        %v1536 = vsel %vm1207, %v1529, 0.0
        %1537 = vadd.xlane.f32.xlu0 %v1536
        %v1538 = vpop.xlane.xlu0 %1537
        %v1539 = vsel %vm1207, %v1531, 0.0
        %1540 = vadd.xlane.f32.xlu0 %v1539
        %v1541 = vpop.xlane.xlu0 %1540
        %v1542 = vsel %vm1207, %v1533, 0.0
        %1543 = vadd.xlane.f32.xlu0 %v1542
        %v1544 = vpop.xlane.xlu0 %1543
        %v1545 = vsel %vm1207, %v1535, 0.0
        %1546 = vadd.xlane.f32.xlu0 %v1545
        %v1547 = vpop.xlane.xlu0 %1546
        %v1548 = vrcp.pop %v1538
        %v1549 = vrcp.pop %v1541
        %v1550 = vrcp.pop %v1544
        %v1551 = vrcp.pop %v1547
        %v1552 = vmul.f32 %v1529, %v1548
        %v1553 = vmul.f32 %v1531, %v1549
        %v1554 = vmul.f32 %v1533, %v1550
        %v1555 = vmul.f32 %v1535, %v1551
        %1556 = vst.msk [vmem:[%s533] sm:$0xff] %vm1207, %v1552
        %1557 = vst.msk [vmem:[%s533 + $0x8] sm:$0xff] %vm1207, %v1553
        %1558 = vst.msk [vmem:[%s533 + $0x10] sm:$0xff] %vm1207, %v1554
        %1559 = vst.msk [vmem:[%s533 + $0x18] sm:$0xff] %vm1207, %v1555
        %v1561 = vsel %vm1207, %v1552, 0
        %1563 = vmatprep.subr.mxu0 0.0
        %1564 = vmatpush1.msra.mxu0 %v1203
        %1565 = vmatprep.subr.mxu0 0.0
        %1566 = vmatpush1.msra.mxu0 0.0
        %1567 = vmatprep.subr.mxu0 0.0
        %1568 = vmatpush1.msra.mxu0 0.0
        %1569 = vmatprep.subr.mxu0 0.0
        %1570 = vmatpush1.msra.mxu0 0.0
        %1571 = vmatprep.subr.mxu0 0.0
        %1572 = vmatpush1.msra.mxu0 0.0
        %1573 = vmatprep.subr.mxu0 0.0
        %1574 = vmatpush1.msra.mxu0 0.0
        %1575 = vmatprep.subr.mxu0 0.0
        %1576 = vmatpush1.msra.mxu0 0.0
        %1577 = vmatprep.subr.mxu0 0.0
        %1578 = vmatpush1.msra.mxu0 0.0
        %1579 = vmatprep.subr.mxu0 0.0
        %1580 = vmatpush1.msra.mxu0 0.0
        %1581 = vmatprep.subr.mxu0 0.0
        %1582 = vmatpush1.msra.mxu0 0.0
        %1583 = vmatprep.subr.mxu0 0.0
        %1584 = vmatpush1.msra.mxu0 0.0
        %1585 = vmatprep.subr.mxu0 0.0
        %1586 = vmatpush1.msra.mxu0 0.0
        %1587 = vmatprep.subr.mxu0 0.0
        %1588 = vmatpush1.msra.mxu0 0.0
        %1589 = vmatprep.subr.mxu0 0.0
        %1590 = vmatpush1.msra.mxu0 0.0
        %1591 = vmatprep.subr.mxu0 0.0
        %1592 = vmatpush1.msra.mxu0 0.0
        %1593 = vmatprep.subr.mxu0 0.0
        %1594 = vmatpush1.msra.mxu0 0.0
        %1595 = vmatprep.subr.mxu0 0.0
        %1596 = vmatpush1.msra.mxu0 0.0
        %1597 = vmatprep.subr.mxu0 0.0
        %1598 = vmatpush1.msra.mxu0 0.0
        %1599 = vmatprep.subr.mxu0 0.0
        %1600 = vmatpush1.msra.mxu0 0.0
        %1601 = vmatprep.subr.mxu0 0.0
        %1602 = vmatpush1.msra.mxu0 0.0
        %1603 = vmatprep.subr.mxu0 0.0
        %1604 = vmatpush1.msra.mxu0 0.0
        %1605 = vmatprep.subr.mxu0 0.0
        %1606 = vmatpush1.msra.mxu0 0.0
        %1607 = vmatprep.subr.mxu0 0.0
        %1608 = vmatpush1.msra.mxu0 0.0
        %1609 = vmatprep.subr.mxu0 0.0
        %1610 = vmatpush1.msra.mxu0 0.0
        %1611 = vmatprep.subr.mxu0 0.0
        %1612 = vmatpush1.msra.mxu0 0.0
        %1613 = vmatprep.subr.mxu0 0.0
        %1614 = vmatpush1.msra.mxu0 0.0
        %1615 = vmatprep.subr.mxu0 0.0
        %1616 = vmatpush1.msra.mxu0 0.0
        %1617 = vmatprep.subr.mxu0 0.0
        %1618 = vmatpush1.msra.mxu0 0.0
        %1619 = vmatprep.subr.mxu0 0.0
        %1620 = vmatpush1.msra.mxu0 0.0
        %1621 = vmatprep.subr.mxu0 0.0
        %1622 = vmatpush1.msra.mxu0 0.0
        %1623 = vmatprep.subr.mxu0 0.0
        %1624 = vmatpush1.msra.mxu0 0.0
        %1625 = vmatprep.subr.mxu0 0.0
        %1626 = vmatpush1.msra.mxu0 0.0
        %1627 = vmatprep.mubr.f32.mxu0 0.0
        %1628 = vmatmul.mubr.f32.gmra.mrb[0].mxu0 %v1561
        %v1629 = vpop.f32.mrb[0].mxu0
        %v1630 = vadd.f32 0.0, %v1629
        %v1631 = vpop.f32.mrb[0].mxu0
        %1632 = vdwg.mxu0
        %v1634 = vsel %vm1207, %v1553, 0
        %1636 = vmatprep.subr.mxu0 0.0
        %1637 = vmatpush1.msra.mxu0 %v1204
        %1638 = vmatprep.subr.mxu0 0.0
        %1639 = vmatpush1.msra.mxu0 0.0
        %1640 = vmatprep.subr.mxu0 0.0
        %1641 = vmatpush1.msra.mxu0 0.0
        %1642 = vmatprep.subr.mxu0 0.0
        %1643 = vmatpush1.msra.mxu0 0.0
        %1644 = vmatprep.subr.mxu0 0.0
        %1645 = vmatpush1.msra.mxu0 0.0
        %1646 = vmatprep.subr.mxu0 0.0
        %1647 = vmatpush1.msra.mxu0 0.0
        %1648 = vmatprep.subr.mxu0 0.0
        %1649 = vmatpush1.msra.mxu0 0.0
        %1650 = vmatprep.subr.mxu0 0.0
        %1651 = vmatpush1.msra.mxu0 0.0
        %1652 = vmatprep.subr.mxu0 0.0
        %1653 = vmatpush1.msra.mxu0 0.0
        %1654 = vmatprep.subr.mxu0 0.0
        %1655 = vmatpush1.msra.mxu0 0.0
        %1656 = vmatprep.subr.mxu0 0.0
        %1657 = vmatpush1.msra.mxu0 0.0
        %1658 = vmatprep.subr.mxu0 0.0
        %1659 = vmatpush1.msra.mxu0 0.0
        %1660 = vmatprep.subr.mxu0 0.0
        %1661 = vmatpush1.msra.mxu0 0.0
        %1662 = vmatprep.subr.mxu0 0.0
        %1663 = vmatpush1.msra.mxu0 0.0
        %1664 = vmatprep.subr.mxu0 0.0
        %1665 = vmatpush1.msra.mxu0 0.0
        %1666 = vmatprep.subr.mxu0 0.0
        %1667 = vmatpush1.msra.mxu0 0.0
        %1668 = vmatprep.subr.mxu0 0.0
        %1669 = vmatpush1.msra.mxu0 0.0
        %1670 = vmatprep.subr.mxu0 0.0
        %1671 = vmatpush1.msra.mxu0 0.0
        %1672 = vmatprep.subr.mxu0 0.0
        %1673 = vmatpush1.msra.mxu0 0.0
        %1674 = vmatprep.subr.mxu0 0.0
        %1675 = vmatpush1.msra.mxu0 0.0
        %1676 = vmatprep.subr.mxu0 0.0
        %1677 = vmatpush1.msra.mxu0 0.0
        %1678 = vmatprep.subr.mxu0 0.0
        %1679 = vmatpush1.msra.mxu0 0.0
        %1680 = vmatprep.subr.mxu0 0.0
        %1681 = vmatpush1.msra.mxu0 0.0
        %1682 = vmatprep.subr.mxu0 0.0
        %1683 = vmatpush1.msra.mxu0 0.0
        %1684 = vmatprep.subr.mxu0 0.0
        %1685 = vmatpush1.msra.mxu0 0.0
        %1686 = vmatprep.subr.mxu0 0.0
        %1687 = vmatpush1.msra.mxu0 0.0
        %1688 = vmatprep.subr.mxu0 0.0
        %1689 = vmatpush1.msra.mxu0 0.0
        %1690 = vmatprep.subr.mxu0 0.0
        %1691 = vmatpush1.msra.mxu0 0.0
        %1692 = vmatprep.subr.mxu0 0.0
        %1693 = vmatpush1.msra.mxu0 0.0
        %1694 = vmatprep.subr.mxu0 0.0
        %1695 = vmatpush1.msra.mxu0 0.0
        %1696 = vmatprep.subr.mxu0 0.0
        %1697 = vmatpush1.msra.mxu0 0.0
        %1698 = vmatprep.subr.mxu0 0.0
        %1699 = vmatpush1.msra.mxu0 0.0
        %1700 = vmatprep.mubr.f32.mxu0 0.0
        %1701 = vmatmul.mubr.f32.gmra.mrb[0].mxu0 %v1634
        %v1702 = vpop.f32.mrb[0].mxu0
        %v1703 = vadd.f32 0.0, %v1702
        %v1704 = vpop.f32.mrb[0].mxu0
        %1705 = vdwg.mxu0
        %v1707 = vsel %vm1207, %v1554, 0
        %1709 = vmatprep.subr.mxu0 0.0
        %1710 = vmatpush1.msra.mxu0 %v1205
        %1711 = vmatprep.subr.mxu0 0.0
        %1712 = vmatpush1.msra.mxu0 0.0
        %1713 = vmatprep.subr.mxu0 0.0
        %1714 = vmatpush1.msra.mxu0 0.0
        %1715 = vmatprep.subr.mxu0 0.0
        %1716 = vmatpush1.msra.mxu0 0.0
        %1717 = vmatprep.subr.mxu0 0.0
        %1718 = vmatpush1.msra.mxu0 0.0
        %1719 = vmatprep.subr.mxu0 0.0
        %1720 = vmatpush1.msra.mxu0 0.0
        %1721 = vmatprep.subr.mxu0 0.0
        %1722 = vmatpush1.msra.mxu0 0.0
        %1723 = vmatprep.subr.mxu0 0.0
        %1724 = vmatpush1.msra.mxu0 0.0
        %1725 = vmatprep.subr.mxu0 0.0
        %1726 = vmatpush1.msra.mxu0 0.0
        %1727 = vmatprep.subr.mxu0 0.0
        %1728 = vmatpush1.msra.mxu0 0.0
        %1729 = vmatprep.subr.mxu0 0.0
        %1730 = vmatpush1.msra.mxu0 0.0
        %1731 = vmatprep.subr.mxu0 0.0
        %1732 = vmatpush1.msra.mxu0 0.0
        %1733 = vmatprep.subr.mxu0 0.0
        %1734 = vmatpush1.msra.mxu0 0.0
        %1735 = vmatprep.subr.mxu0 0.0
        %1736 = vmatpush1.msra.mxu0 0.0
        %1737 = vmatprep.subr.mxu0 0.0
        %1738 = vmatpush1.msra.mxu0 0.0
        %1739 = vmatprep.subr.mxu0 0.0
        %1740 = vmatpush1.msra.mxu0 0.0
        %1741 = vmatprep.subr.mxu0 0.0
        %1742 = vmatpush1.msra.mxu0 0.0
        %1743 = vmatprep.subr.mxu0 0.0
        %1744 = vmatpush1.msra.mxu0 0.0
        %1745 = vmatprep.subr.mxu0 0.0
        %1746 = vmatpush1.msra.mxu0 0.0
        %1747 = vmatprep.subr.mxu0 0.0
        %1748 = vmatpush1.msra.mxu0 0.0
        %1749 = vmatprep.subr.mxu0 0.0
        %1750 = vmatpush1.msra.mxu0 0.0
        %1751 = vmatprep.subr.mxu0 0.0
        %1752 = vmatpush1.msra.mxu0 0.0
        %1753 = vmatprep.subr.mxu0 0.0
        %1754 = vmatpush1.msra.mxu0 0.0
        %1755 = vmatprep.subr.mxu0 0.0
        %1756 = vmatpush1.msra.mxu0 0.0
        %1757 = vmatprep.subr.mxu0 0.0
        %1758 = vmatpush1.msra.mxu0 0.0
        %1759 = vmatprep.subr.mxu0 0.0
        %1760 = vmatpush1.msra.mxu0 0.0
        %1761 = vmatprep.subr.mxu0 0.0
        %1762 = vmatpush1.msra.mxu0 0.0
        %1763 = vmatprep.subr.mxu0 0.0
        %1764 = vmatpush1.msra.mxu0 0.0
        %1765 = vmatprep.subr.mxu0 0.0
        %1766 = vmatpush1.msra.mxu0 0.0
        %1767 = vmatprep.subr.mxu0 0.0
        %1768 = vmatpush1.msra.mxu0 0.0
        %1769 = vmatprep.subr.mxu0 0.0
        %1770 = vmatpush1.msra.mxu0 0.0
        %1771 = vmatprep.subr.mxu0 0.0
        %1772 = vmatpush1.msra.mxu0 0.0
        %1773 = vmatprep.mubr.f32.mxu0 0.0
        %1774 = vmatmul.mubr.f32.gmra.mrb[0].mxu0 %v1707
        %v1775 = vpop.f32.mrb[0].mxu0
        %v1776 = vadd.f32 0.0, %v1775
        %v1777 = vpop.f32.mrb[0].mxu0
        %1778 = vdwg.mxu0
        %v1780 = vsel %vm1207, %v1555, 0
        %1782 = vmatprep.subr.mxu0 0.0
        %1783 = vmatpush1.msra.mxu0 %v1206
        %1784 = vmatprep.subr.mxu0 0.0
        %1785 = vmatpush1.msra.mxu0 0.0
        %1786 = vmatprep.subr.mxu0 0.0
        %1787 = vmatpush1.msra.mxu0 0.0
        %1788 = vmatprep.subr.mxu0 0.0
        %1789 = vmatpush1.msra.mxu0 0.0
        %1790 = vmatprep.subr.mxu0 0.0
        %1791 = vmatpush1.msra.mxu0 0.0
        %1792 = vmatprep.subr.mxu0 0.0
        %1793 = vmatpush1.msra.mxu0 0.0
        %1794 = vmatprep.subr.mxu0 0.0
        %1795 = vmatpush1.msra.mxu0 0.0
        %1796 = vmatprep.subr.mxu0 0.0
        %1797 = vmatpush1.msra.mxu0 0.0
        %1798 = vmatprep.subr.mxu0 0.0
        %1799 = vmatpush1.msra.mxu0 0.0
        %1800 = vmatprep.subr.mxu0 0.0
        %1801 = vmatpush1.msra.mxu0 0.0
        %1802 = vmatprep.subr.mxu0 0.0
        %1803 = vmatpush1.msra.mxu0 0.0
        %1804 = vmatprep.subr.mxu0 0.0
        %1805 = vmatpush1.msra.mxu0 0.0
        %1806 = vmatprep.subr.mxu0 0.0
        %1807 = vmatpush1.msra.mxu0 0.0
        %1808 = vmatprep.subr.mxu0 0.0
        %1809 = vmatpush1.msra.mxu0 0.0
        %1810 = vmatprep.subr.mxu0 0.0
        %1811 = vmatpush1.msra.mxu0 0.0
        %1812 = vmatprep.subr.mxu0 0.0
        %1813 = vmatpush1.msra.mxu0 0.0
        %1814 = vmatprep.subr.mxu0 0.0
        %1815 = vmatpush1.msra.mxu0 0.0
        %1816 = vmatprep.subr.mxu0 0.0
        %1817 = vmatpush1.msra.mxu0 0.0
        %1818 = vmatprep.subr.mxu0 0.0
        %1819 = vmatpush1.msra.mxu0 0.0
        %1820 = vmatprep.subr.mxu0 0.0
        %1821 = vmatpush1.msra.mxu0 0.0
        %1822 = vmatprep.subr.mxu0 0.0
        %1823 = vmatpush1.msra.mxu0 0.0
        %1824 = vmatprep.subr.mxu0 0.0
        %1825 = vmatpush1.msra.mxu0 0.0
        %1826 = vmatprep.subr.mxu0 0.0
        %1827 = vmatpush1.msra.mxu0 0.0
        %1828 = vmatprep.subr.mxu0 0.0
        %1829 = vmatpush1.msra.mxu0 0.0
        %1830 = vmatprep.subr.mxu0 0.0
        %1831 = vmatpush1.msra.mxu0 0.0
        %1832 = vmatprep.subr.mxu0 0.0
        %1833 = vmatpush1.msra.mxu0 0.0
        %1834 = vmatprep.subr.mxu0 0.0
        %1835 = vmatpush1.msra.mxu0 0.0
        %1836 = vmatprep.subr.mxu0 0.0
        %1837 = vmatpush1.msra.mxu0 0.0
        %1838 = vmatprep.subr.mxu0 0.0
        %1839 = vmatpush1.msra.mxu0 0.0
        %1840 = vmatprep.subr.mxu0 0.0
        %1841 = vmatpush1.msra.mxu0 0.0
        %1842 = vmatprep.subr.mxu0 0.0
        %1843 = vmatpush1.msra.mxu0 0.0
        %1844 = vmatprep.subr.mxu0 0.0
        %1845 = vmatpush1.msra.mxu0 0.0
        %1846 = vmatprep.mubr.f32.mxu0 0.0
        %1847 = vmatmul.mubr.f32.gmra.mrb[0].mxu0 %v1780
        %v1848 = vpop.f32.mrb[0].mxu0
        %v1849 = vadd.f32 0.0, %v1848
        %v1850 = vpop.f32.mrb[0].mxu0
        %1851 = vdwg.mxu0
        %v1852 = vcombine.low %v1630, %v1776
        %v1853 = vcombine.high %v1630, %v1776
        %v1855 = vunpack.c.l.s4 1983009808
        %v1856 = vunpack.c.0.s8 %v1855
        %v1857 = vlaneseq
        %v1858 = vshrl.u32 %v1857, 7
        %v1859 = vsub.s32 %v1856, %v1858
        %v1860 = vrot.slane %v1852, %v1859
        %v1862 = vunpack.c.l.s4 1983009808
        %v1863 = vunpack.c.0.s8 %v1862
        %v1864 = vlaneseq
        %v1865 = vshrl.u32 %v1864, 7
        %v1866 = vsub.s32 %v1863, %v1865
        %v1867 = vrot.slane %v1853, %v1866
        %v1868 = vcombine.low %v1703, %v1849
        %v1869 = vcombine.high %v1703, %v1849
        %v1871 = vunpack.c.l.s4 1983009808
        %v1872 = vunpack.c.0.s8 %v1871
        %v1873 = vlaneseq
        %v1874 = vshrl.u32 %v1873, 7
        %v1875 = vsub.s32 %v1872, %v1874
        %v1876 = vrot.slane %v1868, %v1875
        %v1878 = vunpack.c.l.s4 1983009808
        %v1879 = vunpack.c.0.s8 %v1878
        %v1880 = vlaneseq
        %v1881 = vshrl.u32 %v1880, 7
        %v1882 = vsub.s32 %v1879, %v1881
        %v1883 = vrot.slane %v1869, %v1882
        %v1884 = vcombine.low %v1860, %v1876
        %v1885 = vcombine.high %v1860, %v1876
        %v1887 = vunpack.c.l.s4 1934713408
        %v1888 = vunpack.c.0.s8 %v1887
        %v1889 = vlaneseq
        %v1890 = vshrl.u32 %v1889, 7
        %v1891 = vsub.s32 %v1888, %v1890
        %v1892 = vrot.slane %v1884, %v1891
        %v1894 = vunpack.c.l.s4 1934713408
        %v1895 = vunpack.c.0.s8 %v1894
        %v1896 = vlaneseq
        %v1897 = vshrl.u32 %v1896, 7
        %v1898 = vsub.s32 %v1895, %v1897
        %v1899 = vrot.slane %v1885, %v1898
        %v1900 = vcombine.low %v1867, %v1883
        %v1901 = vcombine.high %v1867, %v1883
        %v1903 = vunpack.c.l.s4 1934713408
        %v1904 = vunpack.c.0.s8 %v1903
        %v1905 = vlaneseq
        %v1906 = vshrl.u32 %v1905, 7
        %v1907 = vsub.s32 %v1904, %v1906
        %v1908 = vrot.slane %v1900, %v1907
        %v1910 = vunpack.c.l.s4 1934713408
        %v1911 = vunpack.c.0.s8 %v1910
        %v1912 = vlaneseq
        %v1913 = vshrl.u32 %v1912, 7
        %v1914 = vsub.s32 %v1911, %v1913
        %v1915 = vrot.slane %v1901, %v1914
        %v1916 = vcombine.high %v1892, 0.0
        %v1917 = vcombine.high %v1899, 0.0
        %v1918 = vcombine.high %v1908, 0.0
        %v1919 = vcombine.high %v1915, 0.0
        %v1920 = vcombine.low %v1892, %v1899
        %v1922 = vunpack.c.l.s4 1983009808
        %v1923 = vunpack.c.0.s8 %v1922
        %v1924 = vlaneseq
        %v1925 = vshrl.u32 %v1924, 7
        %v1926 = vsub.s32 %v1923, %v1925
        %v1927 = vrot.slane %v1920, %v1926
        %v1928 = vcombine.low %v1916, %v1917
        %v1930 = vunpack.c.l.s4 1983009808
        %v1931 = vunpack.c.0.s8 %v1930
        %v1932 = vlaneseq
        %v1933 = vshrl.u32 %v1932, 7
        %v1934 = vsub.s32 %v1931, %v1933
        %v1935 = vrot.slane %v1928, %v1934
        %v1936 = vcombine.low %v1908, %v1915
        %v1938 = vunpack.c.l.s4 1983009808
        %v1939 = vunpack.c.0.s8 %v1938
        %v1940 = vlaneseq
        %v1941 = vshrl.u32 %v1940, 7
        %v1942 = vsub.s32 %v1939, %v1941
        %v1943 = vrot.slane %v1936, %v1942
        %v1944 = vcombine.low %v1918, %v1919
        %v1946 = vunpack.c.l.s4 1983009808
        %v1947 = vunpack.c.0.s8 %v1946
        %v1948 = vlaneseq
        %v1949 = vshrl.u32 %v1948, 7
        %v1950 = vsub.s32 %v1947, %v1949
        %v1951 = vrot.slane %v1944, %v1950
        %v1952 = vcombine.low %v1927, %v1935
        %v1953 = vcombine.high %v1927, %v1935
        %v1955 = vunpack.c.l.s4 1934713408
        %v1956 = vunpack.c.0.s8 %v1955
        %v1957 = vlaneseq
        %v1958 = vshrl.u32 %v1957, 7
        %v1959 = vsub.s32 %v1956, %v1958
        %v1960 = vrot.slane %v1952, %v1959
        %v1962 = vunpack.c.l.s4 1934713408
        %v1963 = vunpack.c.0.s8 %v1962
        %v1964 = vlaneseq
        %v1965 = vshrl.u32 %v1964, 7
        %v1966 = vsub.s32 %v1963, %v1965
        %v1967 = vrot.slane %v1953, %v1966
        %v1968 = vcombine.low %v1943, %v1951
        %v1969 = vcombine.high %v1943, %v1951
        %v1971 = vunpack.c.l.s4 1934713408
        %v1972 = vunpack.c.0.s8 %v1971
        %v1973 = vlaneseq
        %v1974 = vshrl.u32 %v1973, 7
        %v1975 = vsub.s32 %v1972, %v1974
        %v1976 = vrot.slane %v1968, %v1975
        %v1978 = vunpack.c.l.s4 1934713408
        %v1979 = vunpack.c.0.s8 %v1978
        %v1980 = vlaneseq
        %v1981 = vshrl.u32 %v1980, 7
        %v1982 = vsub.s32 %v1979, %v1981
        %v1983 = vrot.slane %v1969, %v1982
        %v1984 = vcombine.low %v1960, %v1976
        %v1985 = vcombine.high %v1960, %v1976
        %v1986 = vcombine.low %v1967, %v1983
        %v1987 = vcombine.high %v1967, %v1983
        %1989 = vrot.lane.b32.xlu0 %v1985, 8
        %v1990 = vpop.permute.xlu0 %1989
        %1993 = vrot.lane.b32.xlu0 %v1986, 16
        %v1994 = vpop.permute.xlu0 %1993
        %1997 = vrot.lane.b32.xlu0 %v1987, 24
        %v1998 = vpop.permute.xlu0 %1997
        %v2000 = vsel %vm1207, %v1984, %v1990
        %vm2001 = vcmask 130048
        %v2002 = vsel %vm2001, %v2000, %v1994
        %vm2003 = vcmask 195584
        %v2004 = vsel %vm2003, %v2002, %v1998
        %v2005 = vld [vmem:[#allocation13] sm:$0xff]
        %v2006 = vld [vmem:[#allocation13 + $0x8] sm:$0xff]
        %v2007 = vld [vmem:[#allocation13 + $0x10] sm:$0xff]
        %v2008 = vld [vmem:[#allocation13 + $0x18] sm:$0xff]
        %v2010 = vsel %vm541, %v2004, 0
        %2012 = vmatprep.subr.mxu0 0.0
        %2013 = vmatpush1.msra.mxu0 %v2005
        %2014 = vmatprep.subr.mxu0 0.0
        %2015 = vmatpush1.msra.mxu0 %v2006
        %2016 = vmatprep.subr.mxu0 0.0
        %2017 = vmatpush1.msra.mxu0 %v2007
        %2018 = vmatprep.subr.mxu0 0.0
        %2019 = vmatpush1.msra.mxu0 %v2008
        %2020 = vmatprep.subr.mxu0 0.0
        %2021 = vmatpush1.msra.mxu0 0.0
        %2022 = vmatprep.subr.mxu0 0.0
        %2023 = vmatpush1.msra.mxu0 0.0
        %2024 = vmatprep.subr.mxu0 0.0
        %2025 = vmatpush1.msra.mxu0 0.0
        %2026 = vmatprep.subr.mxu0 0.0
        %2027 = vmatpush1.msra.mxu0 0.0
        %2028 = vmatprep.subr.mxu0 0.0
        %2029 = vmatpush1.msra.mxu0 0.0
        %2030 = vmatprep.subr.mxu0 0.0
        %2031 = vmatpush1.msra.mxu0 0.0
        %2032 = vmatprep.subr.mxu0 0.0
        %2033 = vmatpush1.msra.mxu0 0.0
        %2034 = vmatprep.subr.mxu0 0.0
        %2035 = vmatpush1.msra.mxu0 0.0
        %2036 = vmatprep.subr.mxu0 0.0
        %2037 = vmatpush1.msra.mxu0 0.0
        %2038 = vmatprep.subr.mxu0 0.0
        %2039 = vmatpush1.msra.mxu0 0.0
        %2040 = vmatprep.subr.mxu0 0.0
        %2041 = vmatpush1.msra.mxu0 0.0
        %2042 = vmatprep.subr.mxu0 0.0
        %2043 = vmatpush1.msra.mxu0 0.0
        %2044 = vmatprep.subr.mxu0 0.0
        %2045 = vmatpush1.msra.mxu0 0.0
        %2046 = vmatprep.subr.mxu0 0.0
        %2047 = vmatpush1.msra.mxu0 0.0
        %2048 = vmatprep.subr.mxu0 0.0
        %2049 = vmatpush1.msra.mxu0 0.0
        %2050 = vmatprep.subr.mxu0 0.0
        %2051 = vmatpush1.msra.mxu0 0.0
        %2052 = vmatprep.subr.mxu0 0.0
        %2053 = vmatpush1.msra.mxu0 0.0
        %2054 = vmatprep.subr.mxu0 0.0
        %2055 = vmatpush1.msra.mxu0 0.0
        %2056 = vmatprep.subr.mxu0 0.0
        %2057 = vmatpush1.msra.mxu0 0.0
        %2058 = vmatprep.subr.mxu0 0.0
        %2059 = vmatpush1.msra.mxu0 0.0
        %2060 = vmatprep.subr.mxu0 0.0
        %2061 = vmatpush1.msra.mxu0 0.0
        %2062 = vmatprep.subr.mxu0 0.0
        %2063 = vmatpush1.msra.mxu0 0.0
        %2064 = vmatprep.subr.mxu0 0.0
        %2065 = vmatpush1.msra.mxu0 0.0
        %2066 = vmatprep.subr.mxu0 0.0
        %2067 = vmatpush1.msra.mxu0 0.0
        %2068 = vmatprep.subr.mxu0 0.0
        %2069 = vmatpush1.msra.mxu0 0.0
        %2070 = vmatprep.subr.mxu0 0.0
        %2071 = vmatpush1.msra.mxu0 0.0
        %2072 = vmatprep.subr.mxu0 0.0
        %2073 = vmatpush1.msra.mxu0 0.0
        %2074 = vmatprep.subr.mxu0 0.0
        %2075 = vmatpush1.msra.mxu0 0.0
        %2076 = vmatprep.mubr.f32.mxu0 0.0
        %2077 = vmatmul.mubr.f32.gmra.mrb[0].mxu0 %v2010
        %v2078 = vpop.f32.mrb[0].mxu0
        %v2079 = vadd.f32 %v534, %v2078
        %v2080 = vpop.f32.mrb[0].mxu0
        %2081 = vdwg.mxu0
        %v2082 = vsel %vm541, %v2079, 0.0
        %2083 = vadd.xlane.f32.xlu0 %v2082
        %v2084 = vpop.xlane.xlu0 %2083
        %v2085 = vrcp.pop 32.0
        %v2086 = vmul.f32 %v2084, %v2085
        %v2087 = vsub.f32 %v2079, %v2086
        %v2088 = vmul.f32 %v2087, %v2087
        %v2089 = vsel %vm541, %v2088, 0.0
        %2090 = vadd.xlane.f32.xlu0 %v2089
        %v2091 = vpop.xlane.xlu0 %2090
        %v2092 = vmul.f32 %v2091, %v2085
        %v2093 = vadd.f32 %v2092, 1e-06
        %v2094 = vrsqrt.pop %v2093
        %v2095 = vmul.f32 %v2087, %v2094
        %v2096 = vld [vmem:[%s7] sm:$0x1]
        %v2098 = vlaneseq
        %v2099 = vshrl.u32 %v2098, 7
        %v2100 = vsub.s32 0, %v2099
        %v2101 = vrot.slane %v2096, %v2100
        %v2103 = vmul.f32 %v2095, %v2101
        %v2104 = vld [vmem:[%s8] sm:$0x1]
        %v2106 = vlaneseq
        %v2107 = vshrl.u32 %v2106, 7
        %v2108 = vsub.s32 0, %v2107
        %v2109 = vrot.slane %v2104, %v2108
        %v2111 = vadd.f32 %v2103, %v2109
        %2112 = vst.msk [vmem:[%s526] sm:$0xff] %vm541, %v2111
        %s2113 = sand.u32 %s264, 1
        %s2114 = scalar_lea.sflag [#allocation4], %s2113
        %s2115 = sand.u32 %s264, 1
        %s2116 = smul.addr %s2115, 8
        %s2117 = scalar_lea.vmem [#allocation14], %s2116
        %s2118 = sand.u32 %s292, 1
        %s2119 = scalar_lea.sflag [#allocation16], %s2118
        %s2120 = sand.u32 %s292, 1
        %s2121 = smul.addr %s2120, 32
        %s2122 = scalar_lea.vmem [#allocation15], %s2121
        // Predicated region
        $region85: #{tpu_custom_call.1} parent=55 // pred_check
          %p2123 = pneg %p274
        $region86: #{tpu_custom_call.1} parent=55 // pred_check_branch
          %2125 = sbr.rel (%p2123) target = $region88
        $region87: #{tpu_custom_call.1} parent=55 // pred_region
          %s2127 = ssub.s32 128, 128
          %2128 = vsyncadd %s2114, %s2127
          %s2129 = sadd.s32 %s41, %s40
          %s2130 = smul.addr %s2129, 128
          %s2131 = scalar_lea.hbm %s9, %s2130
          %s2133 = sshll.u32 %s2117, 4
          %s2134 = int_to_ptr.vmem [resolvable:$true] %s2133
          %2136 = dma.vmem_to_hbm [thread:$0]  %s2134, 128, %s2131, %s2114
        $region88: #{tpu_custom_call.1} parent=55 // pred_fallthru
          _
        // Predicated region
        $region89: #{tpu_custom_call.1} parent=55 // pred_check
          %p2137 = pneg %p302
        $region90: #{tpu_custom_call.1} parent=55 // pred_check_branch
          %2139 = sbr.rel (%p2137) target = $region92
        $region91: #{tpu_custom_call.1} parent=55 // pred_region
          %s2141 = ssub.s32 512, 512
          %2142 = vsyncadd %s2119, %s2141
          %s2143 = smul.addr %s40, 4
          %s2144 = sadd.s32 %s41, %s2143
          %s2145 = smul.addr %s2144, 128
          %s2146 = scalar_lea.hbm %s10, %s2145
          %s2147 = sshll.u32 %s2122, 4
          %s2148 = int_to_ptr.vmem [resolvable:$true] %s2147
          %2153 = dma.vmem_to_hbm [thread:$0]  %s2148, 512, %s2146, %s2119, 128, 128, 8
        $region92: #{tpu_custom_call.1} parent=55 // pred_fallthru
          _
      $region56: #{tpu_custom_call.1} parent=5 // pred_fallthru
        _
      %p2154 = scmp.le.s32.totalorder 2, %s31
      // Predicated region
      $region93: #{tpu_custom_call.1} parent=5 // pred_check
        %p2155 = pneg %p2154
      $region94: #{tpu_custom_call.1} parent=5 // pred_check_branch
        %2157 = sbr.rel (%p2155) target = $region96
      $region95: #{tpu_custom_call.1} parent=5 // pred_region
        %s2158 = ssub.s32 %s31, 2
        // Predicated region
        $region97: #{tpu_custom_call.1} parent=95 // pred_check
          %p2159 = pneg %p280
        $region98: #{tpu_custom_call.1} parent=95 // pred_check_branch
          %2161 = sbr.rel (%p2159) target = $region100
        $region99: #{tpu_custom_call.1} parent=95 // pred_region
          %s2162 = sand.u32 %s265, 1
          %s2163 = scalar_lea.sflag [#allocation4], %s2162
          %s2164 = sand.u32 %s265, 1
          %s2165 = smul.addr %s2164, 8
          %s2166 = scalar_lea.vmem [#allocation14], %s2165
          %2167 = dma.done %s2163, 128
        $region100: #{tpu_custom_call.1} parent=95 // pred_fallthru
          _
        // Predicated region
        $region101: #{tpu_custom_call.1} parent=95 // pred_check
          %p2168 = pneg %p308
        $region102: #{tpu_custom_call.1} parent=95 // pred_check_branch
          %2170 = sbr.rel (%p2168) target = $region104
        $region103: #{tpu_custom_call.1} parent=95 // pred_region
          %s2171 = sand.u32 %s293, 1
          %s2172 = scalar_lea.sflag [#allocation16], %s2171
          %s2173 = sand.u32 %s293, 1
          %s2174 = smul.addr %s2173, 32
          %s2175 = scalar_lea.vmem [#allocation15], %s2174
          %2176 = dma.done %s2172, 512
        $region104: #{tpu_custom_call.1} parent=95 // pred_fallthru
          _
      $region96: #{tpu_custom_call.1} parent=5 // pred_fallthru
        _
    $region6: #{tpu_custom_call.1} parent=1 // loop_footer
      %s35 = sadd.s32 1, %s31
    $region7: #{tpu_custom_call.1} parent=1 // loop_footer_branch
      %30 = sbr.rel target = $region3
    $region8: #{tpu_custom_call.1} parent=1 // loop_exit
      _
    %2177 = vsyncpa [#allocation3], 1
    %s2178 = scalar_lea.sflag [#allocation3], 1
    %2179 = vsyncpa %s2178, 1
    %2180 = vsyncpa [#allocation6], 1
    %s2181 = scalar_lea.sflag [#allocation6], 1
    %2182 = vsyncpa %s2181, 1
    %2183 = vsyncpa [#allocation9], 1
    %2184 = vsyncpa [#allocation12], 1
    %2185 = vsyncpa [#allocation4], 1
    %s2186 = scalar_lea.sflag [#allocation4], 1
    %2187 = vsyncpa %s2186, 1
    %2188 = vsyncpa [#allocation16], 1
    %s2189 = scalar_lea.sflag [#allocation16], 1
    %2190 = vsyncpa %s2189, 1

// kernel: tpu_custom_call.1
$region0: #{tpu_custom_call.1}
  #allocation0 [shape = 'u32[]', space=smem, size = 0x4, offset = 0x4, fixed_abs, tag = 'smem constant byte address 0x4 - core index']
  #allocation1 [shape = 'u32[144,128]{1,0:T(1,128)}', space=vmem, size = 0x12000, scoped, tag = 'internal scratch']
  %s0 = inlined_call_operand.hbm [shape: f32[2,8,32], index: 0, kind: input, shape index: {}]
  %s1 = inlined_call_operand.hbm [shape: f32[2,8,32], index: 1, kind: input, shape index: {}]
  %s2 = inlined_call_operand.hbm [shape: f32[2,8,32], index: 2, kind: input, shape index: {}]
  %s3 = inlined_call_operand.hbm [shape: f32[32,32], index: 3, kind: input, shape index: {}]
  %s4 = inlined_call_operand.hbm [shape: f32[32,32], index: 4, kind: input, shape index: {}]
  %s5 = inlined_call_operand.hbm [shape: f32[32,32], index: 5, kind: input, shape index: {}]
  %s6 = inlined_call_operand.hbm [shape: f32[32,32], index: 6, kind: input, shape index: {}]
  %s7 = inlined_call_operand.vmem [shape: f32[1,32], index: 7, kind: input, shape index: {}]
  %s8 = inlined_call_operand.vmem [shape: f32[1,32], index: 8, kind: input, shape index: {}]
  %s9 = inlined_call_operand.hbm [shape: f32[2,8,32], index: 9, kind: output, shape index: {0}]
  %s10 = inlined_call_operand.hbm [shape: f32[2,4,8,8], index: 10, kind: output, shape index: {1}]
  %11 = xla_tuple %s9, %s10
  %s12 = sld [smem:[#allocation0]]
  $region105: #{tpu_custom_call.1} parent=0
    _
  %s14 = ssub.s32 1, %s12
  %s15 = scalar_select 0, %s14, %s12
  $region1: #{tpu_custom_call.1} parent=0
    #allocation2 [shape = 'u8[8192]{0}', space=vmem, size = 0x2000, scoped, tag = 'input window, operand 0']
    #allocation3 [shape = 's32[2]{0}', space=sflag, size = 0x8, scoped, tag = 'scoped memory for tpu_custom_call.1']
    #allocation4 [shape = 's32[2]{0}', space=sflag, size = 0x8, scoped, tag = 'scoped memory for tpu_custom_call.1']
    #allocation5 [shape = 'u8[8192]{0}', space=vmem, size = 0x2000, scoped, tag = 'input window, operand 1']
    #allocation6 [shape = 's32[2]{0}', space=sflag, size = 0x8, scoped, tag = 'scoped memory for tpu_custom_call.1']
    #allocation7 [shape = 'u8[8192]{0}', space=vmem, size = 0x2000, scoped, tag = 'input window, operand 2']
    #allocation8 [shape = 'u8[16384]{0}', space=vmem, size = 0x4000, scoped, tag = 'input window, operand 3, single buffered']
    #allocation9 [shape = 's32[1]{0}', space=sflag, size = 0x4, scoped, tag = 'scoped memory for tpu_custom_call.1']
    #allocation10 [shape = 'u8[16384]{0}', space=vmem, size = 0x4000, scoped, tag = 'input window, operand 4, single buffered']
    #allocation11 [shape = 'u8[16384]{0}', space=vmem, size = 0x4000, scoped, tag = 'input window, operand 5, single buffered']
    #allocation12 [shape = 's32[1]{0}', space=sflag, size = 0x4, scoped, tag = 'scoped memory for tpu_custom_call.1']
    #allocation13 [shape = 'u8[16384]{0}', space=vmem, size = 0x4000, scoped, tag = 'input window, operand 6, single buffered']
    #allocation14 [shape = 'u8[8192]{0}', space=vmem, size = 0x2000, scoped, tag = 'output window, operand 0']
    #allocation15 [shape = 'u8[32768]{0}', space=vmem, size = 0x8000, scoped, tag = 'output window, operand 1']
    #allocation16 [shape = 's32[2]{0}', space=sflag, size = 0x8, scoped, tag = 'scoped memory for tpu_custom_call.1']
    %16 = vsyncpa [#allocation3], 0
    %s17 = scalar_lea.sflag [#allocation3], 1
    %18 = vsyncpa %s17, 0
    %19 = vsyncpa [#allocation6], 0
    %s20 = scalar_lea.sflag [#allocation6], 1
    %21 = vsyncpa %s20, 0
    %22 = vsyncpa [#allocation9], 0
    %23 = vsyncpa [#allocation12], 0
    %24 = vsyncpa [#allocation4], 0
    %s25 = scalar_lea.sflag [#allocation4], 1
    %26 = vsyncpa %s25, 0
    %27 = vsyncpa [#allocation16], 0
    %s28 = scalar_lea.sflag [#allocation16], 1
    %29 = vsyncpa %s28, 0
    loop: start=0, step=1, limit=4
    $region2: #{tpu_custom_call.1} parent=1 // loop_pre_header
      _
    $region3: #{tpu_custom_call.1} parent=1 // loop_header
      %s31 = sphi 0, %s35
      %p32 = scmp.ge.s32.totalorder %s31, 4
      %s38 = sphi 0, %s50
      %s39 = sphi 0, %s46
      %s40 = sphi 0, %s38
      %s41 = sphi 0, %s39
      %s42 = sphi 0, %s40
      %s43 = sphi 0, %s41
      %s55 = sphi 0, %s57
      %s58 = sphi 0, %s55
      %s59 = sphi 0, %s58
      %s75 = sphi 0, %s59
      %s81 = sphi 0, %s83
      %s84 = sphi 0, %s81
      %s85 = sphi 0, %s84
      %s101 = sphi 0, %s85
      %s107 = sphi 0, %s109
      %s110 = sphi 0, %s107
      %s111 = sphi 0, %s110
      %s127 = sphi 0, %s111
      %s131 = sphi 0, %s131
      %s133 = sphi 0, %s131
      %s134 = sphi 0, %s133
      %s148 = sphi 0, %s134
      %s152 = sphi 0, %s152
      %s154 = sphi 0, %s152
      %s155 = sphi 0, %s154
      %s169 = sphi 0, %s155
      %s173 = sphi 0, %s173
      %s175 = sphi 0, %s173
      %s176 = sphi 0, %s175
      %s190 = sphi 0, %s176
      %s194 = sphi 0, %s194
      %s196 = sphi 0, %s194
      %s197 = sphi 0, %s196
      %s211 = sphi 0, %s197
      %s215 = sphi 0, %s215
      %s217 = sphi 0, %s215
      %s218 = sphi 0, %s217
      %s232 = sphi 0, %s218
      %s236 = sphi 0, %s236
      %s238 = sphi 0, %s236
      %s239 = sphi 0, %s238
      %s253 = sphi 0, %s239
      %s261 = sphi 0, %s263
      %s264 = sphi 0, %s261
      %s265 = sphi 0, %s264
      %s281 = sphi 0, %s265
      %s289 = sphi 0, %s291
      %s292 = sphi 0, %s289
      %s293 = sphi 0, %s292
      %s309 = sphi 0, %s293
    $region4: #{tpu_custom_call.1} parent=1 // loop_header_branch
      %34 = sbr.rel (%p32) target = $region8
    $region5: #{tpu_custom_call.1} parent=1 // loop_body
      %s36 = ssub.s32 %s31, 1
      %s37 = ssub.s32 %s31, 2
      %s44 = sadd.s32 1, %s39
      %p45 = scmp.ge.s32.totalorder %s44, 1
      %s46 = scalar_select %p45, 0, %s44
      %s47 = sadd.s32 1, %s38
      %s48 = scalar_select %p45, %s47, %s38
      %p49 = scmp.ge.s32.totalorder %s48, 2
      %s50 = scalar_select %p49, 0, %s48
      %s51 = ssub.s32 %s38, %s50
      %s52 = ssub.s32 %s39, %s46
      %s53 = sor.u32 %s51, %s52
      %p54 = scmp.eq.s32.totalorder %s53, 0
      %s56 = sadd.s32 %s55, 1
      %s57 = scalar_select %p54, %s55, %s56
      %p60 = pneg %p54
      %p61 = scmp.eq.s32.totalorder %s31, 1
      %p62 = por %p60, %p61
      %p63 = scmp.ne.s32.totalorder %s55, %s58
      %p64 = scmp.eq.s32.totalorder %s31, 0
      %p65 = por %p63, %p64
      %p66 = scmp.ne.s32.totalorder %s55, %s58
      %p67 = scmp.eq.s32.totalorder %s36, 1
      %p68 = por %p66, %p67
      %p69 = scmp.ne.s32.totalorder %s58, %s59
      %p70 = scmp.eq.s32.totalorder %s36, 0
      %p71 = por %p69, %p70
      %p72 = scmp.ne.s32.totalorder %s58, %s59
      %p73 = scmp.eq.s32.totalorder %s37, 1
      %p74 = por %p72, %p73
      %p76 = scmp.ne.s32.totalorder %s59, %s75
      %p77 = scmp.eq.s32.totalorder %s37, 0
      %p78 = por %p76, %p77
      %s79 = ssub.s32 %s38, %s50
      %p80 = scmp.eq.s32.totalorder %s79, 0
      %s82 = sadd.s32 %s81, 1
      %s83 = scalar_select %p80, %s81, %s82
      %p86 = pneg %p80
      %p87 = scmp.eq.s32.totalorder %s31, 1
      %p88 = por %p86, %p87
      %p89 = scmp.ne.s32.totalorder %s81, %s84
      %p90 = scmp.eq.s32.totalorder %s31, 0
      %p91 = por %p89, %p90
      %p92 = scmp.ne.s32.totalorder %s81, %s84
      %p93 = scmp.eq.s32.totalorder %s36, 1
      %p94 = por %p92, %p93
      %p95 = scmp.ne.s32.totalorder %s84, %s85
      %p96 = scmp.eq.s32.totalorder %s36, 0
      %p97 = por %p95, %p96
      %p98 = scmp.ne.s32.totalorder %s84, %s85
      %p99 = scmp.eq.s32.totalorder %s37, 1
      %p100 = por %p98, %p99
      %p102 = scmp.ne.s32.totalorder %s85, %s101
      %p103 = scmp.eq.s32.totalorder %s37, 0
      %p104 = por %p102, %p103
      %s105 = ssub.s32 %s38, %s50
      %p106 = scmp.eq.s32.totalorder %s105, 0
      %s108 = sadd.s32 %s107, 1
      %s109 = scalar_select %p106, %s107, %s108
      %p112 = pneg %p106
      %p113 = scmp.eq.s32.totalorder %s31, 1
      %p114 = por %p112, %p113
      %p115 = scmp.ne.s32.totalorder %s107, %s110
      %p116 = scmp.eq.s32.totalorder %s31, 0
      %p117 = por %p115, %p116
      %p118 = scmp.ne.s32.totalorder %s107, %s110
      %p119 = scmp.eq.s32.totalorder %s36, 1
      %p120 = por %p118, %p119
      %p121 = scmp.ne.s32.totalorder %s110, %s111
      %p122 = scmp.eq.s32.totalorder %s36, 0
      %p123 = por %p121, %p122
      %p124 = scmp.ne.s32.totalorder %s110, %s111
      %p125 = scmp.eq.s32.totalorder %s37, 1
      %p126 = por %p124, %p125
      %p128 = scmp.ne.s32.totalorder %s111, %s127
      %p129 = scmp.eq.s32.totalorder %s37, 0
      %p130 = por %p128, %p129
      %s132 = sadd.s32 %s131, 1
      %p135 = scmp.eq.s32.totalorder %s31, 1
      %p136 = scmp.ne.s32.totalorder %s131, %s133
      %p137 = scmp.eq.s32.totalorder %s31, 0
      %p138 = por %p136, %p137
      %p139 = scmp.ne.s32.totalorder %s131, %s133
      %p140 = scmp.eq.s32.totalorder %s36, 1
      %p141 = por %p139, %p140
      %p142 = scmp.ne.s32.totalorder %s133, %s134
      %p143 = scmp.eq.s32.totalorder %s36, 0
      %p144 = por %p142, %p143
      %p145 = scmp.ne.s32.totalorder %s133, %s134
      %p146 = scmp.eq.s32.totalorder %s37, 1
      %p147 = por %p145, %p146
      %p149 = scmp.ne.s32.totalorder %s134, %s148
      %p150 = scmp.eq.s32.totalorder %s37, 0
      %p151 = por %p149, %p150
      %s153 = sadd.s32 %s152, 1
      %p156 = scmp.eq.s32.totalorder %s31, 1
      %p157 = scmp.ne.s32.totalorder %s152, %s154
      %p158 = scmp.eq.s32.totalorder %s31, 0
      %p159 = por %p157, %p158
      %p160 = scmp.ne.s32.totalorder %s152, %s154
      %p161 = scmp.eq.s32.totalorder %s36, 1
      %p162 = por %p160, %p161
      %p163 = scmp.ne.s32.totalorder %s154, %s155
      %p164 = scmp.eq.s32.totalorder %s36, 0
      %p165 = por %p163, %p164
      %p166 = scmp.ne.s32.totalorder %s154, %s155
      %p167 = scmp.eq.s32.totalorder %s37, 1
      %p168 = por %p166, %p167
      %p170 = scmp.ne.s32.totalorder %s155, %s169
      %p171 = scmp.eq.s32.totalorder %s37, 0
      %p172 = por %p170, %p171
      %s174 = sadd.s32 %s173, 1
      %p177 = scmp.eq.s32.totalorder %s31, 1
      %p178 = scmp.ne.s32.totalorder %s173, %s175
      %p179 = scmp.eq.s32.totalorder %s31, 0
      %p180 = por %p178, %p179
      %p181 = scmp.ne.s32.totalorder %s173, %s175
      %p182 = scmp.eq.s32.totalorder %s36, 1
      %p183 = por %p181, %p182
      %p184 = scmp.ne.s32.totalorder %s175, %s176
      %p185 = scmp.eq.s32.totalorder %s36, 0
      %p186 = por %p184, %p185
      %p187 = scmp.ne.s32.totalorder %s175, %s176
      %p188 = scmp.eq.s32.totalorder %s37, 1
      %p189 = por %p187, %p188
      %p191 = scmp.ne.s32.totalorder %s176, %s190
      %p192 = scmp.eq.s32.totalorder %s37, 0
      %p193 = por %p191, %p192
      %s195 = sadd.s32 %s194, 1
      %p198 = scmp.eq.s32.totalorder %s31, 1
      %p199 = scmp.ne.s32.totalorder %s194, %s196
      %p200 = scmp.eq.s32.totalorder %s31, 0
      %p201 = por %p199, %p200
      %p202 = scmp.ne.s32.totalorder %s194, %s196
      %p203 = scmp.eq.s32.totalorder %s36, 1
      %p204 = por %p202, %p203
      %p205 = scmp.ne.s32.totalorder %s196, %s197
      %p206 = scmp.eq.s32.totalorder %s36, 0
      %p207 = por %p205, %p206
      %p208 = scmp.ne.s32.totalorder %s196, %s197
      %p209 = scmp.eq.s32.totalorder %s37, 1
      %p210 = por %p208, %p209
      %p212 = scmp.ne.s32.totalorder %s197, %s211
      %p213 = scmp.eq.s32.totalorder %s37, 0
      %p214 = por %p212, %p213
      %s216 = sadd.s32 %s215, 1
      %p219 = scmp.eq.s32.totalorder %s31, 1
      %p220 = scmp.ne.s32.totalorder %s215, %s217
      %p221 = scmp.eq.s32.totalorder %s31, 0
      %p222 = por %p220, %p221
      %p223 = scmp.ne.s32.totalorder %s215, %s217
      %p224 = scmp.eq.s32.totalorder %s36, 1
      %p225 = por %p223, %p224
      %p226 = scmp.ne.s32.totalorder %s217, %s218
      %p227 = scmp.eq.s32.totalorder %s36, 0
      %p228 = por %p226, %p227
      %p229 = scmp.ne.s32.totalorder %s217, %s218
      %p230 = scmp.eq.s32.totalorder %s37, 1
      %p231 = por %p229, %p230
      %p233 = scmp.ne.s32.totalorder %s218, %s232
      %p234 = scmp.eq.s32.totalorder %s37, 0
      %p235 = por %p233, %p234
      %s237 = sadd.s32 %s236, 1
      %p240 = scmp.eq.s32.totalorder %s31, 1
      %p241 = scmp.ne.s32.totalorder %s236, %s238
      %p242 = scmp.eq.s32.totalorder %s31, 0
      %p243 = por %p241, %p242
      %p244 = scmp.ne.s32.totalorder %s236, %s238
      %p245 = scmp.eq.s32.totalorder %s36, 1
      %p246 = por %p244, %p245
      %p247 = scmp.ne.s32.totalorder %s238, %s239
      %p248 = scmp.eq.s32.totalorder %s36, 0
      %p249 = por %p247, %p248
      %p250 = scmp.ne.s32.totalorder %s238, %s239
      %p251 = scmp.eq.s32.totalorder %s37, 1
      %p252 = por %p250, %p251
      %p254 = scmp.ne.s32.totalorder %s239, %s253
      %p255 = scmp.eq.s32.totalorder %s37, 0
      %p256 = por %p254, %p255
      %s257 = ssub.s32 %s38, %s50
      %s258 = ssub.s32 %s39, %s46
      %s259 = sor.u32 %s257, %s258
      %p260 = scmp.eq.s32.totalorder %s259, 0
      %s262 = sadd.s32 %s261, 1
      %s263 = scalar_select %p260, %s261, %s262
      %p266 = pneg %p260
      %p267 = scmp.eq.s32.totalorder %s31, 1
      %p268 = por %p266, %p267
      %p269 = scmp.ne.s32.totalorder %s261, %s264
      %p270 = scmp.eq.s32.totalorder %s31, 0
      %p271 = por %p269, %p270
      %p272 = scmp.ne.s32.totalorder %s261, %s264
      %p273 = scmp.eq.s32.totalorder %s36, 1
      %p274 = por %p272, %p273
      %p275 = scmp.ne.s32.totalorder %s264, %s265
      %p276 = scmp.eq.s32.totalorder %s36, 0
      %p277 = por %p275, %p276
      %p278 = scmp.ne.s32.totalorder %s264, %s265
      %p279 = scmp.eq.s32.totalorder %s37, 1
      %p280 = por %p278, %p279
      %p282 = scmp.ne.s32.totalorder %s265, %s281
      %p283 = scmp.eq.s32.totalorder %s37, 0
      %p284 = por %p282, %p283
      %s285 = ssub.s32 %s38, %s50
      %s286 = ssub.s32 %s39, %s46
      %s287 = sor.u32 %s285, %s286
      %p288 = scmp.eq.s32.totalorder %s287, 0
      %s290 = sadd.s32 %s289, 1
      %s291 = scalar_select %p288, %s289, %s290
      %p294 = pneg %p288
      %p295 = scmp.eq.s32.totalorder %s31, 1
      %p296 = por %p294, %p295
      %p297 = scmp.ne.s32.totalorder %s289, %s292
      %p298 = scmp.eq.s32.totalorder %s31, 0
      %p299 = por %p297, %p298
      %p300 = scmp.ne.s32.totalorder %s289, %s292
      %p301 = scmp.eq.s32.totalorder %s36, 1
      %p302 = por %p300, %p301
      %p303 = scmp.ne.s32.totalorder %s292, %s293
      %p304 = scmp.eq.s32.totalorder %s36, 0
      %p305 = por %p303, %p304
      %p306 = scmp.ne.s32.totalorder %s292, %s293
      %p307 = scmp.eq.s32.totalorder %s37, 1
      %p308 = por %p306, %p307
      %p310 = scmp.ne.s32.totalorder %s293, %s309
      %p311 = scmp.eq.s32.totalorder %s37, 0
      %p312 = por %p310, %p311
      %p313 = scmp.le.s32.totalorder 1, %s31
      %p314 = scmp.lt.s32.totalorder %s31, 3
      %p315 = pnand %p313, %p314
      %p316 = pneg %p315
      // Predicated region
      $region9: #{tpu_custom_call.1} parent=5 // pred_check
        _
      $region10: #{tpu_custom_call.1} parent=5 // pred_check_branch
        %318 = sbr.rel (%p315) target = $region12
      $region11: #{tpu_custom_call.1} parent=5 // pred_region
        %s319 = ssub.s32 %s31, 1
        // Predicated region
        $region13: #{tpu_custom_call.1} parent=11 // pred_check
          %p320 = pneg %p144
        $region14: #{tpu_custom_call.1} parent=11 // pred_check_branch
          %322 = sbr.rel (%p320) target = $region16
        $region15: #{tpu_custom_call.1} parent=11 // pred_region
          %s324 = ssub.s32 512, 512
          %325 = vsyncadd [#allocation9], %s324
          %s326 = sshll.u32 [#allocation8], 4
          %s327 = int_to_ptr.vmem [resolvable:$true] %s326
          %332 = dma.hbm_to_vmem [thread:$0]  %s3, 512, %s327, [#allocation9], 128, 128, 8
        $region16: #{tpu_custom_call.1} parent=11 // pred_fallthru
          _
        // Predicated region
        $region17: #{tpu_custom_call.1} parent=11 // pred_check
          %p333 = pneg %p165
        $region18: #{tpu_custom_call.1} parent=11 // pred_check_branch
          %335 = sbr.rel (%p333) target = $region20
        $region19: #{tpu_custom_call.1} parent=11 // pred_region
          %s337 = ssub.s32 512, 512
          %338 = vsyncadd [#allocation9], %s337
          %s339 = sshll.u32 [#allocation10], 4
          %s340 = int_to_ptr.vmem [resolvable:$true] %s339
          %345 = dma.hbm_to_vmem [thread:$0]  %s4, 512, %s340, [#allocation9], 128, 128, 8
        $region20: #{tpu_custom_call.1} parent=11 // pred_fallthru
          _
        // Predicated region
        $region21: #{tpu_custom_call.1} parent=11 // pred_check
          %p346 = pneg %p186
        $region22: #{tpu_custom_call.1} parent=11 // pred_check_branch
          %348 = sbr.rel (%p346) target = $region24
        $region23: #{tpu_custom_call.1} parent=11 // pred_region
          %s350 = ssub.s32 512, 512
          %351 = vsyncadd [#allocation12], %s350
          %s352 = sshll.u32 [#allocation11], 4
          %s353 = int_to_ptr.vmem [resolvable:$true] %s352
          %358 = dma.hbm_to_vmem [thread:$0]  %s5, 512, %s353, [#allocation12], 128, 128, 8
        $region24: #{tpu_custom_call.1} parent=11 // pred_fallthru
          _
        // Predicated region
        $region25: #{tpu_custom_call.1} parent=11 // pred_check
          %p359 = pneg %p207
        $region26: #{tpu_custom_call.1} parent=11 // pred_check_branch
          %361 = sbr.rel (%p359) target = $region28
        $region27: #{tpu_custom_call.1} parent=11 // pred_region
          %s363 = ssub.s32 512, 512
          %364 = vsyncadd [#allocation12], %s363
          %s365 = sshll.u32 [#allocation13], 4
          %s366 = int_to_ptr.vmem [resolvable:$true] %s365
          %371 = dma.hbm_to_vmem [thread:$0]  %s6, 512, %s366, [#allocation12], 128, 128, 8
        $region28: #{tpu_custom_call.1} parent=11 // pred_fallthru
          _
        // Predicated region
        $region29: #{tpu_custom_call.1} parent=11 // pred_check
          %p372 = pneg %p228
        $region30: #{tpu_custom_call.1} parent=11 // pred_check_branch
          %374 = sbr.rel (%p372) target = $region32
        $region31: #{tpu_custom_call.1} parent=11 // pred_region
          _
        $region32: #{tpu_custom_call.1} parent=11 // pred_fallthru
          _
        // Predicated region
        $region33: #{tpu_custom_call.1} parent=11 // pred_check
          %p375 = pneg %p249
        $region34: #{tpu_custom_call.1} parent=11 // pred_check_branch
          %377 = sbr.rel (%p375) target = $region36
        $region35: #{tpu_custom_call.1} parent=11 // pred_region
          _
        $region36: #{tpu_custom_call.1} parent=11 // pred_fallthru
          _
      $region12: #{tpu_custom_call.1} parent=5 // pred_fallthru
        _
      %p378 = scmp.lt.s32.totalorder %s31, 2
      // Predicated region
      $region37: #{tpu_custom_call.1} parent=5 // pred_check
        %p379 = pneg %p378
      $region38: #{tpu_custom_call.1} parent=5 // pred_check_branch
        %381 = sbr.rel (%p379) target = $region40
      $region39: #{tpu_custom_call.1} parent=5 // pred_region
        // Predicated region
        $region41: #{tpu_custom_call.1} parent=39 // pred_check
          %p382 = pneg %p65
        $region42: #{tpu_custom_call.1} parent=39 // pred_check_branch
          %384 = sbr.rel (%p382) target = $region44
        $region43: #{tpu_custom_call.1} parent=39 // pred_region
          %s385 = sand.u32 %s55, 1
          %s386 = scalar_lea.sflag [#allocation3], %s385
          %s387 = sand.u32 %s55, 1
          %s388 = smul.addr %s387, 8
          %s389 = scalar_lea.vmem [#allocation2], %s388
          %s391 = ssub.s32 128, 128
          %392 = vsyncadd %s386, %s391
          %s393 = sadd.s32 %s39, %s38
          %s394 = smul.addr %s393, 128
          %s395 = scalar_lea.hbm %s0, %s394
          %s397 = sshll.u32 %s389, 4
          %s398 = int_to_ptr.vmem [resolvable:$true] %s397
          %400 = dma.hbm_to_vmem [thread:$0]  %s395, 128, %s398, %s386
        $region44: #{tpu_custom_call.1} parent=39 // pred_fallthru
          _
        // Predicated region
        $region45: #{tpu_custom_call.1} parent=39 // pred_check
          %p401 = pneg %p91
        $region46: #{tpu_custom_call.1} parent=39 // pred_check_branch
          %403 = sbr.rel (%p401) target = $region48
        $region47: #{tpu_custom_call.1} parent=39 // pred_region
          %s404 = sand.u32 %s31, 1
          %s405 = scalar_lea.sflag [#allocation6], %s404
          %s406 = sand.u32 %s81, 1
          %s407 = smul.addr %s406, 8
          %s408 = scalar_lea.vmem [#allocation5], %s407
          %s410 = ssub.s32 128, 128
          %411 = vsyncadd %s405, %s410
          %s412 = smul.addr %s38, 128
          %s413 = scalar_lea.hbm %s1, %s412
          %s415 = sshll.u32 %s408, 4
          %s416 = int_to_ptr.vmem [resolvable:$true] %s415
          %418 = dma.hbm_to_vmem [thread:$0]  %s413, 128, %s416, %s405
        $region48: #{tpu_custom_call.1} parent=39 // pred_fallthru
          _
        // Predicated region
        $region49: #{tpu_custom_call.1} parent=39 // pred_check
          %p419 = pneg %p117
        $region50: #{tpu_custom_call.1} parent=39 // pred_check_branch
          %421 = sbr.rel (%p419) target = $region52
        $region51: #{tpu_custom_call.1} parent=39 // pred_region
          %s422 = sand.u32 %s31, 1
          %s423 = scalar_lea.sflag [#allocation6], %s422
          %s424 = sand.u32 %s107, 1
          %s425 = smul.addr %s424, 8
          %s426 = scalar_lea.vmem [#allocation7], %s425
          %s428 = ssub.s32 128, 128
          %429 = vsyncadd %s423, %s428
          %s430 = smul.addr %s38, 128
          %s431 = scalar_lea.hbm %s2, %s430
          %s433 = sshll.u32 %s426, 4
          %s434 = int_to_ptr.vmem [resolvable:$true] %s433
          %436 = dma.hbm_to_vmem [thread:$0]  %s431, 128, %s434, %s423
        $region52: #{tpu_custom_call.1} parent=39 // pred_fallthru
          _
      $region40: #{tpu_custom_call.1} parent=5 // pred_fallthru
        _
      %p437 = scmp.le.s32.totalorder 1, %s31
      %p438 = scmp.lt.s32.totalorder %s31, 3
      %p439 = pnand %p437, %p438
      %p440 = pneg %p439
      // Predicated region
      $region53: #{tpu_custom_call.1} parent=5 // pred_check
        _
      $region54: #{tpu_custom_call.1} parent=5 // pred_check_branch
        %442 = sbr.rel (%p439) target = $region56
      $region55: #{tpu_custom_call.1} parent=5 // pred_region
        %s443 = ssub.s32 %s31, 1
        %s444 = sand.u32 %s58, 1
        %s445 = scalar_lea.sflag [#allocation3], %s444
        %s446 = sand.u32 %s58, 1
        %s447 = smul.addr %s446, 8
        %s448 = scalar_lea.vmem [#allocation2], %s447
        // Predicated region
        $region57: #{tpu_custom_call.1} parent=55 // pred_check
          %p449 = pneg %p71
        $region58: #{tpu_custom_call.1} parent=55 // pred_check_branch
          %451 = sbr.rel (%p449) target = $region60
        $region59: #{tpu_custom_call.1} parent=55 // pred_region
          %452 = dma.done %s445, 128
        $region60: #{tpu_custom_call.1} parent=55 // pred_fallthru
          _
        %s453 = sand.u32 %s36, 1
        %s454 = scalar_lea.sflag [#allocation6], %s453
        %s455 = sand.u32 %s84, 1
        %s456 = smul.addr %s455, 8
        %s457 = scalar_lea.vmem [#allocation5], %s456
        // Predicated region
        $region61: #{tpu_custom_call.1} parent=55 // pred_check
          %p458 = pneg %p97
        $region62: #{tpu_custom_call.1} parent=55 // pred_check_branch
          %460 = sbr.rel (%p458) target = $region64
        $region63: #{tpu_custom_call.1} parent=55 // pred_region
          %461 = dma.done %s454, 128
        $region64: #{tpu_custom_call.1} parent=55 // pred_fallthru
          _
        %s462 = sand.u32 %s36, 1
        %s463 = scalar_lea.sflag [#allocation6], %s462
        %s464 = sand.u32 %s110, 1
        %s465 = smul.addr %s464, 8
        %s466 = scalar_lea.vmem [#allocation7], %s465
        // Predicated region
        $region65: #{tpu_custom_call.1} parent=55 // pred_check
          %p467 = pneg %p123
        $region66: #{tpu_custom_call.1} parent=55 // pred_check_branch
          %469 = sbr.rel (%p467) target = $region68
        $region67: #{tpu_custom_call.1} parent=55 // pred_region
          %470 = dma.done %s463, 128
        $region68: #{tpu_custom_call.1} parent=55 // pred_fallthru
          _
        // Predicated region
        $region69: #{tpu_custom_call.1} parent=55 // pred_check
          %p471 = pneg %p144
        $region70: #{tpu_custom_call.1} parent=55 // pred_check_branch
          %473 = sbr.rel (%p471) target = $region72
        $region71: #{tpu_custom_call.1} parent=55 // pred_region
          %474 = dma.done [#allocation9], 512
        $region72: #{tpu_custom_call.1} parent=55 // pred_fallthru
          _
        // Predicated region
        $region73: #{tpu_custom_call.1} parent=55 // pred_check
          %p475 = pneg %p165
        $region74: #{tpu_custom_call.1} parent=55 // pred_check_branch
          %477 = sbr.rel (%p475) target = $region76
        $region75: #{tpu_custom_call.1} parent=55 // pred_region
          %478 = dma.done [#allocation9], 512
        $region76: #{tpu_custom_call.1} parent=55 // pred_fallthru
          _
        // Predicated region
        $region77: #{tpu_custom_call.1} parent=55 // pred_check
          %p479 = pneg %p186
        $region78: #{tpu_custom_call.1} parent=55 // pred_check_branch
          %481 = sbr.rel (%p479) target = $region80
        $region79: #{tpu_custom_call.1} parent=55 // pred_region
          %482 = dma.done [#allocation12], 512
        $region80: #{tpu_custom_call.1} parent=55 // pred_fallthru
          _
        // Predicated region
        $region81: #{tpu_custom_call.1} parent=55 // pred_check
          %p483 = pneg %p207
        $region82: #{tpu_custom_call.1} parent=55 // pred_check_branch
          %485 = sbr.rel (%p483) target = $region84
        $region83: #{tpu_custom_call.1} parent=55 // pred_region
          %486 = dma.done [#allocation12], 512
        $region84: #{tpu_custom_call.1} parent=55 // pred_fallthru
          _
        %s487 = sand.u32 %s58, 1
        %s488 = scalar_lea.sflag [#allocation3], %s487
        %s489 = sand.u32 %s58, 1
        %s490 = smul.addr %s489, 8
        %s491 = scalar_lea.vmem [#allocation2], %s490
        %p492 = pneg %p71
        %p493 = pneg %p68
        %s494 = sand.u32 %s36, 1
        %s495 = scalar_lea.sflag [#allocation6], %s494
        %s496 = sand.u32 %s84, 1
        %s497 = smul.addr %s496, 8
        %s498 = scalar_lea.vmem [#allocation5], %s497
        %p499 = pneg %p97
        %p500 = pneg %p94
        %s501 = sand.u32 %s36, 1
        %s502 = scalar_lea.sflag [#allocation6], %s501
        %s503 = sand.u32 %s110, 1
        %s504 = smul.addr %s503, 8
        %s505 = scalar_lea.vmem [#allocation7], %s504
        %p506 = pneg %p123
        %p507 = pneg %p120
        %p508 = pneg %p144
        %p509 = pneg %p141
        %p510 = pneg %p165
        %p511 = pneg %p162
        %p512 = pneg %p186
        %p513 = pneg %p183
        %p514 = pneg %p207
        %p515 = pneg %p204
        %p516 = pneg %p228
        %p517 = pneg %p225
        %p518 = pneg %p249
        %p519 = pneg %p246
        %p520 = pneg %p277
        %p521 = pneg %p274
        %s522 = sand.u32 %s264, 1
        %s523 = scalar_lea.sflag [#allocation4], %s522
        %s524 = sand.u32 %s264, 1
        %s525 = smul.addr %s524, 8
        %s526 = scalar_lea.vmem [#allocation14], %s525
        %p527 = pneg %p305
        %p528 = pneg %p302
        %s529 = sand.u32 %s292, 1
        %s530 = scalar_lea.sflag [#allocation16], %s529
        %s531 = sand.u32 %s292, 1
        %s532 = smul.addr %s531, 32
        %s533 = scalar_lea.vmem [#allocation15], %s532
        %v534 = vld [vmem:[%s448] sm:$0xff]
        %v535 = vld [vmem:[%s457] sm:$0xff]
        %v536 = vld [vmem:[%s466] sm:$0xff]
        %v537 = vld [vmem:[#allocation8] sm:$0xff]
        %v538 = vld [vmem:[#allocation8 + $0x8] sm:$0xff]
        %v539 = vld [vmem:[#allocation8 + $0x10] sm:$0xff]
        %v540 = vld [vmem:[#allocation8 + $0x18] sm:$0xff]
        %vm541 = vcmask 261120
        %v543 = vsel %vm541, %v534, 0
        %545 = vmatprep.subr.mxu0 0.0
        %546 = vmatpush1.msra.mxu0 %v537
        %547 = vmatprep.subr.mxu0 0.0
        %548 = vmatpush1.msra.mxu0 %v538
        %549 = vmatprep.subr.mxu0 0.0
        %550 = vmatpush1.msra.mxu0 %v539
        %551 = vmatprep.subr.mxu0 0.0
        %552 = vmatpush1.msra.mxu0 %v540
        %553 = vmatprep.subr.mxu0 0.0
        %554 = vmatpush1.msra.mxu0 0.0
        %555 = vmatprep.subr.mxu0 0.0
        %556 = vmatpush1.msra.mxu0 0.0
        %557 = vmatprep.subr.mxu0 0.0
        %558 = vmatpush1.msra.mxu0 0.0
        %559 = vmatprep.subr.mxu0 0.0
        %560 = vmatpush1.msra.mxu0 0.0
        %561 = vmatprep.subr.mxu0 0.0
        %562 = vmatpush1.msra.mxu0 0.0
        %563 = vmatprep.subr.mxu0 0.0
        %564 = vmatpush1.msra.mxu0 0.0
        %565 = vmatprep.subr.mxu0 0.0
        %566 = vmatpush1.msra.mxu0 0.0
        %567 = vmatprep.subr.mxu0 0.0
        %568 = vmatpush1.msra.mxu0 0.0
        %569 = vmatprep.subr.mxu0 0.0
        %570 = vmatpush1.msra.mxu0 0.0
        %571 = vmatprep.subr.mxu0 0.0
        %572 = vmatpush1.msra.mxu0 0.0
        %573 = vmatprep.subr.mxu0 0.0
        %574 = vmatpush1.msra.mxu0 0.0
        %575 = vmatprep.subr.mxu0 0.0
        %576 = vmatpush1.msra.mxu0 0.0
        %577 = vmatprep.subr.mxu0 0.0
        %578 = vmatpush1.msra.mxu0 0.0
        %579 = vmatprep.subr.mxu0 0.0
        %580 = vmatpush1.msra.mxu0 0.0
        %581 = vmatprep.subr.mxu0 0.0
        %582 = vmatpush1.msra.mxu0 0.0
        %583 = vmatprep.subr.mxu0 0.0
        %584 = vmatpush1.msra.mxu0 0.0
        %585 = vmatprep.subr.mxu0 0.0
        %586 = vmatpush1.msra.mxu0 0.0
        %587 = vmatprep.subr.mxu0 0.0
        %588 = vmatpush1.msra.mxu0 0.0
        %589 = vmatprep.subr.mxu0 0.0
        %590 = vmatpush1.msra.mxu0 0.0
        %591 = vmatprep.subr.mxu0 0.0
        %592 = vmatpush1.msra.mxu0 0.0
        %593 = vmatprep.subr.mxu0 0.0
        %594 = vmatpush1.msra.mxu0 0.0
        %595 = vmatprep.subr.mxu0 0.0
        %596 = vmatpush1.msra.mxu0 0.0
        %597 = vmatprep.subr.mxu0 0.0
        %598 = vmatpush1.msra.mxu0 0.0
        %599 = vmatprep.subr.mxu0 0.0
        %600 = vmatpush1.msra.mxu0 0.0
        %601 = vmatprep.subr.mxu0 0.0
        %602 = vmatpush1.msra.mxu0 0.0
        %603 = vmatprep.subr.mxu0 0.0
        %604 = vmatpush1.msra.mxu0 0.0
        %605 = vmatprep.subr.mxu0 0.0
        %606 = vmatpush1.msra.mxu0 0.0
        %607 = vmatprep.subr.mxu0 0.0
        %608 = vmatpush1.msra.mxu0 0.0
        %609 = vmatprep.mubr.f32.mxu0 0.0
        %610 = vmatmul.mubr.f32.gmra.mrb[0].mxu0 %v543
        %v611 = vpop.f32.mrb[0].mxu0
        %v612 = vadd.f32 0.0, %v611
        %v613 = vpop.f32.mrb[0].mxu0
        %614 = vdwg.mxu0
        %v615 = vld [vmem:[#allocation10] sm:$0xff]
        %v616 = vld [vmem:[#allocation10 + $0x8] sm:$0xff]
        %v617 = vld [vmem:[#allocation10 + $0x10] sm:$0xff]
        %v618 = vld [vmem:[#allocation10 + $0x18] sm:$0xff]
        %v620 = vsel %vm541, %v535, 0
        %622 = vmatprep.subr.mxu0 0.0
        %623 = vmatpush1.msra.mxu0 %v615
        %624 = vmatprep.subr.mxu0 0.0
        %625 = vmatpush1.msra.mxu0 %v616
        %626 = vmatprep.subr.mxu0 0.0
        %627 = vmatpush1.msra.mxu0 %v617
        %628 = vmatprep.subr.mxu0 0.0
        %629 = vmatpush1.msra.mxu0 %v618
        %630 = vmatprep.subr.mxu0 0.0
        %631 = vmatpush1.msra.mxu0 0.0
        %632 = vmatprep.subr.mxu0 0.0
        %633 = vmatpush1.msra.mxu0 0.0
        %634 = vmatprep.subr.mxu0 0.0
        %635 = vmatpush1.msra.mxu0 0.0
        %636 = vmatprep.subr.mxu0 0.0
        %637 = vmatpush1.msra.mxu0 0.0
        %638 = vmatprep.subr.mxu0 0.0
        %639 = vmatpush1.msra.mxu0 0.0
        %640 = vmatprep.subr.mxu0 0.0
        %641 = vmatpush1.msra.mxu0 0.0
        %642 = vmatprep.subr.mxu0 0.0
        %643 = vmatpush1.msra.mxu0 0.0
        %644 = vmatprep.subr.mxu0 0.0
        %645 = vmatpush1.msra.mxu0 0.0
        %646 = vmatprep.subr.mxu0 0.0
        %647 = vmatpush1.msra.mxu0 0.0
        %648 = vmatprep.subr.mxu0 0.0
        %649 = vmatpush1.msra.mxu0 0.0
        %650 = vmatprep.subr.mxu0 0.0
        %651 = vmatpush1.msra.mxu0 0.0
        %652 = vmatprep.subr.mxu0 0.0
        %653 = vmatpush1.msra.mxu0 0.0
        %654 = vmatprep.subr.mxu0 0.0
        %655 = vmatpush1.msra.mxu0 0.0
        %656 = vmatprep.subr.mxu0 0.0
        %657 = vmatpush1.msra.mxu0 0.0
        %658 = vmatprep.subr.mxu0 0.0
        %659 = vmatpush1.msra.mxu0 0.0
        %660 = vmatprep.subr.mxu0 0.0
        %661 = vmatpush1.msra.mxu0 0.0
        %662 = vmatprep.subr.mxu0 0.0
        %663 = vmatpush1.msra.mxu0 0.0
        %664 = vmatprep.subr.mxu0 0.0
        %665 = vmatpush1.msra.mxu0 0.0
        %666 = vmatprep.subr.mxu0 0.0
        %667 = vmatpush1.msra.mxu0 0.0
        %668 = vmatprep.subr.mxu0 0.0
        %669 = vmatpush1.msra.mxu0 0.0
        %670 = vmatprep.subr.mxu0 0.0
        %671 = vmatpush1.msra.mxu0 0.0
        %672 = vmatprep.subr.mxu0 0.0
        %673 = vmatpush1.msra.mxu0 0.0
        %674 = vmatprep.subr.mxu0 0.0
        %675 = vmatpush1.msra.mxu0 0.0
        %676 = vmatprep.subr.mxu0 0.0
        %677 = vmatpush1.msra.mxu0 0.0
        %678 = vmatprep.subr.mxu0 0.0
        %679 = vmatpush1.msra.mxu0 0.0
        %680 = vmatprep.subr.mxu0 0.0
        %681 = vmatpush1.msra.mxu0 0.0
        %682 = vmatprep.subr.mxu0 0.0
        %683 = vmatpush1.msra.mxu0 0.0
        %684 = vmatprep.subr.mxu0 0.0
        %685 = vmatpush1.msra.mxu0 0.0
        %686 = vmatprep.mubr.f32.mxu0 0.0
        %687 = vmatmul.mubr.f32.gmra.mrb[0].mxu0 %v620
        %v688 = vpop.f32.mrb[0].mxu0
        %v689 = vadd.f32 0.0, %v688
        %v690 = vpop.f32.mrb[0].mxu0
        %691 = vdwg.mxu0
        %v692 = vld [vmem:[#allocation11] sm:$0xff]
        %v693 = vld [vmem:[#allocation11 + $0x8] sm:$0xff]
        %v694 = vld [vmem:[#allocation11 + $0x10] sm:$0xff]
        %v695 = vld [vmem:[#allocation11 + $0x18] sm:$0xff]
        %v697 = vsel %vm541, %v536, 0
        %699 = vmatprep.subr.mxu0 0.0
        %700 = vmatpush1.msra.mxu0 %v692
        %701 = vmatprep.subr.mxu0 0.0
        %702 = vmatpush1.msra.mxu0 %v693
        %703 = vmatprep.subr.mxu0 0.0
        %704 = vmatpush1.msra.mxu0 %v694
        %705 = vmatprep.subr.mxu0 0.0
        %706 = vmatpush1.msra.mxu0 %v695
        %707 = vmatprep.subr.mxu0 0.0
        %708 = vmatpush1.msra.mxu0 0.0
        %709 = vmatprep.subr.mxu0 0.0
        %710 = vmatpush1.msra.mxu0 0.0
        %711 = vmatprep.subr.mxu0 0.0
        %712 = vmatpush1.msra.mxu0 0.0
        %713 = vmatprep.subr.mxu0 0.0
        %714 = vmatpush1.msra.mxu0 0.0
        %715 = vmatprep.subr.mxu0 0.0
        %716 = vmatpush1.msra.mxu0 0.0
        %717 = vmatprep.subr.mxu0 0.0
        %718 = vmatpush1.msra.mxu0 0.0
        %719 = vmatprep.subr.mxu0 0.0
        %720 = vmatpush1.msra.mxu0 0.0
        %721 = vmatprep.subr.mxu0 0.0
        %722 = vmatpush1.msra.mxu0 0.0
        %723 = vmatprep.subr.mxu0 0.0
        %724 = vmatpush1.msra.mxu0 0.0
        %725 = vmatprep.subr.mxu0 0.0
        %726 = vmatpush1.msra.mxu0 0.0
        %727 = vmatprep.subr.mxu0 0.0
        %728 = vmatpush1.msra.mxu0 0.0
        %729 = vmatprep.subr.mxu0 0.0
        %730 = vmatpush1.msra.mxu0 0.0
        %731 = vmatprep.subr.mxu0 0.0
        %732 = vmatpush1.msra.mxu0 0.0
        %733 = vmatprep.subr.mxu0 0.0
        %734 = vmatpush1.msra.mxu0 0.0
        %735 = vmatprep.subr.mxu0 0.0
        %736 = vmatpush1.msra.mxu0 0.0
        %737 = vmatprep.subr.mxu0 0.0
        %738 = vmatpush1.msra.mxu0 0.0
        %739 = vmatprep.subr.mxu0 0.0
        %740 = vmatpush1.msra.mxu0 0.0
        %741 = vmatprep.subr.mxu0 0.0
        %742 = vmatpush1.msra.mxu0 0.0
        %743 = vmatprep.subr.mxu0 0.0
        %744 = vmatpush1.msra.mxu0 0.0
        %745 = vmatprep.subr.mxu0 0.0
        %746 = vmatpush1.msra.mxu0 0.0
        %747 = vmatprep.subr.mxu0 0.0
        %748 = vmatpush1.msra.mxu0 0.0
        %749 = vmatprep.subr.mxu0 0.0
        %750 = vmatpush1.msra.mxu0 0.0
        %751 = vmatprep.subr.mxu0 0.0
        %752 = vmatpush1.msra.mxu0 0.0
        %753 = vmatprep.subr.mxu0 0.0
        %754 = vmatpush1.msra.mxu0 0.0
        %755 = vmatprep.subr.mxu0 0.0
        %756 = vmatpush1.msra.mxu0 0.0
        %757 = vmatprep.subr.mxu0 0.0
        %758 = vmatpush1.msra.mxu0 0.0
        %759 = vmatprep.subr.mxu0 0.0
        %760 = vmatpush1.msra.mxu0 0.0
        %761 = vmatprep.subr.mxu0 0.0
        %762 = vmatpush1.msra.mxu0 0.0
        %763 = vmatprep.mubr.f32.mxu0 0.0
        %764 = vmatmul.mubr.f32.gmra.mrb[0].mxu0 %v697
        %v765 = vpop.f32.mrb[0].mxu0
        %v766 = vadd.f32 0.0, %v765
        %v767 = vpop.f32.mrb[0].mxu0
        %768 = vdwg.mxu0
        %770 = vrot.lane.b32.xlu0 %v612, 120
        %v771 = vpop.permute.xlu0 %770
        %773 = vrot.lane.b32.xlu0 %v612, 112
        %v774 = vpop.permute.xlu0 %773
        %776 = vrot.lane.b32.xlu0 %v612, 104
        %v777 = vpop.permute.xlu0 %776
        %v779 = vcombine.low %v612, %v774
        %v780 = vcombine.high %v612, %v774
        %v782 = vunpack.c.l.s4 1983009808
        %v783 = vunpack.c.0.s8 %v782
        %v784 = vlaneseq
        %v785 = vshrl.u32 %v784, 7
        %v786 = vsub.s32 %v783, %v785
        %v787 = vrot.slane %v779, %v786
        %v789 = vunpack.c.l.s4 1983009808
        %v790 = vunpack.c.0.s8 %v789
        %v791 = vlaneseq
        %v792 = vshrl.u32 %v791, 7
        %v793 = vsub.s32 %v790, %v792
        %v794 = vrot.slane %v780, %v793
        %v795 = vcombine.low %v771, %v777
        %v796 = vcombine.high %v771, %v777
        %v798 = vunpack.c.l.s4 1983009808
        %v799 = vunpack.c.0.s8 %v798
        %v800 = vlaneseq
        %v801 = vshrl.u32 %v800, 7
        %v802 = vsub.s32 %v799, %v801
        %v803 = vrot.slane %v795, %v802
        %v805 = vunpack.c.l.s4 1983009808
        %v806 = vunpack.c.0.s8 %v805
        %v807 = vlaneseq
        %v808 = vshrl.u32 %v807, 7
        %v809 = vsub.s32 %v806, %v808
        %v810 = vrot.slane %v796, %v809
        %v811 = vcombine.low %v787, %v803
        %v812 = vcombine.high %v787, %v803
        %v814 = vunpack.c.l.s4 1934713408
        %v815 = vunpack.c.0.s8 %v814
        %v816 = vlaneseq
        %v817 = vshrl.u32 %v816, 7
        %v818 = vsub.s32 %v815, %v817
        %v819 = vrot.slane %v811, %v818
        %v821 = vunpack.c.l.s4 1934713408
        %v822 = vunpack.c.0.s8 %v821
        %v823 = vlaneseq
        %v824 = vshrl.u32 %v823, 7
        %v825 = vsub.s32 %v822, %v824
        %v826 = vrot.slane %v812, %v825
        %v827 = vcombine.low %v794, %v810
        %v828 = vcombine.high %v794, %v810
        %v830 = vunpack.c.l.s4 1934713408
        %v831 = vunpack.c.0.s8 %v830
        %v832 = vlaneseq
        %v833 = vshrl.u32 %v832, 7
        %v834 = vsub.s32 %v831, %v833
        %v835 = vrot.slane %v827, %v834
        %v837 = vunpack.c.l.s4 1934713408
        %v838 = vunpack.c.0.s8 %v837
        %v839 = vlaneseq
        %v840 = vshrl.u32 %v839, 7
        %v841 = vsub.s32 %v838, %v840
        %v842 = vrot.slane %v828, %v841
        %v843 = vcombine.high %v819, 0.0
        %v844 = vcombine.high %v826, 0.0
        %v845 = vcombine.high %v835, 0.0
        %v846 = vcombine.high %v842, 0.0
        %v847 = vcombine.low %v819, %v826
        %v849 = vunpack.c.l.s4 1983009808
        %v850 = vunpack.c.0.s8 %v849
        %v851 = vlaneseq
        %v852 = vshrl.u32 %v851, 7
        %v853 = vsub.s32 %v850, %v852
        %v854 = vrot.slane %v847, %v853
        %v855 = vcombine.low %v843, %v844
        %v857 = vunpack.c.l.s4 1983009808
        %v858 = vunpack.c.0.s8 %v857
        %v859 = vlaneseq
        %v860 = vshrl.u32 %v859, 7
        %v861 = vsub.s32 %v858, %v860
        %v862 = vrot.slane %v855, %v861
        %v863 = vcombine.low %v835, %v842
        %v865 = vunpack.c.l.s4 1983009808
        %v866 = vunpack.c.0.s8 %v865
        %v867 = vlaneseq
        %v868 = vshrl.u32 %v867, 7
        %v869 = vsub.s32 %v866, %v868
        %v870 = vrot.slane %v863, %v869
        %v871 = vcombine.low %v845, %v846
        %v873 = vunpack.c.l.s4 1983009808
        %v874 = vunpack.c.0.s8 %v873
        %v875 = vlaneseq
        %v876 = vshrl.u32 %v875, 7
        %v877 = vsub.s32 %v874, %v876
        %v878 = vrot.slane %v871, %v877
        %v879 = vcombine.low %v854, %v862
        %v880 = vcombine.high %v854, %v862
        %v882 = vunpack.c.l.s4 1934713408
        %v883 = vunpack.c.0.s8 %v882
        %v884 = vlaneseq
        %v885 = vshrl.u32 %v884, 7
        %v886 = vsub.s32 %v883, %v885
        %v887 = vrot.slane %v879, %v886
        %v889 = vunpack.c.l.s4 1934713408
        %v890 = vunpack.c.0.s8 %v889
        %v891 = vlaneseq
        %v892 = vshrl.u32 %v891, 7
        %v893 = vsub.s32 %v890, %v892
        %v894 = vrot.slane %v880, %v893
        %v895 = vcombine.low %v870, %v878
        %v896 = vcombine.high %v870, %v878
        %v898 = vunpack.c.l.s4 1934713408
        %v899 = vunpack.c.0.s8 %v898
        %v900 = vlaneseq
        %v901 = vshrl.u32 %v900, 7
        %v902 = vsub.s32 %v899, %v901
        %v903 = vrot.slane %v895, %v902
        %v905 = vunpack.c.l.s4 1934713408
        %v906 = vunpack.c.0.s8 %v905
        %v907 = vlaneseq
        %v908 = vshrl.u32 %v907, 7
        %v909 = vsub.s32 %v906, %v908
        %v910 = vrot.slane %v896, %v909
        %v911 = vcombine.low %v887, %v903
        %v912 = vcombine.high %v887, %v903
        %v913 = vcombine.low %v894, %v910
        %v914 = vcombine.high %v894, %v910
        %916 = vrot.lane.b32.xlu0 %v689, 120
        %v917 = vpop.permute.xlu0 %916
        %919 = vrot.lane.b32.xlu0 %v689, 112
        %v920 = vpop.permute.xlu0 %919
        %922 = vrot.lane.b32.xlu0 %v689, 104
        %v923 = vpop.permute.xlu0 %922
        %v925 = vcombine.low %v689, %v920
        %v926 = vcombine.high %v689, %v920
        %v928 = vunpack.c.l.s4 1983009808
        %v929 = vunpack.c.0.s8 %v928
        %v930 = vlaneseq
        %v931 = vshrl.u32 %v930, 7
        %v932 = vsub.s32 %v929, %v931
        %v933 = vrot.slane %v925, %v932
        %v935 = vunpack.c.l.s4 1983009808
        %v936 = vunpack.c.0.s8 %v935
        %v937 = vlaneseq
        %v938 = vshrl.u32 %v937, 7
        %v939 = vsub.s32 %v936, %v938
        %v940 = vrot.slane %v926, %v939
        %v941 = vcombine.low %v917, %v923
        %v942 = vcombine.high %v917, %v923
        %v944 = vunpack.c.l.s4 1983009808
        %v945 = vunpack.c.0.s8 %v944
        %v946 = vlaneseq
        %v947 = vshrl.u32 %v946, 7
        %v948 = vsub.s32 %v945, %v947
        %v949 = vrot.slane %v941, %v948
        %v951 = vunpack.c.l.s4 1983009808
        %v952 = vunpack.c.0.s8 %v951
        %v953 = vlaneseq
        %v954 = vshrl.u32 %v953, 7
        %v955 = vsub.s32 %v952, %v954
        %v956 = vrot.slane %v942, %v955
        %v957 = vcombine.low %v933, %v949
        %v958 = vcombine.high %v933, %v949
        %v960 = vunpack.c.l.s4 1934713408
        %v961 = vunpack.c.0.s8 %v960
        %v962 = vlaneseq
        %v963 = vshrl.u32 %v962, 7
        %v964 = vsub.s32 %v961, %v963
        %v965 = vrot.slane %v957, %v964
        %v967 = vunpack.c.l.s4 1934713408
        %v968 = vunpack.c.0.s8 %v967
        %v969 = vlaneseq
        %v970 = vshrl.u32 %v969, 7
        %v971 = vsub.s32 %v968, %v970
        %v972 = vrot.slane %v958, %v971
        %v973 = vcombine.low %v940, %v956
        %v974 = vcombine.high %v940, %v956
        %v976 = vunpack.c.l.s4 1934713408
        %v977 = vunpack.c.0.s8 %v976
        %v978 = vlaneseq
        %v979 = vshrl.u32 %v978, 7
        %v980 = vsub.s32 %v977, %v979
        %v981 = vrot.slane %v973, %v980
        %v983 = vunpack.c.l.s4 1934713408
        %v984 = vunpack.c.0.s8 %v983
        %v985 = vlaneseq
        %v986 = vshrl.u32 %v985, 7
        %v987 = vsub.s32 %v984, %v986
        %v988 = vrot.slane %v974, %v987
        %v989 = vcombine.high %v965, 0.0
        %v990 = vcombine.high %v972, 0.0
        %v991 = vcombine.high %v981, 0.0
        %v992 = vcombine.high %v988, 0.0
        %v993 = vcombine.low %v965, %v972
        %v995 = vunpack.c.l.s4 1983009808
        %v996 = vunpack.c.0.s8 %v995
        %v997 = vlaneseq
        %v998 = vshrl.u32 %v997, 7
        %v999 = vsub.s32 %v996, %v998
        %v1000 = vrot.slane %v993, %v999
        %v1001 = vcombine.low %v989, %v990
        %v1003 = vunpack.c.l.s4 1983009808
        %v1004 = vunpack.c.0.s8 %v1003
        %v1005 = vlaneseq
        %v1006 = vshrl.u32 %v1005, 7
        %v1007 = vsub.s32 %v1004, %v1006
        %v1008 = vrot.slane %v1001, %v1007
        %v1009 = vcombine.low %v981, %v988
        %v1011 = vunpack.c.l.s4 1983009808
        %v1012 = vunpack.c.0.s8 %v1011
        %v1013 = vlaneseq
        %v1014 = vshrl.u32 %v1013, 7
        %v1015 = vsub.s32 %v1012, %v1014
        %v1016 = vrot.slane %v1009, %v1015
        %v1017 = vcombine.low %v991, %v992
        %v1019 = vunpack.c.l.s4 1983009808
        %v1020 = vunpack.c.0.s8 %v1019
        %v1021 = vlaneseq
        %v1022 = vshrl.u32 %v1021, 7
        %v1023 = vsub.s32 %v1020, %v1022
        %v1024 = vrot.slane %v1017, %v1023
        %v1025 = vcombine.low %v1000, %v1008
        %v1026 = vcombine.high %v1000, %v1008
        %v1028 = vunpack.c.l.s4 1934713408
        %v1029 = vunpack.c.0.s8 %v1028
        %v1030 = vlaneseq
        %v1031 = vshrl.u32 %v1030, 7
        %v1032 = vsub.s32 %v1029, %v1031
        %v1033 = vrot.slane %v1025, %v1032
        %v1035 = vunpack.c.l.s4 1934713408
        %v1036 = vunpack.c.0.s8 %v1035
        %v1037 = vlaneseq
        %v1038 = vshrl.u32 %v1037, 7
        %v1039 = vsub.s32 %v1036, %v1038
        %v1040 = vrot.slane %v1026, %v1039
        %v1041 = vcombine.low %v1016, %v1024
        %v1042 = vcombine.high %v1016, %v1024
        %v1044 = vunpack.c.l.s4 1934713408
        %v1045 = vunpack.c.0.s8 %v1044
        %v1046 = vlaneseq
        %v1047 = vshrl.u32 %v1046, 7
        %v1048 = vsub.s32 %v1045, %v1047
        %v1049 = vrot.slane %v1041, %v1048
        %v1051 = vunpack.c.l.s4 1934713408
        %v1052 = vunpack.c.0.s8 %v1051
        %v1053 = vlaneseq
        %v1054 = vshrl.u32 %v1053, 7
        %v1055 = vsub.s32 %v1052, %v1054
        %v1056 = vrot.slane %v1042, %v1055
        %v1057 = vcombine.low %v1033, %v1049
        %v1058 = vcombine.high %v1033, %v1049
        %v1059 = vcombine.low %v1040, %v1056
        %v1060 = vcombine.high %v1040, %v1056
        %1062 = vrot.lane.b32.xlu0 %v766, 120
        %v1063 = vpop.permute.xlu0 %1062
        %1065 = vrot.lane.b32.xlu0 %v766, 112
        %v1066 = vpop.permute.xlu0 %1065
        %1068 = vrot.lane.b32.xlu0 %v766, 104
        %v1069 = vpop.permute.xlu0 %1068
        %v1071 = vcombine.low %v766, %v1066
        %v1072 = vcombine.high %v766, %v1066
        %v1074 = vunpack.c.l.s4 1983009808
        %v1075 = vunpack.c.0.s8 %v1074
        %v1076 = vlaneseq
        %v1077 = vshrl.u32 %v1076, 7
        %v1078 = vsub.s32 %v1075, %v1077
        %v1079 = vrot.slane %v1071, %v1078
        %v1081 = vunpack.c.l.s4 1983009808
        %v1082 = vunpack.c.0.s8 %v1081
        %v1083 = vlaneseq
        %v1084 = vshrl.u32 %v1083, 7
        %v1085 = vsub.s32 %v1082, %v1084
        %v1086 = vrot.slane %v1072, %v1085
        %v1087 = vcombine.low %v1063, %v1069
        %v1088 = vcombine.high %v1063, %v1069
        %v1090 = vunpack.c.l.s4 1983009808
        %v1091 = vunpack.c.0.s8 %v1090
        %v1092 = vlaneseq
        %v1093 = vshrl.u32 %v1092, 7
        %v1094 = vsub.s32 %v1091, %v1093
        %v1095 = vrot.slane %v1087, %v1094
        %v1097 = vunpack.c.l.s4 1983009808
        %v1098 = vunpack.c.0.s8 %v1097
        %v1099 = vlaneseq
        %v1100 = vshrl.u32 %v1099, 7
        %v1101 = vsub.s32 %v1098, %v1100
        %v1102 = vrot.slane %v1088, %v1101
        %v1103 = vcombine.low %v1079, %v1095
        %v1104 = vcombine.high %v1079, %v1095
        %v1106 = vunpack.c.l.s4 1934713408
        %v1107 = vunpack.c.0.s8 %v1106
        %v1108 = vlaneseq
        %v1109 = vshrl.u32 %v1108, 7
        %v1110 = vsub.s32 %v1107, %v1109
        %v1111 = vrot.slane %v1103, %v1110
        %v1113 = vunpack.c.l.s4 1934713408
        %v1114 = vunpack.c.0.s8 %v1113
        %v1115 = vlaneseq
        %v1116 = vshrl.u32 %v1115, 7
        %v1117 = vsub.s32 %v1114, %v1116
        %v1118 = vrot.slane %v1104, %v1117
        %v1119 = vcombine.low %v1086, %v1102
        %v1120 = vcombine.high %v1086, %v1102
        %v1122 = vunpack.c.l.s4 1934713408
        %v1123 = vunpack.c.0.s8 %v1122
        %v1124 = vlaneseq
        %v1125 = vshrl.u32 %v1124, 7
        %v1126 = vsub.s32 %v1123, %v1125
        %v1127 = vrot.slane %v1119, %v1126
        %v1129 = vunpack.c.l.s4 1934713408
        %v1130 = vunpack.c.0.s8 %v1129
        %v1131 = vlaneseq
        %v1132 = vshrl.u32 %v1131, 7
        %v1133 = vsub.s32 %v1130, %v1132
        %v1134 = vrot.slane %v1120, %v1133
        %v1135 = vcombine.high %v1111, 0.0
        %v1136 = vcombine.high %v1118, 0.0
        %v1137 = vcombine.high %v1127, 0.0
        %v1138 = vcombine.high %v1134, 0.0
        %v1139 = vcombine.low %v1111, %v1118
        %v1141 = vunpack.c.l.s4 1983009808
        %v1142 = vunpack.c.0.s8 %v1141
        %v1143 = vlaneseq
        %v1144 = vshrl.u32 %v1143, 7
        %v1145 = vsub.s32 %v1142, %v1144
        %v1146 = vrot.slane %v1139, %v1145
        %v1147 = vcombine.low %v1135, %v1136
        %v1149 = vunpack.c.l.s4 1983009808
        %v1150 = vunpack.c.0.s8 %v1149
        %v1151 = vlaneseq
        %v1152 = vshrl.u32 %v1151, 7
        %v1153 = vsub.s32 %v1150, %v1152
        %v1154 = vrot.slane %v1147, %v1153
        %v1155 = vcombine.low %v1127, %v1134
        %v1157 = vunpack.c.l.s4 1983009808
        %v1158 = vunpack.c.0.s8 %v1157
        %v1159 = vlaneseq
        %v1160 = vshrl.u32 %v1159, 7
        %v1161 = vsub.s32 %v1158, %v1160
        %v1162 = vrot.slane %v1155, %v1161
        %v1163 = vcombine.low %v1137, %v1138
        %v1165 = vunpack.c.l.s4 1983009808
        %v1166 = vunpack.c.0.s8 %v1165
        %v1167 = vlaneseq
        %v1168 = vshrl.u32 %v1167, 7
        %v1169 = vsub.s32 %v1166, %v1168
        %v1170 = vrot.slane %v1163, %v1169
        %v1171 = vcombine.low %v1146, %v1154
        %v1172 = vcombine.high %v1146, %v1154
        %v1174 = vunpack.c.l.s4 1934713408
        %v1175 = vunpack.c.0.s8 %v1174
        %v1176 = vlaneseq
        %v1177 = vshrl.u32 %v1176, 7
        %v1178 = vsub.s32 %v1175, %v1177
        %v1179 = vrot.slane %v1171, %v1178
        %v1181 = vunpack.c.l.s4 1934713408
        %v1182 = vunpack.c.0.s8 %v1181
        %v1183 = vlaneseq
        %v1184 = vshrl.u32 %v1183, 7
        %v1185 = vsub.s32 %v1182, %v1184
        %v1186 = vrot.slane %v1172, %v1185
        %v1187 = vcombine.low %v1162, %v1170
        %v1188 = vcombine.high %v1162, %v1170
        %v1190 = vunpack.c.l.s4 1934713408
        %v1191 = vunpack.c.0.s8 %v1190
        %v1192 = vlaneseq
        %v1193 = vshrl.u32 %v1192, 7
        %v1194 = vsub.s32 %v1191, %v1193
        %v1195 = vrot.slane %v1187, %v1194
        %v1197 = vunpack.c.l.s4 1934713408
        %v1198 = vunpack.c.0.s8 %v1197
        %v1199 = vlaneseq
        %v1200 = vshrl.u32 %v1199, 7
        %v1201 = vsub.s32 %v1198, %v1200
        %v1202 = vrot.slane %v1188, %v1201
        %v1203 = vcombine.low %v1179, %v1195
        %v1204 = vcombine.high %v1179, %v1195
        %v1205 = vcombine.low %v1186, %v1202
        %v1206 = vcombine.high %v1186, %v1202
        %vm1207 = vcmask 64512
        %v1209 = vsel %vm1207, %v911, 0
        %v1212 = vsel %vm1207, %v1057, 0
        %1214 = vmatprep.subr.mxu0 0.0
        %1215 = vmatpush1.xpose.msra.mxu0 %v1212
        %1216 = vmatprep.subr.mxu0 0.0
        %1217 = vmatpush1.xpose.msra.mxu0 0.0
        %1218 = vmatprep.subr.mxu0 0.0
        %1219 = vmatpush1.xpose.msra.mxu0 0.0
        %1220 = vmatprep.subr.mxu0 0.0
        %1221 = vmatpush1.xpose.msra.mxu0 0.0
        %1222 = vmatprep.subr.mxu0 0.0
        %1223 = vmatpush1.xpose.msra.mxu0 0.0
        %1224 = vmatprep.subr.mxu0 0.0
        %1225 = vmatpush1.xpose.msra.mxu0 0.0
        %1226 = vmatprep.subr.mxu0 0.0
        %1227 = vmatpush1.xpose.msra.mxu0 0.0
        %1228 = vmatprep.subr.mxu0 0.0
        %1229 = vmatpush1.xpose.msra.mxu0 0.0
        %1230 = vmatprep.subr.mxu0 0.0
        %1231 = vmatpush1.xpose.msra.mxu0 0.0
        %1232 = vmatprep.subr.mxu0 0.0
        %1233 = vmatpush1.xpose.msra.mxu0 0.0
        %1234 = vmatprep.subr.mxu0 0.0
        %1235 = vmatpush1.xpose.msra.mxu0 0.0
        %1236 = vmatprep.subr.mxu0 0.0
        %1237 = vmatpush1.xpose.msra.mxu0 0.0
        %1238 = vmatprep.subr.mxu0 0.0
        %1239 = vmatpush1.xpose.msra.mxu0 0.0
        %1240 = vmatprep.subr.mxu0 0.0
        %1241 = vmatpush1.xpose.msra.mxu0 0.0
        %1242 = vmatprep.subr.mxu0 0.0
        %1243 = vmatpush1.xpose.msra.mxu0 0.0
        %1244 = vmatprep.subr.mxu0 0.0
        %1245 = vmatpush1.xpose.msra.mxu0 0.0
        %1246 = vmatprep.subr.mxu0 0.0
        %1247 = vmatpush1.xpose.msra.mxu0 0.0
        %1248 = vmatprep.subr.mxu0 0.0
        %1249 = vmatpush1.xpose.msra.mxu0 0.0
        %1250 = vmatprep.subr.mxu0 0.0
        %1251 = vmatpush1.xpose.msra.mxu0 0.0
        %1252 = vmatprep.subr.mxu0 0.0
        %1253 = vmatpush1.xpose.msra.mxu0 0.0
        %1254 = vmatprep.subr.mxu0 0.0
        %1255 = vmatpush1.xpose.msra.mxu0 0.0
        %1256 = vmatprep.subr.mxu0 0.0
        %1257 = vmatpush1.xpose.msra.mxu0 0.0
        %1258 = vmatprep.subr.mxu0 0.0
        %1259 = vmatpush1.xpose.msra.mxu0 0.0
        %1260 = vmatprep.subr.mxu0 0.0
        %1261 = vmatpush1.xpose.msra.mxu0 0.0
        %1262 = vmatprep.subr.mxu0 0.0
        %1263 = vmatpush1.xpose.msra.mxu0 0.0
        %1264 = vmatprep.subr.mxu0 0.0
        %1265 = vmatpush1.xpose.msra.mxu0 0.0
        %1266 = vmatprep.subr.mxu0 0.0
        %1267 = vmatpush1.xpose.msra.mxu0 0.0
        %1268 = vmatprep.subr.mxu0 0.0
        %1269 = vmatpush1.xpose.msra.mxu0 0.0
        %1270 = vmatprep.subr.mxu0 0.0
        %1271 = vmatpush1.xpose.msra.mxu0 0.0
        %1272 = vmatprep.subr.mxu0 0.0
        %1273 = vmatpush1.xpose.msra.mxu0 0.0
        %1274 = vmatprep.subr.mxu0 0.0
        %1275 = vmatpush1.xpose.msra.mxu0 0.0
        %1276 = vmatprep.subr.mxu0 0.0
        %1277 = vmatpush1.xpose.msra.mxu0 0.0
        %1278 = vmatprep.mubr.f32.mxu0 0.0
        %1279 = vmatmul.mubr.f32.gmra.mrb[0].mxu0 %v1209
        %v1280 = vpop.f32.mrb[0].mxu0
        %v1281 = vadd.f32 0.0, %v1280
        %v1282 = vpop.f32.mrb[0].mxu0
        %1283 = vdwg.mxu0
        %v1285 = vsel %vm1207, %v912, 0
        %v1288 = vsel %vm1207, %v1058, 0
        %1290 = vmatprep.subr.mxu0 0.0
        %1291 = vmatpush1.xpose.msra.mxu0 %v1288
        %1292 = vmatprep.subr.mxu0 0.0
        %1293 = vmatpush1.xpose.msra.mxu0 0.0
        %1294 = vmatprep.subr.mxu0 0.0
        %1295 = vmatpush1.xpose.msra.mxu0 0.0
        %1296 = vmatprep.subr.mxu0 0.0
        %1297 = vmatpush1.xpose.msra.mxu0 0.0
        %1298 = vmatprep.subr.mxu0 0.0
        %1299 = vmatpush1.xpose.msra.mxu0 0.0
        %1300 = vmatprep.subr.mxu0 0.0
        %1301 = vmatpush1.xpose.msra.mxu0 0.0
        %1302 = vmatprep.subr.mxu0 0.0
        %1303 = vmatpush1.xpose.msra.mxu0 0.0
        %1304 = vmatprep.subr.mxu0 0.0
        %1305 = vmatpush1.xpose.msra.mxu0 0.0
        %1306 = vmatprep.subr.mxu0 0.0
        %1307 = vmatpush1.xpose.msra.mxu0 0.0
        %1308 = vmatprep.subr.mxu0 0.0
        %1309 = vmatpush1.xpose.msra.mxu0 0.0
        %1310 = vmatprep.subr.mxu0 0.0
        %1311 = vmatpush1.xpose.msra.mxu0 0.0
        %1312 = vmatprep.subr.mxu0 0.0
        %1313 = vmatpush1.xpose.msra.mxu0 0.0
        %1314 = vmatprep.subr.mxu0 0.0
        %1315 = vmatpush1.xpose.msra.mxu0 0.0
        %1316 = vmatprep.subr.mxu0 0.0
        %1317 = vmatpush1.xpose.msra.mxu0 0.0
        %1318 = vmatprep.subr.mxu0 0.0
        %1319 = vmatpush1.xpose.msra.mxu0 0.0
        %1320 = vmatprep.subr.mxu0 0.0
        %1321 = vmatpush1.xpose.msra.mxu0 0.0
        %1322 = vmatprep.subr.mxu0 0.0
        %1323 = vmatpush1.xpose.msra.mxu0 0.0
        %1324 = vmatprep.subr.mxu0 0.0
        %1325 = vmatpush1.xpose.msra.mxu0 0.0
        %1326 = vmatprep.subr.mxu0 0.0
        %1327 = vmatpush1.xpose.msra.mxu0 0.0
        %1328 = vmatprep.subr.mxu0 0.0
        %1329 = vmatpush1.xpose.msra.mxu0 0.0
        %1330 = vmatprep.subr.mxu0 0.0
        %1331 = vmatpush1.xpose.msra.mxu0 0.0
        %1332 = vmatprep.subr.mxu0 0.0
        %1333 = vmatpush1.xpose.msra.mxu0 0.0
        %1334 = vmatprep.subr.mxu0 0.0
        %1335 = vmatpush1.xpose.msra.mxu0 0.0
        %1336 = vmatprep.subr.mxu0 0.0
        %1337 = vmatpush1.xpose.msra.mxu0 0.0
        %1338 = vmatprep.subr.mxu0 0.0
        %1339 = vmatpush1.xpose.msra.mxu0 0.0
        %1340 = vmatprep.subr.mxu0 0.0
        %1341 = vmatpush1.xpose.msra.mxu0 0.0
        %1342 = vmatprep.subr.mxu0 0.0
        %1343 = vmatpush1.xpose.msra.mxu0 0.0
        %1344 = vmatprep.subr.mxu0 0.0
        %1345 = vmatpush1.xpose.msra.mxu0 0.0
        %1346 = vmatprep.subr.mxu0 0.0
        %1347 = vmatpush1.xpose.msra.mxu0 0.0
        %1348 = vmatprep.subr.mxu0 0.0
        %1349 = vmatpush1.xpose.msra.mxu0 0.0
        %1350 = vmatprep.subr.mxu0 0.0
        %1351 = vmatpush1.xpose.msra.mxu0 0.0
        %1352 = vmatprep.subr.mxu0 0.0
        %1353 = vmatpush1.xpose.msra.mxu0 0.0
        %1354 = vmatprep.mubr.f32.mxu0 0.0
        %1355 = vmatmul.mubr.f32.gmra.mrb[0].mxu0 %v1285
        %v1356 = vpop.f32.mrb[0].mxu0
        %v1357 = vadd.f32 0.0, %v1356
        %v1358 = vpop.f32.mrb[0].mxu0
        %1359 = vdwg.mxu0
        %v1361 = vsel %vm1207, %v913, 0
        %v1364 = vsel %vm1207, %v1059, 0
        %1366 = vmatprep.subr.mxu0 0.0
        %1367 = vmatpush1.xpose.msra.mxu0 %v1364
        %1368 = vmatprep.subr.mxu0 0.0
        %1369 = vmatpush1.xpose.msra.mxu0 0.0
        %1370 = vmatprep.subr.mxu0 0.0
        %1371 = vmatpush1.xpose.msra.mxu0 0.0
        %1372 = vmatprep.subr.mxu0 0.0
        %1373 = vmatpush1.xpose.msra.mxu0 0.0
        %1374 = vmatprep.subr.mxu0 0.0
        %1375 = vmatpush1.xpose.msra.mxu0 0.0
        %1376 = vmatprep.subr.mxu0 0.0
        %1377 = vmatpush1.xpose.msra.mxu0 0.0
        %1378 = vmatprep.subr.mxu0 0.0
        %1379 = vmatpush1.xpose.msra.mxu0 0.0
        %1380 = vmatprep.subr.mxu0 0.0
        %1381 = vmatpush1.xpose.msra.mxu0 0.0
        %1382 = vmatprep.subr.mxu0 0.0
        %1383 = vmatpush1.xpose.msra.mxu0 0.0
        %1384 = vmatprep.subr.mxu0 0.0
        %1385 = vmatpush1.xpose.msra.mxu0 0.0
        %1386 = vmatprep.subr.mxu0 0.0
        %1387 = vmatpush1.xpose.msra.mxu0 0.0
        %1388 = vmatprep.subr.mxu0 0.0
        %1389 = vmatpush1.xpose.msra.mxu0 0.0
        %1390 = vmatprep.subr.mxu0 0.0
        %1391 = vmatpush1.xpose.msra.mxu0 0.0
        %1392 = vmatprep.subr.mxu0 0.0
        %1393 = vmatpush1.xpose.msra.mxu0 0.0
        %1394 = vmatprep.subr.mxu0 0.0
        %1395 = vmatpush1.xpose.msra.mxu0 0.0
        %1396 = vmatprep.subr.mxu0 0.0
        %1397 = vmatpush1.xpose.msra.mxu0 0.0
        %1398 = vmatprep.subr.mxu0 0.0
        %1399 = vmatpush1.xpose.msra.mxu0 0.0
        %1400 = vmatprep.subr.mxu0 0.0
        %1401 = vmatpush1.xpose.msra.mxu0 0.0
        %1402 = vmatprep.subr.mxu0 0.0
        %1403 = vmatpush1.xpose.msra.mxu0 0.0
        %1404 = vmatprep.subr.mxu0 0.0
        %1405 = vmatpush1.xpose.msra.mxu0 0.0
        %1406 = vmatprep.subr.mxu0 0.0
        %1407 = vmatpush1.xpose.msra.mxu0 0.0
        %1408 = vmatprep.subr.mxu0 0.0
        %1409 = vmatpush1.xpose.msra.mxu0 0.0
        %1410 = vmatprep.subr.mxu0 0.0
        %1411 = vmatpush1.xpose.msra.mxu0 0.0
        %1412 = vmatprep.subr.mxu0 0.0
        %1413 = vmatpush1.xpose.msra.mxu0 0.0
        %1414 = vmatprep.subr.mxu0 0.0
        %1415 = vmatpush1.xpose.msra.mxu0 0.0
        %1416 = vmatprep.subr.mxu0 0.0
        %1417 = vmatpush1.xpose.msra.mxu0 0.0
        %1418 = vmatprep.subr.mxu0 0.0
        %1419 = vmatpush1.xpose.msra.mxu0 0.0
        %1420 = vmatprep.subr.mxu0 0.0
        %1421 = vmatpush1.xpose.msra.mxu0 0.0
        %1422 = vmatprep.subr.mxu0 0.0
        %1423 = vmatpush1.xpose.msra.mxu0 0.0
        %1424 = vmatprep.subr.mxu0 0.0
        %1425 = vmatpush1.xpose.msra.mxu0 0.0
        %1426 = vmatprep.subr.mxu0 0.0
        %1427 = vmatpush1.xpose.msra.mxu0 0.0
        %1428 = vmatprep.subr.mxu0 0.0
        %1429 = vmatpush1.xpose.msra.mxu0 0.0
        %1430 = vmatprep.mubr.f32.mxu0 0.0
        %1431 = vmatmul.mubr.f32.gmra.mrb[0].mxu0 %v1361
        %v1432 = vpop.f32.mrb[0].mxu0
        %v1433 = vadd.f32 0.0, %v1432
        %v1434 = vpop.f32.mrb[0].mxu0
        %1435 = vdwg.mxu0
        %v1437 = vsel %vm1207, %v914, 0
        %v1440 = vsel %vm1207, %v1060, 0
        %1442 = vmatprep.subr.mxu0 0.0
        %1443 = vmatpush1.xpose.msra.mxu0 %v1440
        %1444 = vmatprep.subr.mxu0 0.0
        %1445 = vmatpush1.xpose.msra.mxu0 0.0
        %1446 = vmatprep.subr.mxu0 0.0
        %1447 = vmatpush1.xpose.msra.mxu0 0.0
        %1448 = vmatprep.subr.mxu0 0.0
        %1449 = vmatpush1.xpose.msra.mxu0 0.0
        %1450 = vmatprep.subr.mxu0 0.0
        %1451 = vmatpush1.xpose.msra.mxu0 0.0
        %1452 = vmatprep.subr.mxu0 0.0
        %1453 = vmatpush1.xpose.msra.mxu0 0.0
        %1454 = vmatprep.subr.mxu0 0.0
        %1455 = vmatpush1.xpose.msra.mxu0 0.0
        %1456 = vmatprep.subr.mxu0 0.0
        %1457 = vmatpush1.xpose.msra.mxu0 0.0
        %1458 = vmatprep.subr.mxu0 0.0
        %1459 = vmatpush1.xpose.msra.mxu0 0.0
        %1460 = vmatprep.subr.mxu0 0.0
        %1461 = vmatpush1.xpose.msra.mxu0 0.0
        %1462 = vmatprep.subr.mxu0 0.0
        %1463 = vmatpush1.xpose.msra.mxu0 0.0
        %1464 = vmatprep.subr.mxu0 0.0
        %1465 = vmatpush1.xpose.msra.mxu0 0.0
        %1466 = vmatprep.subr.mxu0 0.0
        %1467 = vmatpush1.xpose.msra.mxu0 0.0
        %1468 = vmatprep.subr.mxu0 0.0
        %1469 = vmatpush1.xpose.msra.mxu0 0.0
        %1470 = vmatprep.subr.mxu0 0.0
        %1471 = vmatpush1.xpose.msra.mxu0 0.0
        %1472 = vmatprep.subr.mxu0 0.0
        %1473 = vmatpush1.xpose.msra.mxu0 0.0
        %1474 = vmatprep.subr.mxu0 0.0
        %1475 = vmatpush1.xpose.msra.mxu0 0.0
        %1476 = vmatprep.subr.mxu0 0.0
        %1477 = vmatpush1.xpose.msra.mxu0 0.0
        %1478 = vmatprep.subr.mxu0 0.0
        %1479 = vmatpush1.xpose.msra.mxu0 0.0
        %1480 = vmatprep.subr.mxu0 0.0
        %1481 = vmatpush1.xpose.msra.mxu0 0.0
        %1482 = vmatprep.subr.mxu0 0.0
        %1483 = vmatpush1.xpose.msra.mxu0 0.0
        %1484 = vmatprep.subr.mxu0 0.0
        %1485 = vmatpush1.xpose.msra.mxu0 0.0
        %1486 = vmatprep.subr.mxu0 0.0
        %1487 = vmatpush1.xpose.msra.mxu0 0.0
        %1488 = vmatprep.subr.mxu0 0.0
        %1489 = vmatpush1.xpose.msra.mxu0 0.0
        %1490 = vmatprep.subr.mxu0 0.0
        %1491 = vmatpush1.xpose.msra.mxu0 0.0
        %1492 = vmatprep.subr.mxu0 0.0
        %1493 = vmatpush1.xpose.msra.mxu0 0.0
        %1494 = vmatprep.subr.mxu0 0.0
        %1495 = vmatpush1.xpose.msra.mxu0 0.0
        %1496 = vmatprep.subr.mxu0 0.0
        %1497 = vmatpush1.xpose.msra.mxu0 0.0
        %1498 = vmatprep.subr.mxu0 0.0
        %1499 = vmatpush1.xpose.msra.mxu0 0.0
        %1500 = vmatprep.subr.mxu0 0.0
        %1501 = vmatpush1.xpose.msra.mxu0 0.0
        %1502 = vmatprep.subr.mxu0 0.0
        %1503 = vmatpush1.xpose.msra.mxu0 0.0
        %1504 = vmatprep.subr.mxu0 0.0
        %1505 = vmatpush1.xpose.msra.mxu0 0.0
        %1506 = vmatprep.mubr.f32.mxu0 0.0
        %1507 = vmatmul.mubr.f32.gmra.mrb[0].mxu0 %v1437
        %v1508 = vpop.f32.mrb[0].mxu0
        %v1509 = vadd.f32 0.0, %v1508
        %v1510 = vpop.f32.mrb[0].mxu0
        %1511 = vdwg.mxu0
        %v1512 = vsel %vm1207, %v1281, -inf
        %1513 = vmax.xlane.f32.xlu0 %v1512
        %v1514 = vpop.xlane.xlu0 %1513
        %v1515 = vsel %vm1207, %v1357, -inf
        %1516 = vmax.xlane.f32.xlu0 %v1515
        %v1517 = vpop.xlane.xlu0 %1516
        %v1518 = vsel %vm1207, %v1433, -inf
        %1519 = vmax.xlane.f32.xlu0 %v1518
        %v1520 = vpop.xlane.xlu0 %1519
        %v1521 = vsel %vm1207, %v1509, -inf
        %1522 = vmax.xlane.f32.xlu0 %v1521
        %v1523 = vpop.xlane.xlu0 %1522
        %v1524 = vsub.f32 %v1281, %v1514
        %v1525 = vsub.f32 %v1357, %v1517
        %v1526 = vsub.f32 %v1433, %v1520
        %v1527 = vsub.f32 %v1509, %v1523
        %v1528 = vmul.f32 %v1524, 1.442695
        %v1529 = vpow.pop %v1528
        %v1530 = vmul.f32 %v1525, 1.442695
        %v1531 = vpow.pop %v1530
        %v1532 = vmul.f32 %v1526, 1.442695
        %v1533 = vpow.pop %v1532
        %v1534 = vmul.f32 %v1527, 1.442695
        %v1535 = vpow.pop %v1534
        %v1536 = vsel %vm1207, %v1529, 0.0
        %1537 = vadd.xlane.f32.xlu0 %v1536
        %v1538 = vpop.xlane.xlu0 %1537
        %v1539 = vsel %vm1207, %v1531, 0.0
        %1540 = vadd.xlane.f32.xlu0 %v1539
        %v1541 = vpop.xlane.xlu0 %1540
        %v1542 = vsel %vm1207, %v1533, 0.0
        %1543 = vadd.xlane.f32.xlu0 %v1542
        %v1544 = vpop.xlane.xlu0 %1543
        %v1545 = vsel %vm1207, %v1535, 0.0
        %1546 = vadd.xlane.f32.xlu0 %v1545
        %v1547 = vpop.xlane.xlu0 %1546
        %v1548 = vrcp.pop %v1538
        %v1549 = vrcp.pop %v1541
        %v1550 = vrcp.pop %v1544
        %v1551 = vrcp.pop %v1547
        %v1552 = vmul.f32 %v1529, %v1548
        %v1553 = vmul.f32 %v1531, %v1549
        %v1554 = vmul.f32 %v1533, %v1550
        %v1555 = vmul.f32 %v1535, %v1551
        %1556 = vst.msk [vmem:[%s533] sm:$0xff] %vm1207, %v1552
        %1557 = vst.msk [vmem:[%s533 + $0x8] sm:$0xff] %vm1207, %v1553
        %1558 = vst.msk [vmem:[%s533 + $0x10] sm:$0xff] %vm1207, %v1554
        %1559 = vst.msk [vmem:[%s533 + $0x18] sm:$0xff] %vm1207, %v1555
        %v1561 = vsel %vm1207, %v1552, 0
        %1563 = vmatprep.subr.mxu0 0.0
        %1564 = vmatpush1.msra.mxu0 %v1203
        %1565 = vmatprep.subr.mxu0 0.0
        %1566 = vmatpush1.msra.mxu0 0.0
        %1567 = vmatprep.subr.mxu0 0.0
        %1568 = vmatpush1.msra.mxu0 0.0
        %1569 = vmatprep.subr.mxu0 0.0
        %1570 = vmatpush1.msra.mxu0 0.0
        %1571 = vmatprep.subr.mxu0 0.0
        %1572 = vmatpush1.msra.mxu0 0.0
        %1573 = vmatprep.subr.mxu0 0.0
        %1574 = vmatpush1.msra.mxu0 0.0
        %1575 = vmatprep.subr.mxu0 0.0
        %1576 = vmatpush1.msra.mxu0 0.0
        %1577 = vmatprep.subr.mxu0 0.0
        %1578 = vmatpush1.msra.mxu0 0.0
        %1579 = vmatprep.subr.mxu0 0.0
        %1580 = vmatpush1.msra.mxu0 0.0
        %1581 = vmatprep.subr.mxu0 0.0
        %1582 = vmatpush1.msra.mxu0 0.0
        %1583 = vmatprep.subr.mxu0 0.0
        %1584 = vmatpush1.msra.mxu0 0.0
        %1585 = vmatprep.subr.mxu0 0.0
        %1586 = vmatpush1.msra.mxu0 0.0
        %1587 = vmatprep.subr.mxu0 0.0
        %1588 = vmatpush1.msra.mxu0 0.0
        %1589 = vmatprep.subr.mxu0 0.0
        %1590 = vmatpush1.msra.mxu0 0.0
        %1591 = vmatprep.subr.mxu0 0.0
        %1592 = vmatpush1.msra.mxu0 0.0
        %1593 = vmatprep.subr.mxu0 0.0
        %1594 = vmatpush1.msra.mxu0 0.0
        %1595 = vmatprep.subr.mxu0 0.0
        %1596 = vmatpush1.msra.mxu0 0.0
        %1597 = vmatprep.subr.mxu0 0.0
        %1598 = vmatpush1.msra.mxu0 0.0
        %1599 = vmatprep.subr.mxu0 0.0
        %1600 = vmatpush1.msra.mxu0 0.0
        %1601 = vmatprep.subr.mxu0 0.0
        %1602 = vmatpush1.msra.mxu0 0.0
        %1603 = vmatprep.subr.mxu0 0.0
        %1604 = vmatpush1.msra.mxu0 0.0
        %1605 = vmatprep.subr.mxu0 0.0
        %1606 = vmatpush1.msra.mxu0 0.0
        %1607 = vmatprep.subr.mxu0 0.0
        %1608 = vmatpush1.msra.mxu0 0.0
        %1609 = vmatprep.subr.mxu0 0.0
        %1610 = vmatpush1.msra.mxu0 0.0
        %1611 = vmatprep.subr.mxu0 0.0
        %1612 = vmatpush1.msra.mxu0 0.0
        %1613 = vmatprep.subr.mxu0 0.0
        %1614 = vmatpush1.msra.mxu0 0.0
        %1615 = vmatprep.subr.mxu0 0.0
        %1616 = vmatpush1.msra.mxu0 0.0
        %1617 = vmatprep.subr.mxu0 0.0
        %1618 = vmatpush1.msra.mxu0 0.0
        %1619 = vmatprep.subr.mxu0 0.0
        %1620 = vmatpush1.msra.mxu0 0.0
        %1621 = vmatprep.subr.mxu0 0.0
        %1622 = vmatpush1.msra.mxu0 0.0
        %1623 = vmatprep.subr.mxu0 0.0
        %1624 = vmatpush1.msra.mxu0 0.0
        %1625 = vmatprep.subr.mxu0 0.0
        %1626 = vmatpush1.msra.mxu0 0.0
        %1627 = vmatprep.mubr.f32.mxu0 0.0
        %1628 = vmatmul.mubr.f32.gmra.mrb[0].mxu0 %v1561
        %v1629 = vpop.f32.mrb[0].mxu0
        %v1630 = vadd.f32 0.0, %v1629
        %v1631 = vpop.f32.mrb[0].mxu0
        %1632 = vdwg.mxu0
        %v1634 = vsel %vm1207, %v1553, 0
        %1636 = vmatprep.subr.mxu0 0.0
        %1637 = vmatpush1.msra.mxu0 %v1204
        %1638 = vmatprep.subr.mxu0 0.0
        %1639 = vmatpush1.msra.mxu0 0.0
        %1640 = vmatprep.subr.mxu0 0.0
        %1641 = vmatpush1.msra.mxu0 0.0
        %1642 = vmatprep.subr.mxu0 0.0
        %1643 = vmatpush1.msra.mxu0 0.0
        %1644 = vmatprep.subr.mxu0 0.0
        %1645 = vmatpush1.msra.mxu0 0.0
        %1646 = vmatprep.subr.mxu0 0.0
        %1647 = vmatpush1.msra.mxu0 0.0
        %1648 = vmatprep.subr.mxu0 0.0
        %1649 = vmatpush1.msra.mxu0 0.0
        %1650 = vmatprep.subr.mxu0 0.0
        %1651 = vmatpush1.msra.mxu0 0.0
        %1652 = vmatprep.subr.mxu0 0.0
        %1653 = vmatpush1.msra.mxu0 0.0
        %1654 = vmatprep.subr.mxu0 0.0
        %1655 = vmatpush1.msra.mxu0 0.0
        %1656 = vmatprep.subr.mxu0 0.0
        %1657 = vmatpush1.msra.mxu0 0.0
        %1658 = vmatprep.subr.mxu0 0.0
        %1659 = vmatpush1.msra.mxu0 0.0
        %1660 = vmatprep.subr.mxu0 0.0
        %1661 = vmatpush1.msra.mxu0 0.0
        %1662 = vmatprep.subr.mxu0 0.0
        %1663 = vmatpush1.msra.mxu0 0.0
        %1664 = vmatprep.subr.mxu0 0.0
        %1665 = vmatpush1.msra.mxu0 0.0
        %1666 = vmatprep.subr.mxu0 0.0
        %1667 = vmatpush1.msra.mxu0 0.0
        %1668 = vmatprep.subr.mxu0 0.0
        %1669 = vmatpush1.msra.mxu0 0.0
        %1670 = vmatprep.subr.mxu0 0.0
        %1671 = vmatpush1.msra.mxu0 0.0
        %1672 = vmatprep.subr.mxu0 0.0
        %1673 = vmatpush1.msra.mxu0 0.0
        %1674 = vmatprep.subr.mxu0 0.0
        %1675 = vmatpush1.msra.mxu0 0.0
        %1676 = vmatprep.subr.mxu0 0.0
        %1677 = vmatpush1.msra.mxu0 0.0
        %1678 = vmatprep.subr.mxu0 0.0
        %1679 = vmatpush1.msra.mxu0 0.0
        %1680 = vmatprep.subr.mxu0 0.0
        %1681 = vmatpush1.msra.mxu0 0.0
        %1682 = vmatprep.subr.mxu0 0.0
        %1683 = vmatpush1.msra.mxu0 0.0
        %1684 = vmatprep.subr.mxu0 0.0
        %1685 = vmatpush1.msra.mxu0 0.0
        %1686 = vmatprep.subr.mxu0 0.0
        %1687 = vmatpush1.msra.mxu0 0.0
        %1688 = vmatprep.subr.mxu0 0.0
        %1689 = vmatpush1.msra.mxu0 0.0
        %1690 = vmatprep.subr.mxu0 0.0
        %1691 = vmatpush1.msra.mxu0 0.0
        %1692 = vmatprep.subr.mxu0 0.0
        %1693 = vmatpush1.msra.mxu0 0.0
        %1694 = vmatprep.subr.mxu0 0.0
        %1695 = vmatpush1.msra.mxu0 0.0
        %1696 = vmatprep.subr.mxu0 0.0
        %1697 = vmatpush1.msra.mxu0 0.0
        %1698 = vmatprep.subr.mxu0 0.0
        %1699 = vmatpush1.msra.mxu0 0.0
        %1700 = vmatprep.mubr.f32.mxu0 0.0
        %1701 = vmatmul.mubr.f32.gmra.mrb[0].mxu0 %v1634
        %v1702 = vpop.f32.mrb[0].mxu0
        %v1703 = vadd.f32 0.0, %v1702
        %v1704 = vpop.f32.mrb[0].mxu0
        %1705 = vdwg.mxu0
        %v1707 = vsel %vm1207, %v1554, 0
        %1709 = vmatprep.subr.mxu0 0.0
        %1710 = vmatpush1.msra.mxu0 %v1205
        %1711 = vmatprep.subr.mxu0 0.0
        %1712 = vmatpush1.msra.mxu0 0.0
        %1713 = vmatprep.subr.mxu0 0.0
        %1714 = vmatpush1.msra.mxu0 0.0
        %1715 = vmatprep.subr.mxu0 0.0
        %1716 = vmatpush1.msra.mxu0 0.0
        %1717 = vmatprep.subr.mxu0 0.0
        %1718 = vmatpush1.msra.mxu0 0.0
        %1719 = vmatprep.subr.mxu0 0.0
        %1720 = vmatpush1.msra.mxu0 0.0
        %1721 = vmatprep.subr.mxu0 0.0
        %1722 = vmatpush1.msra.mxu0 0.0
        %1723 = vmatprep.subr.mxu0 0.0
        %1724 = vmatpush1.msra.mxu0 0.0
        %1725 = vmatprep.subr.mxu0 0.0
        %1726 = vmatpush1.msra.mxu0 0.0
        %1727 = vmatprep.subr.mxu0 0.0
        %1728 = vmatpush1.msra.mxu0 0.0
        %1729 = vmatprep.subr.mxu0 0.0
        %1730 = vmatpush1.msra.mxu0 0.0
        %1731 = vmatprep.subr.mxu0 0.0
        %1732 = vmatpush1.msra.mxu0 0.0
        %1733 = vmatprep.subr.mxu0 0.0
        %1734 = vmatpush1.msra.mxu0 0.0
        %1735 = vmatprep.subr.mxu0 0.0
        %1736 = vmatpush1.msra.mxu0 0.0
        %1737 = vmatprep.subr.mxu0 0.0
        %1738 = vmatpush1.msra.mxu0 0.0
        %1739 = vmatprep.subr.mxu0 0.0
        %1740 = vmatpush1.msra.mxu0 0.0
        %1741 = vmatprep.subr.mxu0 0.0
        %1742 = vmatpush1.msra.mxu0 0.0
        %1743 = vmatprep.subr.mxu0 0.0
        %1744 = vmatpush1.msra.mxu0 0.0
        %1745 = vmatprep.subr.mxu0 0.0
        %1746 = vmatpush1.msra.mxu0 0.0
        %1747 = vmatprep.subr.mxu0 0.0
        %1748 = vmatpush1.msra.mxu0 0.0
        %1749 = vmatprep.subr.mxu0 0.0
        %1750 = vmatpush1.msra.mxu0 0.0
        %1751 = vmatprep.subr.mxu0 0.0
        %1752 = vmatpush1.msra.mxu0 0.0
        %1753 = vmatprep.subr.mxu0 0.0
        %1754 = vmatpush1.msra.mxu0 0.0
        %1755 = vmatprep.subr.mxu0 0.0
        %1756 = vmatpush1.msra.mxu0 0.0
        %1757 = vmatprep.subr.mxu0 0.0
        %1758 = vmatpush1.msra.mxu0 0.0
        %1759 = vmatprep.subr.mxu0 0.0
        %1760 = vmatpush1.msra.mxu0 0.0
        %1761 = vmatprep.subr.mxu0 0.0
        %1762 = vmatpush1.msra.mxu0 0.0
        %1763 = vmatprep.subr.mxu0 0.0
        %1764 = vmatpush1.msra.mxu0 0.0
        %1765 = vmatprep.subr.mxu0 0.0
        %1766 = vmatpush1.msra.mxu0 0.0
        %1767 = vmatprep.subr.mxu0 0.0
        %1768 = vmatpush1.msra.mxu0 0.0
        %1769 = vmatprep.subr.mxu0 0.0
        %1770 = vmatpush1.msra.mxu0 0.0
        %1771 = vmatprep.subr.mxu0 0.0
        %1772 = vmatpush1.msra.mxu0 0.0
        %1773 = vmatprep.mubr.f32.mxu0 0.0
        %1774 = vmatmul.mubr.f32.gmra.mrb[0].mxu0 %v1707
        %v1775 = vpop.f32.mrb[0].mxu0
        %v1776 = vadd.f32 0.0, %v1775
        %v1777 = vpop.f32.mrb[0].mxu0
        %1778 = vdwg.mxu0
        %v1780 = vsel %vm1207, %v1555, 0
        %1782 = vmatprep.subr.mxu0 0.0
        %1783 = vmatpush1.msra.mxu0 %v1206
        %1784 = vmatprep.subr.mxu0 0.0
        %1785 = vmatpush1.msra.mxu0 0.0
        %1786 = vmatprep.subr.mxu0 0.0
        %1787 = vmatpush1.msra.mxu0 0.0
        %1788 = vmatprep.subr.mxu0 0.0
        %1789 = vmatpush1.msra.mxu0 0.0
        %1790 = vmatprep.subr.mxu0 0.0
        %1791 = vmatpush1.msra.mxu0 0.0
        %1792 = vmatprep.subr.mxu0 0.0
        %1793 = vmatpush1.msra.mxu0 0.0
        %1794 = vmatprep.subr.mxu0 0.0
        %1795 = vmatpush1.msra.mxu0 0.0
        %1796 = vmatprep.subr.mxu0 0.0
        %1797 = vmatpush1.msra.mxu0 0.0
        %1798 = vmatprep.subr.mxu0 0.0
        %1799 = vmatpush1.msra.mxu0 0.0
        %1800 = vmatprep.subr.mxu0 0.0
        %1801 = vmatpush1.msra.mxu0 0.0
        %1802 = vmatprep.subr.mxu0 0.0
        %1803 = vmatpush1.msra.mxu0 0.0
        %1804 = vmatprep.subr.mxu0 0.0
        %1805 = vmatpush1.msra.mxu0 0.0
        %1806 = vmatprep.subr.mxu0 0.0
        %1807 = vmatpush1.msra.mxu0 0.0
        %1808 = vmatprep.subr.mxu0 0.0
        %1809 = vmatpush1.msra.mxu0 0.0
        %1810 = vmatprep.subr.mxu0 0.0
        %1811 = vmatpush1.msra.mxu0 0.0
        %1812 = vmatprep.subr.mxu0 0.0
        %1813 = vmatpush1.msra.mxu0 0.0
        %1814 = vmatprep.subr.mxu0 0.0
        %1815 = vmatpush1.msra.mxu0 0.0
        %1816 = vmatprep.subr.mxu0 0.0
        %1817 = vmatpush1.msra.mxu0 0.0
        %1818 = vmatprep.subr.mxu0 0.0
        %1819 = vmatpush1.msra.mxu0 0.0
        %1820 = vmatprep.subr.mxu0 0.0
        %1821 = vmatpush1.msra.mxu0 0.0
        %1822 = vmatprep.subr.mxu0 0.0
        %1823 = vmatpush1.msra.mxu0 0.0
        %1824 = vmatprep.subr.mxu0 0.0
        %1825 = vmatpush1.msra.mxu0 0.0
        %1826 = vmatprep.subr.mxu0 0.0
        %1827 = vmatpush1.msra.mxu0 0.0
        %1828 = vmatprep.subr.mxu0 0.0
        %1829 = vmatpush1.msra.mxu0 0.0
        %1830 = vmatprep.subr.mxu0 0.0
        %1831 = vmatpush1.msra.mxu0 0.0
        %1832 = vmatprep.subr.mxu0 0.0
        %1833 = vmatpush1.msra.mxu0 0.0
        %1834 = vmatprep.subr.mxu0 0.0
        %1835 = vmatpush1.msra.mxu0 0.0
        %1836 = vmatprep.subr.mxu0 0.0
        %1837 = vmatpush1.msra.mxu0 0.0
        %1838 = vmatprep.subr.mxu0 0.0
        %1839 = vmatpush1.msra.mxu0 0.0
        %1840 = vmatprep.subr.mxu0 0.0
        %1841 = vmatpush1.msra.mxu0 0.0
        %1842 = vmatprep.subr.mxu0 0.0
        %1843 = vmatpush1.msra.mxu0 0.0
        %1844 = vmatprep.subr.mxu0 0.0
        %1845 = vmatpush1.msra.mxu0 0.0
        %1846 = vmatprep.mubr.f32.mxu0 0.0
        %1847 = vmatmul.mubr.f32.gmra.mrb[0].mxu0 %v1780
        %v1848 = vpop.f32.mrb[0].mxu0
        %v1849 = vadd.f32 0.0, %v1848
        %v1850 = vpop.f32.mrb[0].mxu0
        %1851 = vdwg.mxu0
        %v1852 = vcombine.low %v1630, %v1776
        %v1853 = vcombine.high %v1630, %v1776
        %v1855 = vunpack.c.l.s4 1983009808
        %v1856 = vunpack.c.0.s8 %v1855
        %v1857 = vlaneseq
        %v1858 = vshrl.u32 %v1857, 7
        %v1859 = vsub.s32 %v1856, %v1858
        %v1860 = vrot.slane %v1852, %v1859
        %v1862 = vunpack.c.l.s4 1983009808
        %v1863 = vunpack.c.0.s8 %v1862
        %v1864 = vlaneseq
        %v1865 = vshrl.u32 %v1864, 7
        %v1866 = vsub.s32 %v1863, %v1865
        %v1867 = vrot.slane %v1853, %v1866
        %v1868 = vcombine.low %v1703, %v1849
        %v1869 = vcombine.high %v1703, %v1849
        %v1871 = vunpack.c.l.s4 1983009808
        %v1872 = vunpack.c.0.s8 %v1871
        %v1873 = vlaneseq
        %v1874 = vshrl.u32 %v1873, 7
        %v1875 = vsub.s32 %v1872, %v1874
        %v1876 = vrot.slane %v1868, %v1875
        %v1878 = vunpack.c.l.s4 1983009808
        %v1879 = vunpack.c.0.s8 %v1878
        %v1880 = vlaneseq
        %v1881 = vshrl.u32 %v1880, 7
        %v1882 = vsub.s32 %v1879, %v1881
        %v1883 = vrot.slane %v1869, %v1882
        %v1884 = vcombine.low %v1860, %v1876
        %v1885 = vcombine.high %v1860, %v1876
        %v1887 = vunpack.c.l.s4 1934713408
        %v1888 = vunpack.c.0.s8 %v1887
        %v1889 = vlaneseq
        %v1890 = vshrl.u32 %v1889, 7
        %v1891 = vsub.s32 %v1888, %v1890
        %v1892 = vrot.slane %v1884, %v1891
        %v1894 = vunpack.c.l.s4 1934713408
        %v1895 = vunpack.c.0.s8 %v1894
        %v1896 = vlaneseq
        %v1897 = vshrl.u32 %v1896, 7
        %v1898 = vsub.s32 %v1895, %v1897
        %v1899 = vrot.slane %v1885, %v1898
        %v1900 = vcombine.low %v1867, %v1883
        %v1901 = vcombine.high %v1867, %v1883
        %v1903 = vunpack.c.l.s4 1934713408
        %v1904 = vunpack.c.0.s8 %v1903
        %v1905 = vlaneseq
        %v1906 = vshrl.u32 %v1905, 7
        %v1907 = vsub.s32 %v1904, %v1906
        %v1908 = vrot.slane %v1900, %v1907
        %v1910 = vunpack.c.l.s4 1934713408
        %v1911 = vunpack.c.0.s8 %v1910
        %v1912 = vlaneseq
        %v1913 = vshrl.u32 %v1912, 7
        %v1914 = vsub.s32 %v1911, %v1913
        %v1915 = vrot.slane %v1901, %v1914
        %v1916 = vcombine.high %v1892, 0.0
        %v1917 = vcombine.high %v1899, 0.0
        %v1918 = vcombine.high %v1908, 0.0
        %v1919 = vcombine.high %v1915, 0.0
        %v1920 = vcombine.low %v1892, %v1899
        %v1922 = vunpack.c.l.s4 1983009808
        %v1923 = vunpack.c.0.s8 %v1922
        %v1924 = vlaneseq
        %v1925 = vshrl.u32 %v1924, 7
        %v1926 = vsub.s32 %v1923, %v1925
        %v1927 = vrot.slane %v1920, %v1926
        %v1928 = vcombine.low %v1916, %v1917
        %v1930 = vunpack.c.l.s4 1983009808
        %v1931 = vunpack.c.0.s8 %v1930
        %v1932 = vlaneseq
        %v1933 = vshrl.u32 %v1932, 7
        %v1934 = vsub.s32 %v1931, %v1933
        %v1935 = vrot.slane %v1928, %v1934
        %v1936 = vcombine.low %v1908, %v1915
        %v1938 = vunpack.c.l.s4 1983009808
        %v1939 = vunpack.c.0.s8 %v1938
        %v1940 = vlaneseq
        %v1941 = vshrl.u32 %v1940, 7
        %v1942 = vsub.s32 %v1939, %v1941
        %v1943 = vrot.slane %v1936, %v1942
        %v1944 = vcombine.low %v1918, %v1919
        %v1946 = vunpack.c.l.s4 1983009808
        %v1947 = vunpack.c.0.s8 %v1946
        %v1948 = vlaneseq
        %v1949 = vshrl.u32 %v1948, 7
        %v1950 = vsub.s32 %v1947, %v1949
        %v1951 = vrot.slane %v1944, %v1950
        %v1952 = vcombine.low %v1927, %v1935
        %v1953 = vcombine.high %v1927, %v1935
        %v1955 = vunpack.c.l.s4 1934713408
        %v1956 = vunpack.c.0.s8 %v1955
        %v1957 = vlaneseq
        %v1958 = vshrl.u32 %v1957, 7
        %v1959 = vsub.s32 %v1956, %v1958
        %v1960 = vrot.slane %v1952, %v1959
        %v1962 = vunpack.c.l.s4 1934713408
        %v1963 = vunpack.c.0.s8 %v1962
        %v1964 = vlaneseq
        %v1965 = vshrl.u32 %v1964, 7
        %v1966 = vsub.s32 %v1963, %v1965
        %v1967 = vrot.slane %v1953, %v1966
        %v1968 = vcombine.low %v1943, %v1951
        %v1969 = vcombine.high %v1943, %v1951
        %v1971 = vunpack.c.l.s4 1934713408
        %v1972 = vunpack.c.0.s8 %v1971
        %v1973 = vlaneseq
        %v1974 = vshrl.u32 %v1973, 7
        %v1975 = vsub.s32 %v1972, %v1974
        %v1976 = vrot.slane %v1968, %v1975
        %v1978 = vunpack.c.l.s4 1934713408
        %v1979 = vunpack.c.0.s8 %v1978
        %v1980 = vlaneseq
        %v1981 = vshrl.u32 %v1980, 7
        %v1982 = vsub.s32 %v1979, %v1981
        %v1983 = vrot.slane %v1969, %v1982
        %v1984 = vcombine.low %v1960, %v1976
        %v1985 = vcombine.high %v1960, %v1976
        %v1986 = vcombine.low %v1967, %v1983
        %v1987 = vcombine.high %v1967, %v1983
        %1989 = vrot.lane.b32.xlu0 %v1985, 8
        %v1990 = vpop.permute.xlu0 %1989
        %1993 = vrot.lane.b32.xlu0 %v1986, 16
        %v1994 = vpop.permute.xlu0 %1993
        %1997 = vrot.lane.b32.xlu0 %v1987, 24
        %v1998 = vpop.permute.xlu0 %1997
        %v2000 = vsel %vm1207, %v1984, %v1990
        %vm2001 = vcmask 130048
        %v2002 = vsel %vm2001, %v2000, %v1994
        %vm2003 = vcmask 195584
        %v2004 = vsel %vm2003, %v2002, %v1998
        %v2005 = vld [vmem:[#allocation13] sm:$0xff]
        %v2006 = vld [vmem:[#allocation13 + $0x8] sm:$0xff]
        %v2007 = vld [vmem:[#allocation13 + $0x10] sm:$0xff]
        %v2008 = vld [vmem:[#allocation13 + $0x18] sm:$0xff]
        %v2010 = vsel %vm541, %v2004, 0
        %2012 = vmatprep.subr.mxu0 0.0
        %2013 = vmatpush1.msra.mxu0 %v2005
        %2014 = vmatprep.subr.mxu0 0.0
        %2015 = vmatpush1.msra.mxu0 %v2006
        %2016 = vmatprep.subr.mxu0 0.0
        %2017 = vmatpush1.msra.mxu0 %v2007
        %2018 = vmatprep.subr.mxu0 0.0
        %2019 = vmatpush1.msra.mxu0 %v2008
        %2020 = vmatprep.subr.mxu0 0.0
        %2021 = vmatpush1.msra.mxu0 0.0
        %2022 = vmatprep.subr.mxu0 0.0
        %2023 = vmatpush1.msra.mxu0 0.0
        %2024 = vmatprep.subr.mxu0 0.0
        %2025 = vmatpush1.msra.mxu0 0.0
        %2026 = vmatprep.subr.mxu0 0.0
        %2027 = vmatpush1.msra.mxu0 0.0
        %2028 = vmatprep.subr.mxu0 0.0
        %2029 = vmatpush1.msra.mxu0 0.0
        %2030 = vmatprep.subr.mxu0 0.0
        %2031 = vmatpush1.msra.mxu0 0.0
        %2032 = vmatprep.subr.mxu0 0.0
        %2033 = vmatpush1.msra.mxu0 0.0
        %2034 = vmatprep.subr.mxu0 0.0
        %2035 = vmatpush1.msra.mxu0 0.0
        %2036 = vmatprep.subr.mxu0 0.0
        %2037 = vmatpush1.msra.mxu0 0.0
        %2038 = vmatprep.subr.mxu0 0.0
        %2039 = vmatpush1.msra.mxu0 0.0
        %2040 = vmatprep.subr.mxu0 0.0
        %2041 = vmatpush1.msra.mxu0 0.0
        %2042 = vmatprep.subr.mxu0 0.0
        %2043 = vmatpush1.msra.mxu0 0.0
        %2044 = vmatprep.subr.mxu0 0.0
        %2045 = vmatpush1.msra.mxu0 0.0
        %2046 = vmatprep.subr.mxu0 0.0
        %2047 = vmatpush1.msra.mxu0 0.0
        %2048 = vmatprep.subr.mxu0 0.0
        %2049 = vmatpush1.msra.mxu0 0.0
        %2050 = vmatprep.subr.mxu0 0.0
        %2051 = vmatpush1.msra.mxu0 0.0
        %2052 = vmatprep.subr.mxu0 0.0
        %2053 = vmatpush1.msra.mxu0 0.0
        %2054 = vmatprep.subr.mxu0 0.0
        %2055 = vmatpush1.msra.mxu0 0.0
        %2056 = vmatprep.subr.mxu0 0.0
        %2057 = vmatpush1.msra.mxu0 0.0
        %2058 = vmatprep.subr.mxu0 0.0
        %2059 = vmatpush1.msra.mxu0 0.0
        %2060 = vmatprep.subr.mxu0 0.0
        %2061 = vmatpush1.msra.mxu0 0.0
        %2062 = vmatprep.subr.mxu0 0.0
        %2063 = vmatpush1.msra.mxu0 0.0
        %2064 = vmatprep.subr.mxu0 0.0
        %2065 = vmatpush1.msra.mxu0 0.0
        %2066 = vmatprep.subr.mxu0 0.0
        %2067 = vmatpush1.msra.mxu0 0.0
        %2068 = vmatprep.subr.mxu0 0.0
        %2069 = vmatpush1.msra.mxu0 0.0
        %2070 = vmatprep.subr.mxu0 0.0
        %2071 = vmatpush1.msra.mxu0 0.0
        %2072 = vmatprep.subr.mxu0 0.0
        %2073 = vmatpush1.msra.mxu0 0.0
        %2074 = vmatprep.subr.mxu0 0.0
        %2075 = vmatpush1.msra.mxu0 0.0
        %2076 = vmatprep.mubr.f32.mxu0 0.0
        %2077 = vmatmul.mubr.f32.gmra.mrb[0].mxu0 %v2010
        %v2078 = vpop.f32.mrb[0].mxu0
        %v2079 = vadd.f32 %v534, %v2078
        %v2080 = vpop.f32.mrb[0].mxu0
        %2081 = vdwg.mxu0
        %v2082 = vsel %vm541, %v2079, 0.0
        %2083 = vadd.xlane.f32.xlu0 %v2082
        %v2084 = vpop.xlane.xlu0 %2083
        %v2085 = vrcp.pop 32.0
        %v2086 = vmul.f32 %v2084, %v2085
        %v2087 = vsub.f32 %v2079, %v2086
        %v2088 = vmul.f32 %v2087, %v2087
        %v2089 = vsel %vm541, %v2088, 0.0
        %2090 = vadd.xlane.f32.xlu0 %v2089
        %v2091 = vpop.xlane.xlu0 %2090
        %v2092 = vmul.f32 %v2091, %v2085
        %v2093 = vadd.f32 %v2092, 1e-06
        %v2094 = vrsqrt.pop %v2093
        %v2095 = vmul.f32 %v2087, %v2094
        %v2096 = vld [vmem:[%s7] sm:$0x1]
        %v2098 = vlaneseq
        %v2099 = vshrl.u32 %v2098, 7
        %v2100 = vsub.s32 0, %v2099
        %v2101 = vrot.slane %v2096, %v2100
        %v2103 = vmul.f32 %v2095, %v2101
        %v2104 = vld [vmem:[%s8] sm:$0x1]
        %v2106 = vlaneseq
        %v2107 = vshrl.u32 %v2106, 7
        %v2108 = vsub.s32 0, %v2107
        %v2109 = vrot.slane %v2104, %v2108
        %v2111 = vadd.f32 %v2103, %v2109
        %2112 = vst.msk [vmem:[%s526] sm:$0xff] %vm541, %v2111
        %s2113 = sand.u32 %s264, 1
        %s2114 = scalar_lea.sflag [#allocation4], %s2113
        %s2115 = sand.u32 %s264, 1
        %s2116 = smul.addr %s2115, 8
        %s2117 = scalar_lea.vmem [#allocation14], %s2116
        %s2118 = sand.u32 %s292, 1
        %s2119 = scalar_lea.sflag [#allocation16], %s2118
        %s2120 = sand.u32 %s292, 1
        %s2121 = smul.addr %s2120, 32
        %s2122 = scalar_lea.vmem [#allocation15], %s2121
        // Predicated region
        $region85: #{tpu_custom_call.1} parent=55 // pred_check
          %p2123 = pneg %p274
        $region86: #{tpu_custom_call.1} parent=55 // pred_check_branch
          %2125 = sbr.rel (%p2123) target = $region88
        $region87: #{tpu_custom_call.1} parent=55 // pred_region
          %s2127 = ssub.s32 128, 128
          %2128 = vsyncadd %s2114, %s2127
          %s2129 = sadd.s32 %s41, %s40
          %s2130 = smul.addr %s2129, 128
          %s2131 = scalar_lea.hbm %s9, %s2130
          %s2133 = sshll.u32 %s2117, 4
          %s2134 = int_to_ptr.vmem [resolvable:$true] %s2133
          %2136 = dma.vmem_to_hbm [thread:$0]  %s2134, 128, %s2131, %s2114
        $region88: #{tpu_custom_call.1} parent=55 // pred_fallthru
          _
        // Predicated region
        $region89: #{tpu_custom_call.1} parent=55 // pred_check
          %p2137 = pneg %p302
        $region90: #{tpu_custom_call.1} parent=55 // pred_check_branch
          %2139 = sbr.rel (%p2137) target = $region92
        $region91: #{tpu_custom_call.1} parent=55 // pred_region
          %s2141 = ssub.s32 512, 512
          %2142 = vsyncadd %s2119, %s2141
          %s2143 = smul.addr %s40, 4
          %s2144 = sadd.s32 %s41, %s2143
          %s2145 = smul.addr %s2144, 128
          %s2146 = scalar_lea.hbm %s10, %s2145
          %s2147 = sshll.u32 %s2122, 4
          %s2148 = int_to_ptr.vmem [resolvable:$true] %s2147
          %2153 = dma.vmem_to_hbm [thread:$0]  %s2148, 512, %s2146, %s2119, 128, 128, 8
        $region92: #{tpu_custom_call.1} parent=55 // pred_fallthru
          _
      $region56: #{tpu_custom_call.1} parent=5 // pred_fallthru
        _
      %p2154 = scmp.le.s32.totalorder 2, %s31
      // Predicated region
      $region93: #{tpu_custom_call.1} parent=5 // pred_check
        %p2155 = pneg %p2154
      $region94: #{tpu_custom_call.1} parent=5 // pred_check_branch
        %2157 = sbr.rel (%p2155) target = $region96
      $region95: #{tpu_custom_call.1} parent=5 // pred_region
        %s2158 = ssub.s32 %s31, 2
        // Predicated region
        $region97: #{tpu_custom_call.1} parent=95 // pred_check
          %p2159 = pneg %p280
        $region98: #{tpu_custom_call.1} parent=95 // pred_check_branch
          %2161 = sbr.rel (%p2159) target = $region100
        $region99: #{tpu_custom_call.1} parent=95 // pred_region
          %s2162 = sand.u32 %s265, 1
          %s2163 = scalar_lea.sflag [#allocation4], %s2162
          %s2164 = sand.u32 %s265, 1
          %s2165 = smul.addr %s2164, 8
          %s2166 = scalar_lea.vmem [#allocation14], %s2165
          %2167 = dma.done %s2163, 128
        $region100: #{tpu_custom_call.1} parent=95 // pred_fallthru
          _
        // Predicated region
        $region101: #{tpu_custom_call.1} parent=95 // pred_check
          %p2168 = pneg %p308
        $region102: #{tpu_custom_call.1} parent=95 // pred_check_branch
          %2170 = sbr.rel (%p2168) target = $region104
        $region103: #{tpu_custom_call.1} parent=95 // pred_region
          %s2171 = sand.u32 %s293, 1
          %s2172 = scalar_lea.sflag [#allocation16], %s2171
          %s2173 = sand.u32 %s293, 1
          %s2174 = smul.addr %s2173, 32
          %s2175 = scalar_lea.vmem [#allocation15], %s2174
          %2176 = dma.done %s2172, 512
        $region104: #{tpu_custom_call.1} parent=95 // pred_fallthru
          _
      $region96: #{tpu_custom_call.1} parent=5 // pred_fallthru
        _
    $region6: #{tpu_custom_call.1} parent=1 // loop_footer
      %s35 = sadd.s32 1, %s31
    $region7: #{tpu_custom_call.1} parent=1 // loop_footer_branch
      %30 = sbr.rel target = $region3
    $region8: #{tpu_custom_call.1} parent=1 // loop_exit
      _
    %2177 = vsyncpa [#allocation3], 1
    %s2178 = scalar_lea.sflag [#allocation3], 1
    %2179 = vsyncpa %s2178, 1
    %2180 = vsyncpa [#allocation6], 1
    %s2181 = scalar_lea.sflag [#allocation6], 1
    %2182 = vsyncpa %s2181, 1
    %2183 = vsyncpa [#allocation9], 1
    %2184 = vsyncpa [#allocation12], 1
    %2185 = vsyncpa [#allocation4], 1
    %s2186 = scalar_lea.sflag [#allocation4], 1
    %2187 = vsyncpa %s2186, 1
    %2188 = vsyncpa [#allocation16], 1
    %s2189 = scalar_lea.sflag [#allocation16], 1
    %2190 = vsyncpa %s2189, 1

</llo_original>
